<compile_context>
chip_gen: v7x
topology: tpu7x:2x2x1
jax: 0.10.0
libtpu: 0.0.40
codegen_flags: <defaults>
</compile_context>

<pallas_src>
import functools

import jax
import jax.numpy as jnp
from jax.experimental import pallas as pl
from jax.experimental.pallas import tpu as pltpu


# --------------------------------------------------------------------------
# Kernel
# --------------------------------------------------------------------------
def _head_kernel(x_ref, w1_ref, b1_ref, w2_ref, o_ref, acc_ref):
    """Grid = (h_split, k_tile).

    Every step: acc += x_tile @ W1_tile (bf16 operands, f32 accumulate).
    Last K step: add bias1, ReLU, small second matmul (bf16 operands, f32
    accumulate) for this H half, lane-dense store of the (1, B, NCp) partial.
    """
    k = pl.program_id(1)

    @pl.when(k == 0)
    def _():
        acc_ref[...] = jnp.zeros_like(acc_ref)

    acc_ref[...] += jnp.dot(x_ref[...], w1_ref[...],
                            preferred_element_type=jnp.float32)

    @pl.when(k == pl.num_programs(1) - 1)
    def _():
        h = jnp.maximum(acc_ref[...] + b1_ref[...], 0.0)          # ReLU(ln1)
        part = jnp.dot(h.astype(w2_ref.dtype), w2_ref[...],
                       preferred_element_type=jnp.float32)
        o_ref[...] = part[None].astype(o_ref.dtype)               # ln2 partial


def densenet_head(x2d, w1, b1, w2, *, tk):
    """x2d: (B, F_pad) bf16.
    w1:  (S, F_pad, th) bf16, BN folded, contiguous per H-half.
    b1:  (1, H) f32 (BN shift folded in).
    w2:  (H, NCp) bf16, NCp % 128 == 0.
    Returns (S, B, NCp) f32 partials; caller sums axis 0 and adds bias2."""
    B, F_pad = x2d.shape
    S, F_pad_w, th = w1.shape
    H = b1.shape[1]
    NCp = w2.shape[1]
    assert F_pad == F_pad_w and F_pad % tk == 0
    assert S * th == H and th % 128 == 0 and NCp % 128 == 0
    n_k = F_pad // tk

    bytes_accessed = int(
        x2d.size * x2d.dtype.itemsize * S      # x re-streamed per H half (tiny)
        + w1.size * w1.dtype.itemsize          # dominant: W1 stream (bf16)
        + b1.size * b1.dtype.itemsize
        + w2.size * w2.dtype.itemsize
        + S * B * NCp * 4)
    cost = pl.CostEstimate(flops=2 * B * F_pad * H + 2 * B * H * NCp,
                           transcendentals=0,
                           bytes_accessed=bytes_accessed)

    grid_spec = pltpu.PrefetchScalarGridSpec(
        num_scalar_prefetch=0,
        grid=(S, n_k),
        in_specs=[
            pl.BlockSpec((B, tk), lambda h, k: (0, k)),              # x tile
            pl.BlockSpec((pl.Squeezed(), tk, th),                    # W1 tile
                         lambda h, k: (h, k, 0)),
            pl.BlockSpec((1, th), lambda h, k: (0, h)),              # b1 half
            pl.BlockSpec((th, NCp), lambda h, k: (h, 0)),            # W2 half
        ],
        out_specs=pl.BlockSpec((1, B, NCp), lambda h, k: (h, 0, 0)),
        scratch_shapes=[pltpu.VMEM((B, th), jnp.float32)],
    )

    return pl.pallas_call(
        _head_kernel,
        out_shape=jax.ShapeDtypeStruct((S, B, NCp), jnp.float32),
        grid_spec=grid_spec,
        compiler_params=pltpu.CompilerParams(
            dimension_semantics=("parallel", "arbitrary")),
        cost_estimate=cost,
    )(x2d, w1, b1, w2)


# --------------------------------------------------------------------------
# One-time weight preparation (hoisted out of the per-call hot path)
# --------------------------------------------------------------------------
def _auto_config():
    """Generation-aware defaults. tk=12288 divides densenet201's F=122880 and
    its double-buffered bf16 W1 tile fits every generation's default scoped
    VMEM; H-splitting only pays off on 2-TensorCore chips (v7x)."""
    kind = ""
    try:
        kind = jax.devices()[0].device_kind.lower()
    except Exception:
        pass
    num_h_splits = 2 if "v7" in kind else 1
    return {"tk": 12288, "num_h_splits": num_h_splits}


def prepare_head_params(params, *, tk, num_h_splits):
    """Fold eval-mode BatchNorm1d into W1/b1, cast streamed operands to bf16,
    pad the reduction dim to a tk multiple and num_classes to 128 lanes, and
    lay W1 out contiguously per H-half. Run ONCE per weight set."""
    eps = 1e-5
    scale = params["bn_gamma"] / jnp.sqrt(params["bn_var"] + eps)      # (F,)
    shift = params["bn_beta"] - params["bn_mean"] * scale              # (F,)
    w1f = params["w1"] * scale[:, None]                                # fold scale
    # NOTE: uses the pre-bf16, pre-padded W1 (keep this ordering).
    b1f = params["b1"] + shift @ params["w1"]                          # fold shift

    F, H = params["w1"].shape
    NC = params["w2"].shape[1]
    assert H % num_h_splits == 0
    th = H // num_h_splits

    F_pad = ((F + tk - 1) // tk) * tk
    if F_pad != F:
        w1f = jnp.pad(w1f, ((0, F_pad - F), (0, 0)))

    # (S, F_pad, th): each TensorCore's W1 half is a contiguous HBM slab.
    w1s = (w1f.reshape(F_pad, num_h_splits, th)
               .transpose(1, 0, 2)
               .astype(jnp.bfloat16))

    NCp = ((NC + 127) // 128) * 128
    w2p = jnp.pad(params["w2"], ((0, 0), (0, NCp - NC))).astype(jnp.bfloat16)

    return {
        "w1": jax.device_put(w1s),
        "b1": jax.device_put(b1f.reshape(1, H).astype(jnp.float32)),
        "w2": jax.device_put(w2p),
        "b2": jax.device_put(params["b2"].astype(jnp.float32)),
        "tk": tk,
    }


# --------------------------------------------------------------------------
# Forward pass (hot path: flatten, pad/cast x, kernel, sum partials + bias)
# --------------------------------------------------------------------------
@functools.partial(jax.jit, static_argnames=("tk",))
def _forward_impl(feat_nchw, w1, b1, w2, b2, *, tk):
    B = feat_nchw.shape[0]
    x2d = feat_nchw.reshape(B, -1)          # C-major flatten, like torch .view
    # Dropout(0.5) is identity in eval mode.
    # TODO(synk): training-mode dropout / batch-stats BN not implemented
    #             (eval semantics only).
    F = x2d.shape[1]
    F_pad = w1.shape[1]
    if F_pad != F:
        x2d = jnp.pad(x2d, ((0, 0), (0, F_pad - F)))
    x2d = x2d.astype(jnp.bfloat16)

    partials = densenet_head(x2d, w1, b1, w2, tk=tk)
    NC = b2.shape[0]
    return partials.sum(axis=0)[:, :NC] + b2


def densenet_forward(feat_nchw, prep):
    return _forward_impl(feat_nchw, prep["w1"], prep["b1"], prep["w2"],
                         prep["b2"], tk=prep["tk"])


# --------------------------------------------------------------------------
# Parameters & references
# --------------------------------------------------------------------------
def make_params(key, feat_dim, hidden, num_classes):
    ks = jax.random.split(key, 8)
    return {
        # Non-trivial eval-mode BatchNorm1d statistics (var kept positive).
        "bn_gamma": 1.0 + 0.1 * jax.random.normal(ks[0], (feat_dim,), jnp.float32),
        "bn_beta": 0.1 * jax.random.normal(ks[1], (feat_dim,), jnp.float32),
        "bn_mean": 0.1 * jax.random.normal(ks[2], (feat_dim,), jnp.float32),
        "bn_var": jax.random.uniform(ks[3], (feat_dim,), jnp.float32, 0.5, 1.5),
        # Linear weights stored transposed: (in, out), so y = x @ W + b.
        "w1": 0.02 * jax.random.normal(ks[4], (feat_dim, hidden), jnp.float32),
        "b1": 0.01 * jax.random.normal(ks[5], (hidden,), jnp.float32),
        "w2": 0.02 * jax.random.normal(ks[6], (hidden, num_classes), jnp.float32),
        "b2": 0.01 * jax.random.normal(ks[7], (num_classes,), jnp.float32),
    }


def _reference_f32(feat_nchw, params):
    """Pure-f32 mirror of the PyTorch module (eval) on the flattened features."""
    B = feat_nchw.shape[0]
    x = feat_nchw.reshape(B, -1)
    eps = 1e-5
    x = (x - params["bn_mean"]) / jnp.sqrt(params["bn_var"] + eps)
    x = x * params["bn_gamma"] + params["bn_beta"]
    h = jnp.maximum(x @ params["w1"] + params["b1"], 0.0)
    return h @ params["w2"] + params["b2"]


def _reference_bf16_mirror(feat_nchw, params):
    """Same math as the kernel path: BN folded, x/W1/h/W2 rounded to bf16,
    f32 accumulation everywhere."""
    B = feat_nchw.shape[0]
    x = feat_nchw.reshape(B, -1)
    eps = 1e-5
    scale = params["bn_gamma"] / jnp.sqrt(params["bn_var"] + eps)
    shift = params["bn_beta"] - params["bn_mean"] * scale
    w1f = (params["w1"] * scale[:, None]).astype(jnp.bfloat16).astype(jnp.float32)
    b1f = params["b1"] + shift @ params["w1"]
    xq = x.astype(jnp.bfloat16).astype(jnp.float32)
    h = jnp.maximum(xq @ w1f + b1f, 0.0)
    hq = h.astype(jnp.bfloat16).astype(jnp.float32)
    w2q = params["w2"].astype(jnp.bfloat16).astype(jnp.float32)
    return hq @ w2q + params["b2"]


# --------------------------------------------------------------------------
# Demo / self-test
# --------------------------------------------------------------------------
if __name__ == "__main__":
    # Small, module-consistent shapes: densenet201 features are (B, 1920, 8, 8);
    # here channels are scaled 1920 -> 192 so F = 192*8*8 = 12288.
    B, C, Hs, Ws = 2, 192, 8, 8
    NUM_CLASSES = 10
    HIDDEN = 256
    FEAT = C * Hs * Ws

    key = jax.random.PRNGKey(0)
    kx, kp = jax.random.split(key)
    feat = jax.random.normal(kx, (B, C, Hs, Ws), jnp.float32)
    params = make_params(kp, FEAT, HIDDEN, NUM_CLASSES)

    ref_mirror = _reference_bf16_mirror(feat, params)
    ref_f32 = _reference_f32(feat, params)

    auto = _auto_config()
    configs = [
        # (tk, num_h_splits): multi-K accumulation path, single TC layout.
        (4096, 1),
        # H-split path (contiguous per-half W1 slabs), as used on v7x.
        (6144, 2),
        # Production-style defaults, clamped to the demo's F.
        (min(auto["tk"], FEAT), auto["num_h_splits"]),
    ]

    out = None
    for tk, s in configs:
        prep = prepare_head_params(params, tk=tk, num_h_splits=s)
        out = densenet_forward(feat, prep)
        out = jax.block_until_ready(out)
        assert out.shape == (B, NUM_CLASSES), out.shape

        # Tight check against a reference that mirrors the kernel's bf16 rounding.
        assert jnp.allclose(out, ref_mirror, atol=2e-3, rtol=2e-3), (
            (tk, s, float(jnp.max(jnp.abs(out - ref_mirror)))))

        # Loose sanity check against the full-precision PyTorch-equivalent math.
        assert jnp.allclose(out, ref_f32, atol=1e-1, rtol=1e-1), (
            (tk, s, float(jnp.max(jnp.abs(out - ref_f32)))))

    print("KERNEL_OK")
</pallas_src>

<mosaic_0001>
module attributes {stable_mosaic.version = 11 : i64} {
  func.func @_head_kernel(%arg0: i32, %arg1: i32, %arg2: memref<2x4096xbf16, #tpu.memory_space<vmem>>, %arg3: memref<1x4096x256xbf16, #tpu.memory_space<vmem>>, %arg4: memref<1x256xf32, #tpu.memory_space<vmem>>, %arg5: memref<256x128xbf16, #tpu.memory_space<vmem>>, %arg6: memref<1x2x128xf32, #tpu.memory_space<vmem>>, %arg7: memref<2x256xf32, #tpu.memory_space<vmem>>) attributes {dimension_semantics = [#tpu.dimension_semantics<parallel>, #tpu.dimension_semantics<arbitrary>], iteration_bounds = array<i64: 1, 3>, scalar_prefetch = 0 : i64, scratch_operands = 1 : i64, tpu.core_type = #tpu.core_type<tc>, window_params = [{transform_indices = @transform_0, window_bounds = array<i64: 2, 4096>}, {transform_indices = @transform_1, window_bounds = array<i64: 1, 4096, 256>}, {transform_indices = @transform_2, window_bounds = array<i64: 1, 256>}, {transform_indices = @transform_3, window_bounds = array<i64: 256, 128>}, {transform_indices = @transform_4, window_bounds = array<i64: 1, 2, 128>}]} {
    %c0_i32 = arith.constant 0 : i32
    %0 = arith.cmpi eq, %arg1, %c0_i32 : i32
    %1 = arith.extui %0 : i1 to i32
    %c0_i32_0 = arith.constant 0 : i32
    %2 = arith.cmpi ne, %1, %c0_i32_0 : i32
    scf.if %2 {
      %cst_10 = arith.constant 0.000000e+00 : f32
      %13 = vector.broadcast %cst_10 : f32 to vector<2x256xf32>
      %c0_11 = arith.constant 0 : index
      %c0_12 = arith.constant 0 : index
      %14 = vector.load %arg7[%c0_11, %c0_12] : memref<2x256xf32, #tpu.memory_space<vmem>>, vector<2x256xf32>
      tpu.vector_store %arg7[%c0_11, %c0_12], %13 {strides = array<i32>} : memref<2x256xf32, #tpu.memory_space<vmem>>, vector<2x256xf32>,
    } else {
    }
    %c0 = arith.constant 0 : index
    %c0_1 = arith.constant 0 : index
    %3 = vector.load %arg7[%c0, %c0_1] : memref<2x256xf32, #tpu.memory_space<vmem>>, vector<2x256xf32>
    %c0_2 = arith.constant 0 : index
    %c0_3 = arith.constant 0 : index
    %4 = vector.load %arg2[%c0_2, %c0_3] : memref<2x4096xbf16, #tpu.memory_space<vmem>>, vector<2x4096xbf16>
    %c0_4 = arith.constant 0 : index
    %c0_5 = arith.constant 0 : index
    %c0_6 = arith.constant 0 : index
    %5 = vector.load %arg3[%c0_4, %c0_5, %c0_6] : memref<1x4096x256xbf16, #tpu.memory_space<vmem>>, vector<1x4096x256xbf16>
    %6 = vector.shape_cast %5 : vector<1x4096x256xbf16> to vector<4096x256xbf16>
    %cst = arith.constant dense<0.000000e+00> : vector<2x256xf32>
    %7 = tpu.matmul %4, %6, %cst {dimension_numbers = #tpu.dot_dimension_numbers<[1], [0], [0], [1], [0, 0, 1, 1], [], []>} : vector<2x4096xbf16>, vector<4096x256xbf16>, vector<2x256xf32> -> vector<2x256xf32>
    %8 = arith.addf %3, %7 : vector<2x256xf32>
    %c0_7 = arith.constant 0 : index
    %c0_8 = arith.constant 0 : index
    %9 = vector.load %arg7[%c0_7, %c0_8] : memref<2x256xf32, #tpu.memory_space<vmem>>, vector<2x256xf32>
    tpu.vector_store %arg7[%c0_7, %c0_8], %8 {strides = array<i32>} : memref<2x256xf32, #tpu.memory_space<vmem>>, vector<2x256xf32>,
    %c2_i32 = arith.constant 2 : i32
    %10 = arith.cmpi eq, %arg1, %c2_i32 : i32
    %11 = arith.extui %10 : i1 to i32
    %c0_i32_9 = arith.constant 0 : i32
    %12 = arith.cmpi ne, %11, %c0_i32_9 : i32
    scf.if %12 {
      %c0_10 = arith.constant 0 : index
      %c0_11 = arith.constant 0 : index
      %13 = vector.load %arg7[%c0_10, %c0_11] : memref<2x256xf32, #tpu.memory_space<vmem>>, vector<2x256xf32>
      %c0_12 = arith.constant 0 : index
      %c0_13 = arith.constant 0 : index
      %14 = vector.load %arg4[%c0_12, %c0_13] : memref<1x256xf32, #tpu.memory_space<vmem>>, vector<1x256xf32>
      %15 = vector.broadcast %14 : vector<1x256xf32> to vector<2x256xf32>
      %16 = arith.addf %13, %15 : vector<2x256xf32>
      %cst_14 = arith.constant 0.000000e+00 : f32
      %17 = vector.broadcast %cst_14 : f32 to vector<2x256xf32>
      %18 = arith.maximumf %16, %17 : vector<2x256xf32>
      %19 = arith.truncf %18 : vector<2x256xf32> to vector<2x256xbf16>
      %c0_15 = arith.constant 0 : index
      %c0_16 = arith.constant 0 : index
      %20 = vector.load %arg5[%c0_15, %c0_16] : memref<256x128xbf16, #tpu.memory_space<vmem>>, vector<256x128xbf16>
      %cst_17 = arith.constant dense<0.000000e+00> : vector<2x128xf32>
      %21 = tpu.matmul %19, %20, %cst_17 {dimension_numbers = #tpu.dot_dimension_numbers<[1], [0], [0], [1], [0, 0, 1, 1], [], []>} : vector<2x256xbf16>, vector<256x128xbf16>, vector<2x128xf32> -> vector<2x128xf32>
      %22 = vector.shape_cast %21 : vector<2x128xf32> to vector<1x2x128xf32>
      %c0_18 = arith.constant 0 : index
      %c0_19 = arith.constant 0 : index
      %c0_20 = arith.constant 0 : index
      %23 = vector.load %arg6[%c0_18, %c0_19, %c0_20] : memref<1x2x128xf32, #tpu.memory_space<vmem>>, vector<1x2x128xf32>
      tpu.vector_store %arg6[%c0_18, %c0_19, %c0_20], %22 {strides = array<i32>} : memref<1x2x128xf32, #tpu.memory_space<vmem>>, vector<1x2x128xf32>,
    } else {
    }
    return
  }
  func.func @transform_0(%arg0: i32, %arg1: i32) -> (i32, i32) {
    %c0_i32 = arith.constant 0 : i32
    %c0_i32_0 = arith.constant 0 : i32
    return %c0_i32, %arg1 : i32, i32
  }
  func.func @transform_1(%arg0: i32, %arg1: i32) -> (i32, i32, i32) {
    %c0_i32 = arith.constant 0 : i32
    %c0_i32_0 = arith.constant 0 : i32
    return %arg0, %arg1, %c0_i32 : i32, i32, i32
  }
  func.func @transform_2(%arg0: i32, %arg1: i32) -> (i32, i32) {
    %c0_i32 = arith.constant 0 : i32
    %c0_i32_0 = arith.constant 0 : i32
    return %c0_i32, %arg0 : i32, i32
  }
  func.func @transform_3(%arg0: i32, %arg1: i32) -> (i32, i32) {
    %c0_i32 = arith.constant 0 : i32
    %c0_i32_0 = arith.constant 0 : i32
    return %arg0, %c0_i32 : i32, i32
  }
  func.func @transform_4(%arg0: i32, %arg1: i32) -> (i32, i32, i32) {
    %c0_i32 = arith.constant 0 : i32
    %c0_i32_0 = arith.constant 0 : i32
    %c0_i32_1 = arith.constant 0 : i32
    return %arg0, %c0_i32, %c0_i32_0 : i32, i32, i32
  }
}

</mosaic_0001>

<llo_original>
// kernel: _forward_impl.1
$region0: #{_forward_impl.1}
  #allocation0 [shape = 'u32[]', space=smem, size = 0x4, offset = 0x4, fixed_abs, tag = 'smem constant byte address 0x4 - core index']
  #allocation1 [shape = 'u32[144,128]{1,0:T(1,128)}', space=vmem, size = 0x12000, scoped, tag = 'internal scratch']
  #allocation2 [shape = 'f32[2,256]{1,0:T(2,128)}', space=vmem, size = 0x800, scoped, tag = 'scratch operand']
  %s0 = inlined_call_operand.vmem [shape: bf16[2,12288], index: 0, kind: input, shape index: {}]
  %s1 = inlined_call_operand.hbm [shape: bf16[1,12288,256], index: 1, kind: input, shape index: {}]
  %s2 = inlined_call_operand.hbm [shape: f32[1,256], index: 2, kind: input, shape index: {}]
  %s3 = inlined_call_operand.hbm [shape: bf16[256,128], index: 3, kind: input, shape index: {}]
  %s4 = inlined_call_operand.vmem [shape: f32[1,2,128], index: 4, kind: output, shape index: {}]
  %s5 = sld [smem:[#allocation0]]
  $region69: #{_forward_impl.1} parent=0
    _
  %s7 = ssub.s32 1, %s5
  %s8 = scalar_select 0, %s7, %s5
  $region1: #{_forward_impl.1} parent=0
    #allocation3 [shape = 'u8[4194304]{0}', space=vmem, size = 0x400000, scoped, tag = 'input window, operand 1']
    #allocation4 [shape = 's32[2]{0}', space=sflag, size = 0x8, scoped, tag = 'scoped memory for _forward_impl.1']
    #allocation5 [shape = 'u8[1024]{0}', space=vmem, size = 0x400, scoped, tag = 'input window, operand 2, single buffered']
    #allocation6 [shape = 's32[1]{0}', space=sflag, size = 0x4, scoped, tag = 'scoped memory for _forward_impl.1']
    #allocation7 [shape = 'u8[65536]{0}', space=vmem, size = 0x10000, scoped, tag = 'input window, operand 3, single buffered']
    %9 = vsyncpa [#allocation4], 0
    %s10 = scalar_lea.sflag [#allocation4], 1
    %11 = vsyncpa %s10, 0
    %12 = vsyncpa [#allocation6], 0
    loop: start=0, step=1, limit=5
    $region2: #{_forward_impl.1} parent=1 // loop_pre_header
      _
    $region3: #{_forward_impl.1} parent=1 // loop_header
      %s14 = sphi 0, %s18
      %p15 = scmp.ge.s32.totalorder %s14, 5
      %s21 = sphi 0, %s33
      %s22 = sphi 0, %s29
      %s23 = sphi 0, %s21
      %s24 = sphi 0, %s22
      %s25 = sphi 0, %s23
      %s26 = sphi 0, %s24
      %s36 = sphi 0, %s38
      %s39 = sphi 0, %s36
      %s40 = sphi 0, %s39
      %s56 = sphi 0, %s40
      %s64 = sphi 0, %s66
      %s67 = sphi 0, %s64
      %s68 = sphi 0, %s67
      %s84 = sphi 0, %s68
      %s90 = sphi 0, %s92
      %s93 = sphi 0, %s90
      %s94 = sphi 0, %s93
      %s110 = sphi 0, %s94
      %s116 = sphi 0, %s118
      %s119 = sphi 0, %s116
      %s120 = sphi 0, %s119
      %s136 = sphi 0, %s120
      %s142 = sphi 0, %s144
      %s145 = sphi 0, %s142
      %s146 = sphi 0, %s145
      %s162 = sphi 0, %s146
    $region4: #{_forward_impl.1} parent=1 // loop_header_branch
      %17 = sbr.rel (%p15) target = $region8
    $region5: #{_forward_impl.1} parent=1 // loop_body
      %s19 = ssub.s32 %s14, 1
      %s20 = ssub.s32 %s14, 2
      %s27 = sadd.s32 1, %s22
      %p28 = scmp.ge.s32.totalorder %s27, 3
      %s29 = scalar_select %p28, 0, %s27
      %s30 = sadd.s32 1, %s21
      %s31 = scalar_select %p28, %s30, %s21
      %p32 = scmp.ge.s32.totalorder %s31, 1
      %s33 = scalar_select %p32, 0, %s31
      %s34 = ssub.s32 %s22, %s29
      %p35 = scmp.eq.s32.totalorder %s34, 0
      %s37 = sadd.s32 %s36, 1
      %s38 = scalar_select %p35, %s36, %s37
      %p41 = pneg %p35
      %p42 = scmp.eq.s32.totalorder %s14, 2
      %p43 = por %p41, %p42
      %p44 = scmp.ne.s32.totalorder %s36, %s39
      %p45 = scmp.eq.s32.totalorder %s14, 0
      %p46 = por %p44, %p45
      %p47 = scmp.ne.s32.totalorder %s36, %s39
      %p48 = scmp.eq.s32.totalorder %s19, 2
      %p49 = por %p47, %p48
      %p50 = scmp.ne.s32.totalorder %s39, %s40
      %p51 = scmp.eq.s32.totalorder %s19, 0
      %p52 = por %p50, %p51
      %p53 = scmp.ne.s32.totalorder %s39, %s40
      %p54 = scmp.eq.s32.totalorder %s20, 2
      %p55 = por %p53, %p54
      %p57 = scmp.ne.s32.totalorder %s40, %s56
      %p58 = scmp.eq.s32.totalorder %s20, 0
      %p59 = por %p57, %p58
      %s60 = ssub.s32 %s21, %s33
      %s61 = ssub.s32 %s22, %s29
      %s62 = sor.u32 %s60, %s61
      %p63 = scmp.eq.s32.totalorder %s62, 0
      %s65 = sadd.s32 %s64, 1
      %s66 = scalar_select %p63, %s64, %s65
      %p69 = pneg %p63
      %p70 = scmp.eq.s32.totalorder %s14, 2
      %p71 = por %p69, %p70
      %p72 = scmp.ne.s32.totalorder %s64, %s67
      %p73 = scmp.eq.s32.totalorder %s14, 0
      %p74 = por %p72, %p73
      %p75 = scmp.ne.s32.totalorder %s64, %s67
      %p76 = scmp.eq.s32.totalorder %s19, 2
      %p77 = por %p75, %p76
      %p78 = scmp.ne.s32.totalorder %s67, %s68
      %p79 = scmp.eq.s32.totalorder %s19, 0
      %p80 = por %p78, %p79
      %p81 = scmp.ne.s32.totalorder %s67, %s68
      %p82 = scmp.eq.s32.totalorder %s20, 2
      %p83 = por %p81, %p82
      %p85 = scmp.ne.s32.totalorder %s68, %s84
      %p86 = scmp.eq.s32.totalorder %s20, 0
      %p87 = por %p85, %p86
      %s88 = ssub.s32 %s21, %s33
      %p89 = scmp.eq.s32.totalorder %s88, 0
      %s91 = sadd.s32 %s90, 1
      %s92 = scalar_select %p89, %s90, %s91
      %p95 = pneg %p89
      %p96 = scmp.eq.s32.totalorder %s14, 2
      %p97 = por %p95, %p96
      %p98 = scmp.ne.s32.totalorder %s90, %s93
      %p99 = scmp.eq.s32.totalorder %s14, 0
      %p100 = por %p98, %p99
      %p101 = scmp.ne.s32.totalorder %s90, %s93
      %p102 = scmp.eq.s32.totalorder %s19, 2
      %p103 = por %p101, %p102
      %p104 = scmp.ne.s32.totalorder %s93, %s94
      %p105 = scmp.eq.s32.totalorder %s19, 0
      %p106 = por %p104, %p105
      %p107 = scmp.ne.s32.totalorder %s93, %s94
      %p108 = scmp.eq.s32.totalorder %s20, 2
      %p109 = por %p107, %p108
      %p111 = scmp.ne.s32.totalorder %s94, %s110
      %p112 = scmp.eq.s32.totalorder %s20, 0
      %p113 = por %p111, %p112
      %s114 = ssub.s32 %s21, %s33
      %p115 = scmp.eq.s32.totalorder %s114, 0
      %s117 = sadd.s32 %s116, 1
      %s118 = scalar_select %p115, %s116, %s117
      %p121 = pneg %p115
      %p122 = scmp.eq.s32.totalorder %s14, 2
      %p123 = por %p121, %p122
      %p124 = scmp.ne.s32.totalorder %s116, %s119
      %p125 = scmp.eq.s32.totalorder %s14, 0
      %p126 = por %p124, %p125
      %p127 = scmp.ne.s32.totalorder %s116, %s119
      %p128 = scmp.eq.s32.totalorder %s19, 2
      %p129 = por %p127, %p128
      %p130 = scmp.ne.s32.totalorder %s119, %s120
      %p131 = scmp.eq.s32.totalorder %s19, 0
      %p132 = por %p130, %p131
      %p133 = scmp.ne.s32.totalorder %s119, %s120
      %p134 = scmp.eq.s32.totalorder %s20, 2
      %p135 = por %p133, %p134
      %p137 = scmp.ne.s32.totalorder %s120, %s136
      %p138 = scmp.eq.s32.totalorder %s20, 0
      %p139 = por %p137, %p138
      %s140 = ssub.s32 %s21, %s33
      %p141 = scmp.eq.s32.totalorder %s140, 0
      %s143 = sadd.s32 %s142, 1
      %s144 = scalar_select %p141, %s142, %s143
      %p147 = pneg %p141
      %p148 = scmp.eq.s32.totalorder %s14, 2
      %p149 = por %p147, %p148
      %p150 = scmp.ne.s32.totalorder %s142, %s145
      %p151 = scmp.eq.s32.totalorder %s14, 0
      %p152 = por %p150, %p151
      %p153 = scmp.ne.s32.totalorder %s142, %s145
      %p154 = scmp.eq.s32.totalorder %s19, 2
      %p155 = por %p153, %p154
      %p156 = scmp.ne.s32.totalorder %s145, %s146
      %p157 = scmp.eq.s32.totalorder %s19, 0
      %p158 = por %p156, %p157
      %p159 = scmp.ne.s32.totalorder %s145, %s146
      %p160 = scmp.eq.s32.totalorder %s20, 2
      %p161 = por %p159, %p160
      %p163 = scmp.ne.s32.totalorder %s146, %s162
      %p164 = scmp.eq.s32.totalorder %s20, 0
      %p165 = por %p163, %p164
      %p166 = scmp.le.s32.totalorder 1, %s14
      %p167 = scmp.lt.s32.totalorder %s14, 4
      %p168 = pnand %p166, %p167
      %p169 = pneg %p168
      // Predicated region
      $region9: #{_forward_impl.1} parent=5 // pred_check
        _
      $region10: #{_forward_impl.1} parent=5 // pred_check_branch
        %171 = sbr.rel (%p168) target = $region12
      $region11: #{_forward_impl.1} parent=5 // pred_region
        %s172 = ssub.s32 %s14, 1
        // Predicated region
        $region13: #{_forward_impl.1} parent=11 // pred_check
          %p173 = pneg %p106
        $region14: #{_forward_impl.1} parent=11 // pred_check_branch
          %175 = sbr.rel (%p173) target = $region16
        $region15: #{_forward_impl.1} parent=11 // pred_region
          %s176 = smul.u32 2, %s23
          %s178 = ssub.s32 32, 32
          %179 = vsyncadd [#allocation6], %s178
          %s180 = smul.addr %s176, 16
          %s181 = scalar_lea.hbm %s2, %s180
          %s183 = sshll.u32 [#allocation5], 4
          %s184 = int_to_ptr.vmem [resolvable:$true] %s183
          %186 = dma.hbm_to_vmem [thread:$0]  %s181, 32, %s184, [#allocation6]
        $region16: #{_forward_impl.1} parent=11 // pred_fallthru
          _
        // Predicated region
        $region17: #{_forward_impl.1} parent=11 // pred_check
          %p187 = pneg %p132
        $region18: #{_forward_impl.1} parent=11 // pred_check_branch
          %189 = sbr.rel (%p187) target = $region20
        $region19: #{_forward_impl.1} parent=11 // pred_region
          %s190 = smul.u32 32, %s23
          %s192 = ssub.s32 2048, 2048
          %193 = vsyncadd [#allocation6], %s192
          %s194 = smul.addr %s190, 64
          %s195 = scalar_lea.hbm %s3, %s194
          %s196 = sshll.u32 [#allocation7], 4
          %s197 = int_to_ptr.vmem [resolvable:$true] %s196
          %202 = dma.hbm_to_vmem [thread:$0]  %s195, 2048, %s197, [#allocation6], 64, 64, 4
        $region20: #{_forward_impl.1} parent=11 // pred_fallthru
          _
      $region12: #{_forward_impl.1} parent=5 // pred_fallthru
        _
      %p203 = scmp.lt.s32.totalorder %s14, 3
      // Predicated region
      $region21: #{_forward_impl.1} parent=5 // pred_check
        %p204 = pneg %p203
      $region22: #{_forward_impl.1} parent=5 // pred_check_branch
        %206 = sbr.rel (%p204) target = $region24
      $region23: #{_forward_impl.1} parent=5 // pred_region
        // Predicated region
        $region25: #{_forward_impl.1} parent=23 // pred_check
          %p207 = pneg %p46
        $region26: #{_forward_impl.1} parent=23 // pred_check_branch
          %209 = sbr.rel (%p207) target = $region28
        $region27: #{_forward_impl.1} parent=23 // pred_region
          %s210 = smul.u32 32, %s22
          %p211 = scmp.lt.s32.totalorder %s210, 95
          %s212 = scalar_select %p211, %s210, 95
          %s213 = scalar_lea.vmem %s0, %s212
          %s214 = smul.u32 32, %s22
        $region28: #{_forward_impl.1} parent=23 // pred_fallthru
          _
        // Predicated region
        $region29: #{_forward_impl.1} parent=23 // pred_check
          %p215 = pneg %p74
        $region30: #{_forward_impl.1} parent=23 // pred_check_branch
          %217 = sbr.rel (%p215) target = $region32
        $region31: #{_forward_impl.1} parent=23 // pred_region
          %s218 = sand.u32 %s64, 1
          %s219 = scalar_lea.sflag [#allocation4], %s218
          %s220 = sand.u32 %s64, 1
          %s221 = smul.addr %s220, 4096
          %s222 = scalar_lea.vmem [#allocation3], %s221
          %s223 = smul.u32 512, %s22
          %s225 = ssub.s32 65536, 65536
          %226 = vsyncadd %s219, %s225
          %s227 = smul.addr %s223, 2
          %s228 = smul.addr %s21, 3072
          %s229 = sadd.s32 %s227, %s228
          %s230 = smul.addr %s229, 64
          %s231 = scalar_lea.hbm %s1, %s230
          %s232 = sshll.u32 %s222, 4
          %s233 = int_to_ptr.vmem [resolvable:$true] %s232
          %238 = dma.hbm_to_vmem [thread:$0]  %s231, 65536, %s233, %s219, 128, 128, 8
        $region32: #{_forward_impl.1} parent=23 // pred_fallthru
          _
      $region24: #{_forward_impl.1} parent=5 // pred_fallthru
        _
      %p239 = scmp.le.s32.totalorder 1, %s14
      %p240 = scmp.lt.s32.totalorder %s14, 4
      %p241 = pnand %p239, %p240
      %p242 = pneg %p241
      // Predicated region
      $region33: #{_forward_impl.1} parent=5 // pred_check
        _
      $region34: #{_forward_impl.1} parent=5 // pred_check_branch
        %244 = sbr.rel (%p241) target = $region36
      $region35: #{_forward_impl.1} parent=5 // pred_region
        %s245 = ssub.s32 %s14, 1
        %s246 = sand.u32 %s67, 1
        %s247 = scalar_lea.sflag [#allocation4], %s246
        %s248 = sand.u32 %s67, 1
        %s249 = smul.addr %s248, 4096
        %s250 = scalar_lea.vmem [#allocation3], %s249
        // Predicated region
        $region37: #{_forward_impl.1} parent=35 // pred_check
          %p251 = pneg %p80
        $region38: #{_forward_impl.1} parent=35 // pred_check_branch
          %253 = sbr.rel (%p251) target = $region40
        $region39: #{_forward_impl.1} parent=35 // pred_region
          %254 = dma.done %s247, 65536
        $region40: #{_forward_impl.1} parent=35 // pred_fallthru
          _
        // Predicated region
        $region41: #{_forward_impl.1} parent=35 // pred_check
          %p255 = pneg %p106
        $region42: #{_forward_impl.1} parent=35 // pred_check_branch
          %257 = sbr.rel (%p255) target = $region44
        $region43: #{_forward_impl.1} parent=35 // pred_region
          %258 = dma.done [#allocation6], 32
        $region44: #{_forward_impl.1} parent=35 // pred_fallthru
          _
        // Predicated region
        $region45: #{_forward_impl.1} parent=35 // pred_check
          %p259 = pneg %p132
        $region46: #{_forward_impl.1} parent=35 // pred_check_branch
          %261 = sbr.rel (%p259) target = $region48
        $region47: #{_forward_impl.1} parent=35 // pred_region
          %262 = dma.done [#allocation6], 2048
        $region48: #{_forward_impl.1} parent=35 // pred_fallthru
          _
        %s263 = smul.u32 32, %s24
        %p264 = scmp.lt.s32.totalorder %s263, 95
        %s265 = scalar_select %p264, %s263, 95
        %s266 = scalar_lea.vmem %s0, %s265
        %p267 = pneg %p52
        %p268 = pneg %p49
        %s269 = sand.u32 %s67, 1
        %s270 = scalar_lea.sflag [#allocation4], %s269
        %s271 = sand.u32 %s67, 1
        %s272 = smul.addr %s271, 4096
        %s273 = scalar_lea.vmem [#allocation3], %s272
        %p274 = pneg %p80
        %p275 = pneg %p77
        %p276 = pneg %p106
        %p277 = pneg %p103
        %p278 = pneg %p132
        %p279 = pneg %p129
        %p280 = pneg %p158
        %p281 = pneg %p155
        %p282 = scmp.lt.s32.totalorder %s23, 0
        %s283 = scalar_select %p282, %s23, 0
        %s284 = smul.addr %s283, 2
        %s285 = scalar_lea.vmem %s4, %s284
        %s286 = smul.u32 32, %s24
        %p287 = scmp.lt.s32.totalorder %s286, 95
        %s288 = scalar_select %p287, %s286, 95
        %s289 = scalar_lea.vmem %s0, %s288
        %s290 = smul.u32 32, %s24
        %s291 = smul.u32 512, %s24
        %s292 = smul.u32 2, %s23
        %s293 = smul.u32 32, %s23
        %p294 = scmp.lt.s32.totalorder %s23, 0
        %s295 = scalar_select %p294, %s23, 0
        %s296 = smul.addr %s295, 2
        %s297 = scalar_lea.vmem %s4, %s296
        %p299 = scmp.eq.s32.totalorder %s24, 0
        // Predicated region
        $region49: #{_forward_impl.1} parent=35 // pred_check
          %p300 = pneg %p299
        $region50: #{_forward_impl.1} parent=35 // pred_check_branch
          %302 = sbr.rel (%p300) target = $region52
        $region51: #{_forward_impl.1} parent=35 // pred_region
          %303 = vst [vmem:[#allocation2] sm:$0xf] 0.0
        $region52: #{_forward_impl.1} parent=35 // pred_fallthru
          _
        %v304 = vld [vmem:[#allocation2] sm:$0xf]
        %v305 = vld [vmem:[%s289] sm:$0xff]
        %v306 = vld [vmem:[%s289 + $0x8] sm:$0xff]
        %v307 = vld [vmem:[%s289 + $0x10] sm:$0xff]
        %v308 = vld [vmem:[%s289 + $0x18] sm:$0xff]
        %v309 = vld [vmem:[%s250] sm:$0xff]
        %v310 = vld [vmem:[%s250 + $0x8] sm:$0xff]
        %v311 = vld [vmem:[%s250 + $0x10] sm:$0xff]
        %v312 = vld [vmem:[%s250 + $0x18] sm:$0xff]
        %v313 = vld [vmem:[%s250 + $0x20] sm:$0xff]
        %v314 = vld [vmem:[%s250 + $0x28] sm:$0xff]
        %v315 = vld [vmem:[%s250 + $0x30] sm:$0xff]
        %v316 = vld [vmem:[%s250 + $0x38] sm:$0xff]
        %v317 = vld [vmem:[%s250 + $0x40] sm:$0xff]
        %v318 = vld [vmem:[%s250 + $0x48] sm:$0xff]
        %v319 = vld [vmem:[%s250 + $0x50] sm:$0xff]
        %v320 = vld [vmem:[%s250 + $0x58] sm:$0xff]
        %v321 = vld [vmem:[%s250 + $0x60] sm:$0xff]
        %v322 = vld [vmem:[%s250 + $0x68] sm:$0xff]
        %v323 = vld [vmem:[%s250 + $0x70] sm:$0xff]
        %v324 = vld [vmem:[%s250 + $0x78] sm:$0xff]
        %v325 = vld [vmem:[%s250 + $0x80] sm:$0xff]
        %v326 = vld [vmem:[%s250 + $0x88] sm:$0xff]
        %v327 = vld [vmem:[%s250 + $0x90] sm:$0xff]
        %v328 = vld [vmem:[%s250 + $0x98] sm:$0xff]
        %v329 = vld [vmem:[%s250 + $0xa0] sm:$0xff]
        %v330 = vld [vmem:[%s250 + $0xa8] sm:$0xff]
        %v331 = vld [vmem:[%s250 + $0xb0] sm:$0xff]
        %v332 = vld [vmem:[%s250 + $0xb8] sm:$0xff]
        %v333 = vld [vmem:[%s250 + $0xc0] sm:$0xff]
        %v334 = vld [vmem:[%s250 + $0xc8] sm:$0xff]
        %v335 = vld [vmem:[%s250 + $0xd0] sm:$0xff]
        %v336 = vld [vmem:[%s250 + $0xd8] sm:$0xff]
        %v337 = vld [vmem:[%s250 + $0xe0] sm:$0xff]
        %v338 = vld [vmem:[%s250 + $0xe8] sm:$0xff]
        %v339 = vld [vmem:[%s250 + $0xf0] sm:$0xff]
        %v340 = vld [vmem:[%s250 + $0xf8] sm:$0xff]
        %v341 = vld [vmem:[%s250 + $0x100] sm:$0xff]
        %v342 = vld [vmem:[%s250 + $0x108] sm:$0xff]
        %v343 = vld [vmem:[%s250 + $0x110] sm:$0xff]
        %v344 = vld [vmem:[%s250 + $0x118] sm:$0xff]
        %v345 = vld [vmem:[%s250 + $0x120] sm:$0xff]
        %v346 = vld [vmem:[%s250 + $0x128] sm:$0xff]
        %v347 = vld [vmem:[%s250 + $0x130] sm:$0xff]
        %v348 = vld [vmem:[%s250 + $0x138] sm:$0xff]
        %v349 = vld [vmem:[%s250 + $0x140] sm:$0xff]
        %v350 = vld [vmem:[%s250 + $0x148] sm:$0xff]
        %v351 = vld [vmem:[%s250 + $0x150] sm:$0xff]
        %v352 = vld [vmem:[%s250 + $0x158] sm:$0xff]
        %v353 = vld [vmem:[%s250 + $0x160] sm:$0xff]
        %v354 = vld [vmem:[%s250 + $0x168] sm:$0xff]
        %v355 = vld [vmem:[%s250 + $0x170] sm:$0xff]
        %v356 = vld [vmem:[%s250 + $0x178] sm:$0xff]
        %v357 = vld [vmem:[%s250 + $0x180] sm:$0xff]
        %v358 = vld [vmem:[%s250 + $0x188] sm:$0xff]
        %v359 = vld [vmem:[%s250 + $0x190] sm:$0xff]
        %v360 = vld [vmem:[%s250 + $0x198] sm:$0xff]
        %v361 = vld [vmem:[%s250 + $0x1a0] sm:$0xff]
        %v362 = vld [vmem:[%s250 + $0x1a8] sm:$0xff]
        %v363 = vld [vmem:[%s250 + $0x1b0] sm:$0xff]
        %v364 = vld [vmem:[%s250 + $0x1b8] sm:$0xff]
        %v365 = vld [vmem:[%s250 + $0x1c0] sm:$0xff]
        %v366 = vld [vmem:[%s250 + $0x1c8] sm:$0xff]
        %v367 = vld [vmem:[%s250 + $0x1d0] sm:$0xff]
        %v368 = vld [vmem:[%s250 + $0x1d8] sm:$0xff]
        %v369 = vld [vmem:[%s250 + $0x1e0] sm:$0xff]
        %v370 = vld [vmem:[%s250 + $0x1e8] sm:$0xff]
        %v371 = vld [vmem:[%s250 + $0x1f0] sm:$0xff]
        %v372 = vld [vmem:[%s250 + $0x1f8] sm:$0xff]
        %v373 = vld [vmem:[%s250 + $0x200] sm:$0xff]
        %v374 = vld [vmem:[%s250 + $0x208] sm:$0xff]
        %v375 = vld [vmem:[%s250 + $0x210] sm:$0xff]
        %v376 = vld [vmem:[%s250 + $0x218] sm:$0xff]
        %v377 = vld [vmem:[%s250 + $0x220] sm:$0xff]
        %v378 = vld [vmem:[%s250 + $0x228] sm:$0xff]
        %v379 = vld [vmem:[%s250 + $0x230] sm:$0xff]
        %v380 = vld [vmem:[%s250 + $0x238] sm:$0xff]
        %v381 = vld [vmem:[%s250 + $0x240] sm:$0xff]
        %v382 = vld [vmem:[%s250 + $0x248] sm:$0xff]
        %v383 = vld [vmem:[%s250 + $0x250] sm:$0xff]
        %v384 = vld [vmem:[%s250 + $0x258] sm:$0xff]
        %v385 = vld [vmem:[%s250 + $0x260] sm:$0xff]
        %v386 = vld [vmem:[%s250 + $0x268] sm:$0xff]
        %v387 = vld [vmem:[%s250 + $0x270] sm:$0xff]
        %v388 = vld [vmem:[%s250 + $0x278] sm:$0xff]
        %v389 = vld [vmem:[%s250 + $0x280] sm:$0xff]
        %v390 = vld [vmem:[%s250 + $0x288] sm:$0xff]
        %v391 = vld [vmem:[%s250 + $0x290] sm:$0xff]
        %v392 = vld [vmem:[%s250 + $0x298] sm:$0xff]
        %v393 = vld [vmem:[%s250 + $0x2a0] sm:$0xff]
        %v394 = vld [vmem:[%s250 + $0x2a8] sm:$0xff]
        %v395 = vld [vmem:[%s250 + $0x2b0] sm:$0xff]
        %v396 = vld [vmem:[%s250 + $0x2b8] sm:$0xff]
        %v397 = vld [vmem:[%s250 + $0x2c0] sm:$0xff]
        %v398 = vld [vmem:[%s250 + $0x2c8] sm:$0xff]
        %v399 = vld [vmem:[%s250 + $0x2d0] sm:$0xff]
        %v400 = vld [vmem:[%s250 + $0x2d8] sm:$0xff]
        %v401 = vld [vmem:[%s250 + $0x2e0] sm:$0xff]
        %v402 = vld [vmem:[%s250 + $0x2e8] sm:$0xff]
        %v403 = vld [vmem:[%s250 + $0x2f0] sm:$0xff]
        %v404 = vld [vmem:[%s250 + $0x2f8] sm:$0xff]
        %v405 = vld [vmem:[%s250 + $0x300] sm:$0xff]
        %v406 = vld [vmem:[%s250 + $0x308] sm:$0xff]
        %v407 = vld [vmem:[%s250 + $0x310] sm:$0xff]
        %v408 = vld [vmem:[%s250 + $0x318] sm:$0xff]
        %v409 = vld [vmem:[%s250 + $0x320] sm:$0xff]
        %v410 = vld [vmem:[%s250 + $0x328] sm:$0xff]
        %v411 = vld [vmem:[%s250 + $0x330] sm:$0xff]
        %v412 = vld [vmem:[%s250 + $0x338] sm:$0xff]
        %v413 = vld [vmem:[%s250 + $0x340] sm:$0xff]
        %v414 = vld [vmem:[%s250 + $0x348] sm:$0xff]
        %v415 = vld [vmem:[%s250 + $0x350] sm:$0xff]
        %v416 = vld [vmem:[%s250 + $0x358] sm:$0xff]
        %v417 = vld [vmem:[%s250 + $0x360] sm:$0xff]
        %v418 = vld [vmem:[%s250 + $0x368] sm:$0xff]
        %v419 = vld [vmem:[%s250 + $0x370] sm:$0xff]
        %v420 = vld [vmem:[%s250 + $0x378] sm:$0xff]
        %v421 = vld [vmem:[%s250 + $0x380] sm:$0xff]
        %v422 = vld [vmem:[%s250 + $0x388] sm:$0xff]
        %v423 = vld [vmem:[%s250 + $0x390] sm:$0xff]
        %v424 = vld [vmem:[%s250 + $0x398] sm:$0xff]
        %v425 = vld [vmem:[%s250 + $0x3a0] sm:$0xff]
        %v426 = vld [vmem:[%s250 + $0x3a8] sm:$0xff]
        %v427 = vld [vmem:[%s250 + $0x3b0] sm:$0xff]
        %v428 = vld [vmem:[%s250 + $0x3b8] sm:$0xff]
        %v429 = vld [vmem:[%s250 + $0x3c0] sm:$0xff]
        %v430 = vld [vmem:[%s250 + $0x3c8] sm:$0xff]
        %v431 = vld [vmem:[%s250 + $0x3d0] sm:$0xff]
        %v432 = vld [vmem:[%s250 + $0x3d8] sm:$0xff]
        %v433 = vld [vmem:[%s250 + $0x3e0] sm:$0xff]
        %v434 = vld [vmem:[%s250 + $0x3e8] sm:$0xff]
        %v435 = vld [vmem:[%s250 + $0x3f0] sm:$0xff]
        %v436 = vld [vmem:[%s250 + $0x3f8] sm:$0xff]
        %v437 = vld [vmem:[%s250 + $0x400] sm:$0xff]
        %v438 = vld [vmem:[%s250 + $0x408] sm:$0xff]
        %v439 = vld [vmem:[%s250 + $0x410] sm:$0xff]
        %v440 = vld [vmem:[%s250 + $0x418] sm:$0xff]
        %v441 = vld [vmem:[%s250 + $0x420] sm:$0xff]
        %v442 = vld [vmem:[%s250 + $0x428] sm:$0xff]
        %v443 = vld [vmem:[%s250 + $0x430] sm:$0xff]
        %v444 = vld [vmem:[%s250 + $0x438] sm:$0xff]
        %v445 = vld [vmem:[%s250 + $0x440] sm:$0xff]
        %v446 = vld [vmem:[%s250 + $0x448] sm:$0xff]
        %v447 = vld [vmem:[%s250 + $0x450] sm:$0xff]
        %v448 = vld [vmem:[%s250 + $0x458] sm:$0xff]
        %v449 = vld [vmem:[%s250 + $0x460] sm:$0xff]
        %v450 = vld [vmem:[%s250 + $0x468] sm:$0xff]
        %v451 = vld [vmem:[%s250 + $0x470] sm:$0xff]
        %v452 = vld [vmem:[%s250 + $0x478] sm:$0xff]
        %v453 = vld [vmem:[%s250 + $0x480] sm:$0xff]
        %v454 = vld [vmem:[%s250 + $0x488] sm:$0xff]
        %v455 = vld [vmem:[%s250 + $0x490] sm:$0xff]
        %v456 = vld [vmem:[%s250 + $0x498] sm:$0xff]
        %v457 = vld [vmem:[%s250 + $0x4a0] sm:$0xff]
        %v458 = vld [vmem:[%s250 + $0x4a8] sm:$0xff]
        %v459 = vld [vmem:[%s250 + $0x4b0] sm:$0xff]
        %v460 = vld [vmem:[%s250 + $0x4b8] sm:$0xff]
        %v461 = vld [vmem:[%s250 + $0x4c0] sm:$0xff]
        %v462 = vld [vmem:[%s250 + $0x4c8] sm:$0xff]
        %v463 = vld [vmem:[%s250 + $0x4d0] sm:$0xff]
        %v464 = vld [vmem:[%s250 + $0x4d8] sm:$0xff]
        %v465 = vld [vmem:[%s250 + $0x4e0] sm:$0xff]
        %v466 = vld [vmem:[%s250 + $0x4e8] sm:$0xff]
        %v467 = vld [vmem:[%s250 + $0x4f0] sm:$0xff]
        %v468 = vld [vmem:[%s250 + $0x4f8] sm:$0xff]
        %v469 = vld [vmem:[%s250 + $0x500] sm:$0xff]
        %v470 = vld [vmem:[%s250 + $0x508] sm:$0xff]
        %v471 = vld [vmem:[%s250 + $0x510] sm:$0xff]
        %v472 = vld [vmem:[%s250 + $0x518] sm:$0xff]
        %v473 = vld [vmem:[%s250 + $0x520] sm:$0xff]
        %v474 = vld [vmem:[%s250 + $0x528] sm:$0xff]
        %v475 = vld [vmem:[%s250 + $0x530] sm:$0xff]
        %v476 = vld [vmem:[%s250 + $0x538] sm:$0xff]
        %v477 = vld [vmem:[%s250 + $0x540] sm:$0xff]
        %v478 = vld [vmem:[%s250 + $0x548] sm:$0xff]
        %v479 = vld [vmem:[%s250 + $0x550] sm:$0xff]
        %v480 = vld [vmem:[%s250 + $0x558] sm:$0xff]
        %v481 = vld [vmem:[%s250 + $0x560] sm:$0xff]
        %v482 = vld [vmem:[%s250 + $0x568] sm:$0xff]
        %v483 = vld [vmem:[%s250 + $0x570] sm:$0xff]
        %v484 = vld [vmem:[%s250 + $0x578] sm:$0xff]
        %v485 = vld [vmem:[%s250 + $0x580] sm:$0xff]
        %v486 = vld [vmem:[%s250 + $0x588] sm:$0xff]
        %v487 = vld [vmem:[%s250 + $0x590] sm:$0xff]
        %v488 = vld [vmem:[%s250 + $0x598] sm:$0xff]
        %v489 = vld [vmem:[%s250 + $0x5a0] sm:$0xff]
        %v490 = vld [vmem:[%s250 + $0x5a8] sm:$0xff]
        %v491 = vld [vmem:[%s250 + $0x5b0] sm:$0xff]
        %v492 = vld [vmem:[%s250 + $0x5b8] sm:$0xff]
        %v493 = vld [vmem:[%s250 + $0x5c0] sm:$0xff]
        %v494 = vld [vmem:[%s250 + $0x5c8] sm:$0xff]
        %v495 = vld [vmem:[%s250 + $0x5d0] sm:$0xff]
        %v496 = vld [vmem:[%s250 + $0x5d8] sm:$0xff]
        %v497 = vld [vmem:[%s250 + $0x5e0] sm:$0xff]
        %v498 = vld [vmem:[%s250 + $0x5e8] sm:$0xff]
        %v499 = vld [vmem:[%s250 + $0x5f0] sm:$0xff]
        %v500 = vld [vmem:[%s250 + $0x5f8] sm:$0xff]
        %v501 = vld [vmem:[%s250 + $0x600] sm:$0xff]
        %v502 = vld [vmem:[%s250 + $0x608] sm:$0xff]
        %v503 = vld [vmem:[%s250 + $0x610] sm:$0xff]
        %v504 = vld [vmem:[%s250 + $0x618] sm:$0xff]
        %v505 = vld [vmem:[%s250 + $0x620] sm:$0xff]
        %v506 = vld [vmem:[%s250 + $0x628] sm:$0xff]
        %v507 = vld [vmem:[%s250 + $0x630] sm:$0xff]
        %v508 = vld [vmem:[%s250 + $0x638] sm:$0xff]
        %v509 = vld [vmem:[%s250 + $0x640] sm:$0xff]
        %v510 = vld [vmem:[%s250 + $0x648] sm:$0xff]
        %v511 = vld [vmem:[%s250 + $0x650] sm:$0xff]
        %v512 = vld [vmem:[%s250 + $0x658] sm:$0xff]
        %v513 = vld [vmem:[%s250 + $0x660] sm:$0xff]
        %v514 = vld [vmem:[%s250 + $0x668] sm:$0xff]
        %v515 = vld [vmem:[%s250 + $0x670] sm:$0xff]
        %v516 = vld [vmem:[%s250 + $0x678] sm:$0xff]
        %v517 = vld [vmem:[%s250 + $0x680] sm:$0xff]
        %v518 = vld [vmem:[%s250 + $0x688] sm:$0xff]
        %v519 = vld [vmem:[%s250 + $0x690] sm:$0xff]
        %v520 = vld [vmem:[%s250 + $0x698] sm:$0xff]
        %v521 = vld [vmem:[%s250 + $0x6a0] sm:$0xff]
        %v522 = vld [vmem:[%s250 + $0x6a8] sm:$0xff]
        %v523 = vld [vmem:[%s250 + $0x6b0] sm:$0xff]
        %v524 = vld [vmem:[%s250 + $0x6b8] sm:$0xff]
        %v525 = vld [vmem:[%s250 + $0x6c0] sm:$0xff]
        %v526 = vld [vmem:[%s250 + $0x6c8] sm:$0xff]
        %v527 = vld [vmem:[%s250 + $0x6d0] sm:$0xff]
        %v528 = vld [vmem:[%s250 + $0x6d8] sm:$0xff]
        %v529 = vld [vmem:[%s250 + $0x6e0] sm:$0xff]
        %v530 = vld [vmem:[%s250 + $0x6e8] sm:$0xff]
        %v531 = vld [vmem:[%s250 + $0x6f0] sm:$0xff]
        %v532 = vld [vmem:[%s250 + $0x6f8] sm:$0xff]
        %v533 = vld [vmem:[%s250 + $0x700] sm:$0xff]
        %v534 = vld [vmem:[%s250 + $0x708] sm:$0xff]
        %v535 = vld [vmem:[%s250 + $0x710] sm:$0xff]
        %v536 = vld [vmem:[%s250 + $0x718] sm:$0xff]
        %v537 = vld [vmem:[%s250 + $0x720] sm:$0xff]
        %v538 = vld [vmem:[%s250 + $0x728] sm:$0xff]
        %v539 = vld [vmem:[%s250 + $0x730] sm:$0xff]
        %v540 = vld [vmem:[%s250 + $0x738] sm:$0xff]
        %v541 = vld [vmem:[%s250 + $0x740] sm:$0xff]
        %v542 = vld [vmem:[%s250 + $0x748] sm:$0xff]
        %v543 = vld [vmem:[%s250 + $0x750] sm:$0xff]
        %v544 = vld [vmem:[%s250 + $0x758] sm:$0xff]
        %v545 = vld [vmem:[%s250 + $0x760] sm:$0xff]
        %v546 = vld [vmem:[%s250 + $0x768] sm:$0xff]
        %v547 = vld [vmem:[%s250 + $0x770] sm:$0xff]
        %v548 = vld [vmem:[%s250 + $0x778] sm:$0xff]
        %v549 = vld [vmem:[%s250 + $0x780] sm:$0xff]
        %v550 = vld [vmem:[%s250 + $0x788] sm:$0xff]
        %v551 = vld [vmem:[%s250 + $0x790] sm:$0xff]
        %v552 = vld [vmem:[%s250 + $0x798] sm:$0xff]
        %v553 = vld [vmem:[%s250 + $0x7a0] sm:$0xff]
        %v554 = vld [vmem:[%s250 + $0x7a8] sm:$0xff]
        %v555 = vld [vmem:[%s250 + $0x7b0] sm:$0xff]
        %v556 = vld [vmem:[%s250 + $0x7b8] sm:$0xff]
        %v557 = vld [vmem:[%s250 + $0x7c0] sm:$0xff]
        %v558 = vld [vmem:[%s250 + $0x7c8] sm:$0xff]
        %v559 = vld [vmem:[%s250 + $0x7d0] sm:$0xff]
        %v560 = vld [vmem:[%s250 + $0x7d8] sm:$0xff]
        %v561 = vld [vmem:[%s250 + $0x7e0] sm:$0xff]
        %v562 = vld [vmem:[%s250 + $0x7e8] sm:$0xff]
        %v563 = vld [vmem:[%s250 + $0x7f0] sm:$0xff]
        %v564 = vld [vmem:[%s250 + $0x7f8] sm:$0xff]
        %v565 = vld [vmem:[%s250 + $0x800] sm:$0xff]
        %v566 = vld [vmem:[%s250 + $0x808] sm:$0xff]
        %v567 = vld [vmem:[%s250 + $0x810] sm:$0xff]
        %v568 = vld [vmem:[%s250 + $0x818] sm:$0xff]
        %v569 = vld [vmem:[%s250 + $0x820] sm:$0xff]
        %v570 = vld [vmem:[%s250 + $0x828] sm:$0xff]
        %v571 = vld [vmem:[%s250 + $0x830] sm:$0xff]
        %v572 = vld [vmem:[%s250 + $0x838] sm:$0xff]
        %v573 = vld [vmem:[%s250 + $0x840] sm:$0xff]
        %v574 = vld [vmem:[%s250 + $0x848] sm:$0xff]
        %v575 = vld [vmem:[%s250 + $0x850] sm:$0xff]
        %v576 = vld [vmem:[%s250 + $0x858] sm:$0xff]
        %v577 = vld [vmem:[%s250 + $0x860] sm:$0xff]
        %v578 = vld [vmem:[%s250 + $0x868] sm:$0xff]
        %v579 = vld [vmem:[%s250 + $0x870] sm:$0xff]
        %v580 = vld [vmem:[%s250 + $0x878] sm:$0xff]
        %v581 = vld [vmem:[%s250 + $0x880] sm:$0xff]
        %v582 = vld [vmem:[%s250 + $0x888] sm:$0xff]
        %v583 = vld [vmem:[%s250 + $0x890] sm:$0xff]
        %v584 = vld [vmem:[%s250 + $0x898] sm:$0xff]
        %v585 = vld [vmem:[%s250 + $0x8a0] sm:$0xff]
        %v586 = vld [vmem:[%s250 + $0x8a8] sm:$0xff]
        %v587 = vld [vmem:[%s250 + $0x8b0] sm:$0xff]
        %v588 = vld [vmem:[%s250 + $0x8b8] sm:$0xff]
        %v589 = vld [vmem:[%s250 + $0x8c0] sm:$0xff]
        %v590 = vld [vmem:[%s250 + $0x8c8] sm:$0xff]
        %v591 = vld [vmem:[%s250 + $0x8d0] sm:$0xff]
        %v592 = vld [vmem:[%s250 + $0x8d8] sm:$0xff]
        %v593 = vld [vmem:[%s250 + $0x8e0] sm:$0xff]
        %v594 = vld [vmem:[%s250 + $0x8e8] sm:$0xff]
        %v595 = vld [vmem:[%s250 + $0x8f0] sm:$0xff]
        %v596 = vld [vmem:[%s250 + $0x8f8] sm:$0xff]
        %v597 = vld [vmem:[%s250 + $0x900] sm:$0xff]
        %v598 = vld [vmem:[%s250 + $0x908] sm:$0xff]
        %v599 = vld [vmem:[%s250 + $0x910] sm:$0xff]
        %v600 = vld [vmem:[%s250 + $0x918] sm:$0xff]
        %v601 = vld [vmem:[%s250 + $0x920] sm:$0xff]
        %v602 = vld [vmem:[%s250 + $0x928] sm:$0xff]
        %v603 = vld [vmem:[%s250 + $0x930] sm:$0xff]
        %v604 = vld [vmem:[%s250 + $0x938] sm:$0xff]
        %v605 = vld [vmem:[%s250 + $0x940] sm:$0xff]
        %v606 = vld [vmem:[%s250 + $0x948] sm:$0xff]
        %v607 = vld [vmem:[%s250 + $0x950] sm:$0xff]
        %v608 = vld [vmem:[%s250 + $0x958] sm:$0xff]
        %v609 = vld [vmem:[%s250 + $0x960] sm:$0xff]
        %v610 = vld [vmem:[%s250 + $0x968] sm:$0xff]
        %v611 = vld [vmem:[%s250 + $0x970] sm:$0xff]
        %v612 = vld [vmem:[%s250 + $0x978] sm:$0xff]
        %v613 = vld [vmem:[%s250 + $0x980] sm:$0xff]
        %v614 = vld [vmem:[%s250 + $0x988] sm:$0xff]
        %v615 = vld [vmem:[%s250 + $0x990] sm:$0xff]
        %v616 = vld [vmem:[%s250 + $0x998] sm:$0xff]
        %v617 = vld [vmem:[%s250 + $0x9a0] sm:$0xff]
        %v618 = vld [vmem:[%s250 + $0x9a8] sm:$0xff]
        %v619 = vld [vmem:[%s250 + $0x9b0] sm:$0xff]
        %v620 = vld [vmem:[%s250 + $0x9b8] sm:$0xff]
        %v621 = vld [vmem:[%s250 + $0x9c0] sm:$0xff]
        %v622 = vld [vmem:[%s250 + $0x9c8] sm:$0xff]
        %v623 = vld [vmem:[%s250 + $0x9d0] sm:$0xff]
        %v624 = vld [vmem:[%s250 + $0x9d8] sm:$0xff]
        %v625 = vld [vmem:[%s250 + $0x9e0] sm:$0xff]
        %v626 = vld [vmem:[%s250 + $0x9e8] sm:$0xff]
        %v627 = vld [vmem:[%s250 + $0x9f0] sm:$0xff]
        %v628 = vld [vmem:[%s250 + $0x9f8] sm:$0xff]
        %v629 = vld [vmem:[%s250 + $0xa00] sm:$0xff]
        %v630 = vld [vmem:[%s250 + $0xa08] sm:$0xff]
        %v631 = vld [vmem:[%s250 + $0xa10] sm:$0xff]
        %v632 = vld [vmem:[%s250 + $0xa18] sm:$0xff]
        %v633 = vld [vmem:[%s250 + $0xa20] sm:$0xff]
        %v634 = vld [vmem:[%s250 + $0xa28] sm:$0xff]
        %v635 = vld [vmem:[%s250 + $0xa30] sm:$0xff]
        %v636 = vld [vmem:[%s250 + $0xa38] sm:$0xff]
        %v637 = vld [vmem:[%s250 + $0xa40] sm:$0xff]
        %v638 = vld [vmem:[%s250 + $0xa48] sm:$0xff]
        %v639 = vld [vmem:[%s250 + $0xa50] sm:$0xff]
        %v640 = vld [vmem:[%s250 + $0xa58] sm:$0xff]
        %v641 = vld [vmem:[%s250 + $0xa60] sm:$0xff]
        %v642 = vld [vmem:[%s250 + $0xa68] sm:$0xff]
        %v643 = vld [vmem:[%s250 + $0xa70] sm:$0xff]
        %v644 = vld [vmem:[%s250 + $0xa78] sm:$0xff]
        %v645 = vld [vmem:[%s250 + $0xa80] sm:$0xff]
        %v646 = vld [vmem:[%s250 + $0xa88] sm:$0xff]
        %v647 = vld [vmem:[%s250 + $0xa90] sm:$0xff]
        %v648 = vld [vmem:[%s250 + $0xa98] sm:$0xff]
        %v649 = vld [vmem:[%s250 + $0xaa0] sm:$0xff]
        %v650 = vld [vmem:[%s250 + $0xaa8] sm:$0xff]
        %v651 = vld [vmem:[%s250 + $0xab0] sm:$0xff]
        %v652 = vld [vmem:[%s250 + $0xab8] sm:$0xff]
        %v653 = vld [vmem:[%s250 + $0xac0] sm:$0xff]
        %v654 = vld [vmem:[%s250 + $0xac8] sm:$0xff]
        %v655 = vld [vmem:[%s250 + $0xad0] sm:$0xff]
        %v656 = vld [vmem:[%s250 + $0xad8] sm:$0xff]
        %v657 = vld [vmem:[%s250 + $0xae0] sm:$0xff]
        %v658 = vld [vmem:[%s250 + $0xae8] sm:$0xff]
        %v659 = vld [vmem:[%s250 + $0xaf0] sm:$0xff]
        %v660 = vld [vmem:[%s250 + $0xaf8] sm:$0xff]
        %v661 = vld [vmem:[%s250 + $0xb00] sm:$0xff]
        %v662 = vld [vmem:[%s250 + $0xb08] sm:$0xff]
        %v663 = vld [vmem:[%s250 + $0xb10] sm:$0xff]
        %v664 = vld [vmem:[%s250 + $0xb18] sm:$0xff]
        %v665 = vld [vmem:[%s250 + $0xb20] sm:$0xff]
        %v666 = vld [vmem:[%s250 + $0xb28] sm:$0xff]
        %v667 = vld [vmem:[%s250 + $0xb30] sm:$0xff]
        %v668 = vld [vmem:[%s250 + $0xb38] sm:$0xff]
        %v669 = vld [vmem:[%s250 + $0xb40] sm:$0xff]
        %v670 = vld [vmem:[%s250 + $0xb48] sm:$0xff]
        %v671 = vld [vmem:[%s250 + $0xb50] sm:$0xff]
        %v672 = vld [vmem:[%s250 + $0xb58] sm:$0xff]
        %v673 = vld [vmem:[%s250 + $0xb60] sm:$0xff]
        %v674 = vld [vmem:[%s250 + $0xb68] sm:$0xff]
        %v675 = vld [vmem:[%s250 + $0xb70] sm:$0xff]
        %v676 = vld [vmem:[%s250 + $0xb78] sm:$0xff]
        %v677 = vld [vmem:[%s250 + $0xb80] sm:$0xff]
        %v678 = vld [vmem:[%s250 + $0xb88] sm:$0xff]
        %v679 = vld [vmem:[%s250 + $0xb90] sm:$0xff]
        %v680 = vld [vmem:[%s250 + $0xb98] sm:$0xff]
        %v681 = vld [vmem:[%s250 + $0xba0] sm:$0xff]
        %v682 = vld [vmem:[%s250 + $0xba8] sm:$0xff]
        %v683 = vld [vmem:[%s250 + $0xbb0] sm:$0xff]
        %v684 = vld [vmem:[%s250 + $0xbb8] sm:$0xff]
        %v685 = vld [vmem:[%s250 + $0xbc0] sm:$0xff]
        %v686 = vld [vmem:[%s250 + $0xbc8] sm:$0xff]
        %v687 = vld [vmem:[%s250 + $0xbd0] sm:$0xff]
        %v688 = vld [vmem:[%s250 + $0xbd8] sm:$0xff]
        %v689 = vld [vmem:[%s250 + $0xbe0] sm:$0xff]
        %v690 = vld [vmem:[%s250 + $0xbe8] sm:$0xff]
        %v691 = vld [vmem:[%s250 + $0xbf0] sm:$0xff]
        %v692 = vld [vmem:[%s250 + $0xbf8] sm:$0xff]
        %v693 = vld [vmem:[%s250 + $0xc00] sm:$0xff]
        %v694 = vld [vmem:[%s250 + $0xc08] sm:$0xff]
        %v695 = vld [vmem:[%s250 + $0xc10] sm:$0xff]
        %v696 = vld [vmem:[%s250 + $0xc18] sm:$0xff]
        %v697 = vld [vmem:[%s250 + $0xc20] sm:$0xff]
        %v698 = vld [vmem:[%s250 + $0xc28] sm:$0xff]
        %v699 = vld [vmem:[%s250 + $0xc30] sm:$0xff]
        %v700 = vld [vmem:[%s250 + $0xc38] sm:$0xff]
        %v701 = vld [vmem:[%s250 + $0xc40] sm:$0xff]
        %v702 = vld [vmem:[%s250 + $0xc48] sm:$0xff]
        %v703 = vld [vmem:[%s250 + $0xc50] sm:$0xff]
        %v704 = vld [vmem:[%s250 + $0xc58] sm:$0xff]
        %v705 = vld [vmem:[%s250 + $0xc60] sm:$0xff]
        %v706 = vld [vmem:[%s250 + $0xc68] sm:$0xff]
        %v707 = vld [vmem:[%s250 + $0xc70] sm:$0xff]
        %v708 = vld [vmem:[%s250 + $0xc78] sm:$0xff]
        %v709 = vld [vmem:[%s250 + $0xc80] sm:$0xff]
        %v710 = vld [vmem:[%s250 + $0xc88] sm:$0xff]
        %v711 = vld [vmem:[%s250 + $0xc90] sm:$0xff]
        %v712 = vld [vmem:[%s250 + $0xc98] sm:$0xff]
        %v713 = vld [vmem:[%s250 + $0xca0] sm:$0xff]
        %v714 = vld [vmem:[%s250 + $0xca8] sm:$0xff]
        %v715 = vld [vmem:[%s250 + $0xcb0] sm:$0xff]
        %v716 = vld [vmem:[%s250 + $0xcb8] sm:$0xff]
        %v717 = vld [vmem:[%s250 + $0xcc0] sm:$0xff]
        %v718 = vld [vmem:[%s250 + $0xcc8] sm:$0xff]
        %v719 = vld [vmem:[%s250 + $0xcd0] sm:$0xff]
        %v720 = vld [vmem:[%s250 + $0xcd8] sm:$0xff]
        %v721 = vld [vmem:[%s250 + $0xce0] sm:$0xff]
        %v722 = vld [vmem:[%s250 + $0xce8] sm:$0xff]
        %v723 = vld [vmem:[%s250 + $0xcf0] sm:$0xff]
        %v724 = vld [vmem:[%s250 + $0xcf8] sm:$0xff]
        %v725 = vld [vmem:[%s250 + $0xd00] sm:$0xff]
        %v726 = vld [vmem:[%s250 + $0xd08] sm:$0xff]
        %v727 = vld [vmem:[%s250 + $0xd10] sm:$0xff]
        %v728 = vld [vmem:[%s250 + $0xd18] sm:$0xff]
        %v729 = vld [vmem:[%s250 + $0xd20] sm:$0xff]
        %v730 = vld [vmem:[%s250 + $0xd28] sm:$0xff]
        %v731 = vld [vmem:[%s250 + $0xd30] sm:$0xff]
        %v732 = vld [vmem:[%s250 + $0xd38] sm:$0xff]
        %v733 = vld [vmem:[%s250 + $0xd40] sm:$0xff]
        %v734 = vld [vmem:[%s250 + $0xd48] sm:$0xff]
        %v735 = vld [vmem:[%s250 + $0xd50] sm:$0xff]
        %v736 = vld [vmem:[%s250 + $0xd58] sm:$0xff]
        %v737 = vld [vmem:[%s250 + $0xd60] sm:$0xff]
        %v738 = vld [vmem:[%s250 + $0xd68] sm:$0xff]
        %v739 = vld [vmem:[%s250 + $0xd70] sm:$0xff]
        %v740 = vld [vmem:[%s250 + $0xd78] sm:$0xff]
        %v741 = vld [vmem:[%s250 + $0xd80] sm:$0xff]
        %v742 = vld [vmem:[%s250 + $0xd88] sm:$0xff]
        %v743 = vld [vmem:[%s250 + $0xd90] sm:$0xff]
        %v744 = vld [vmem:[%s250 + $0xd98] sm:$0xff]
        %v745 = vld [vmem:[%s250 + $0xda0] sm:$0xff]
        %v746 = vld [vmem:[%s250 + $0xda8] sm:$0xff]
        %v747 = vld [vmem:[%s250 + $0xdb0] sm:$0xff]
        %v748 = vld [vmem:[%s250 + $0xdb8] sm:$0xff]
        %v749 = vld [vmem:[%s250 + $0xdc0] sm:$0xff]
        %v750 = vld [vmem:[%s250 + $0xdc8] sm:$0xff]
        %v751 = vld [vmem:[%s250 + $0xdd0] sm:$0xff]
        %v752 = vld [vmem:[%s250 + $0xdd8] sm:$0xff]
        %v753 = vld [vmem:[%s250 + $0xde0] sm:$0xff]
        %v754 = vld [vmem:[%s250 + $0xde8] sm:$0xff]
        %v755 = vld [vmem:[%s250 + $0xdf0] sm:$0xff]
        %v756 = vld [vmem:[%s250 + $0xdf8] sm:$0xff]
        %v757 = vld [vmem:[%s250 + $0xe00] sm:$0xff]
        %v758 = vld [vmem:[%s250 + $0xe08] sm:$0xff]
        %v759 = vld [vmem:[%s250 + $0xe10] sm:$0xff]
        %v760 = vld [vmem:[%s250 + $0xe18] sm:$0xff]
        %v761 = vld [vmem:[%s250 + $0xe20] sm:$0xff]
        %v762 = vld [vmem:[%s250 + $0xe28] sm:$0xff]
        %v763 = vld [vmem:[%s250 + $0xe30] sm:$0xff]
        %v764 = vld [vmem:[%s250 + $0xe38] sm:$0xff]
        %v765 = vld [vmem:[%s250 + $0xe40] sm:$0xff]
        %v766 = vld [vmem:[%s250 + $0xe48] sm:$0xff]
        %v767 = vld [vmem:[%s250 + $0xe50] sm:$0xff]
        %v768 = vld [vmem:[%s250 + $0xe58] sm:$0xff]
        %v769 = vld [vmem:[%s250 + $0xe60] sm:$0xff]
        %v770 = vld [vmem:[%s250 + $0xe68] sm:$0xff]
        %v771 = vld [vmem:[%s250 + $0xe70] sm:$0xff]
        %v772 = vld [vmem:[%s250 + $0xe78] sm:$0xff]
        %v773 = vld [vmem:[%s250 + $0xe80] sm:$0xff]
        %v774 = vld [vmem:[%s250 + $0xe88] sm:$0xff]
        %v775 = vld [vmem:[%s250 + $0xe90] sm:$0xff]
        %v776 = vld [vmem:[%s250 + $0xe98] sm:$0xff]
        %v777 = vld [vmem:[%s250 + $0xea0] sm:$0xff]
        %v778 = vld [vmem:[%s250 + $0xea8] sm:$0xff]
        %v779 = vld [vmem:[%s250 + $0xeb0] sm:$0xff]
        %v780 = vld [vmem:[%s250 + $0xeb8] sm:$0xff]
        %v781 = vld [vmem:[%s250 + $0xec0] sm:$0xff]
        %v782 = vld [vmem:[%s250 + $0xec8] sm:$0xff]
        %v783 = vld [vmem:[%s250 + $0xed0] sm:$0xff]
        %v784 = vld [vmem:[%s250 + $0xed8] sm:$0xff]
        %v785 = vld [vmem:[%s250 + $0xee0] sm:$0xff]
        %v786 = vld [vmem:[%s250 + $0xee8] sm:$0xff]
        %v787 = vld [vmem:[%s250 + $0xef0] sm:$0xff]
        %v788 = vld [vmem:[%s250 + $0xef8] sm:$0xff]
        %v789 = vld [vmem:[%s250 + $0xf00] sm:$0xff]
        %v790 = vld [vmem:[%s250 + $0xf08] sm:$0xff]
        %v791 = vld [vmem:[%s250 + $0xf10] sm:$0xff]
        %v792 = vld [vmem:[%s250 + $0xf18] sm:$0xff]
        %v793 = vld [vmem:[%s250 + $0xf20] sm:$0xff]
        %v794 = vld [vmem:[%s250 + $0xf28] sm:$0xff]
        %v795 = vld [vmem:[%s250 + $0xf30] sm:$0xff]
        %v796 = vld [vmem:[%s250 + $0xf38] sm:$0xff]
        %v797 = vld [vmem:[%s250 + $0xf40] sm:$0xff]
        %v798 = vld [vmem:[%s250 + $0xf48] sm:$0xff]
        %v799 = vld [vmem:[%s250 + $0xf50] sm:$0xff]
        %v800 = vld [vmem:[%s250 + $0xf58] sm:$0xff]
        %v801 = vld [vmem:[%s250 + $0xf60] sm:$0xff]
        %v802 = vld [vmem:[%s250 + $0xf68] sm:$0xff]
        %v803 = vld [vmem:[%s250 + $0xf70] sm:$0xff]
        %v804 = vld [vmem:[%s250 + $0xf78] sm:$0xff]
        %v805 = vld [vmem:[%s250 + $0xf80] sm:$0xff]
        %v806 = vld [vmem:[%s250 + $0xf88] sm:$0xff]
        %v807 = vld [vmem:[%s250 + $0xf90] sm:$0xff]
        %v808 = vld [vmem:[%s250 + $0xf98] sm:$0xff]
        %v809 = vld [vmem:[%s250 + $0xfa0] sm:$0xff]
        %v810 = vld [vmem:[%s250 + $0xfa8] sm:$0xff]
        %v811 = vld [vmem:[%s250 + $0xfb0] sm:$0xff]
        %v812 = vld [vmem:[%s250 + $0xfb8] sm:$0xff]
        %v813 = vld [vmem:[%s250 + $0xfc0] sm:$0xff]
        %v814 = vld [vmem:[%s250 + $0xfc8] sm:$0xff]
        %v815 = vld [vmem:[%s250 + $0xfd0] sm:$0xff]
        %v816 = vld [vmem:[%s250 + $0xfd8] sm:$0xff]
        %v817 = vld [vmem:[%s250 + $0xfe0] sm:$0xff]
        %v818 = vld [vmem:[%s250 + $0xfe8] sm:$0xff]
        %v819 = vld [vmem:[%s250 + $0xff0] sm:$0xff]
        %v820 = vld [vmem:[%s250 + $0xff8] sm:$0xff]
        %v825 = vcombine.high %v305, %v305
        %v827 = vunpack.c.l.s4 1966171168
        %v828 = vunpack.c.0.s8 %v827
        %v829 = vlaneseq
        %v830 = vshrl.u32 %v829, 7
        %v831 = vsub.s32 %v828, %v830
        %v832 = vrot.slane %v305, %v831
        %v834 = vunpack.c.l.s4 1966171168
        %v835 = vunpack.c.0.s8 %v834
        %v836 = vlaneseq
        %v837 = vshrl.u32 %v836, 7
        %v838 = vsub.s32 %v835, %v837
        %v839 = vrot.slane %v825, %v838
        %v840 = vcombine.high %v832, %v832
        %v841 = vcombine.high %v839, %v839
        %v843 = vunpack.c.l.s4 1966171168
        %v844 = vunpack.c.0.s8 %v843
        %v845 = vlaneseq
        %v846 = vshrl.u32 %v845, 7
        %v847 = vsub.s32 %v844, %v846
        %v848 = vrot.slane %v832, %v847
        %v850 = vunpack.c.l.s4 1966171168
        %v851 = vunpack.c.0.s8 %v850
        %v852 = vlaneseq
        %v853 = vshrl.u32 %v852, 7
        %v854 = vsub.s32 %v851, %v853
        %v855 = vrot.slane %v839, %v854
        %v857 = vunpack.c.l.s4 1966171168
        %v858 = vunpack.c.0.s8 %v857
        %v859 = vlaneseq
        %v860 = vshrl.u32 %v859, 7
        %v861 = vsub.s32 %v858, %v860
        %v862 = vrot.slane %v840, %v861
        %v864 = vunpack.c.l.s4 1966171168
        %v865 = vunpack.c.0.s8 %v864
        %v866 = vlaneseq
        %v867 = vshrl.u32 %v866, 7
        %v868 = vsub.s32 %v865, %v867
        %v869 = vrot.slane %v841, %v868
        %v870 = vcombine.high %v848, %v848
        %v871 = vcombine.high %v855, %v855
        %v872 = vcombine.high %v862, %v862
        %v873 = vcombine.high %v869, %v869
        %v874 = vcombine.high %v306, %v306
        %v876 = vunpack.c.l.s4 1966171168
        %v877 = vunpack.c.0.s8 %v876
        %v878 = vlaneseq
        %v879 = vshrl.u32 %v878, 7
        %v880 = vsub.s32 %v877, %v879
        %v881 = vrot.slane %v306, %v880
        %v883 = vunpack.c.l.s4 1966171168
        %v884 = vunpack.c.0.s8 %v883
        %v885 = vlaneseq
        %v886 = vshrl.u32 %v885, 7
        %v887 = vsub.s32 %v884, %v886
        %v888 = vrot.slane %v874, %v887
        %v889 = vcombine.high %v881, %v881
        %v890 = vcombine.high %v888, %v888
        %v892 = vunpack.c.l.s4 1966171168
        %v893 = vunpack.c.0.s8 %v892
        %v894 = vlaneseq
        %v895 = vshrl.u32 %v894, 7
        %v896 = vsub.s32 %v893, %v895
        %v897 = vrot.slane %v881, %v896
        %v899 = vunpack.c.l.s4 1966171168
        %v900 = vunpack.c.0.s8 %v899
        %v901 = vlaneseq
        %v902 = vshrl.u32 %v901, 7
        %v903 = vsub.s32 %v900, %v902
        %v904 = vrot.slane %v888, %v903
        %v906 = vunpack.c.l.s4 1966171168
        %v907 = vunpack.c.0.s8 %v906
        %v908 = vlaneseq
        %v909 = vshrl.u32 %v908, 7
        %v910 = vsub.s32 %v907, %v909
        %v911 = vrot.slane %v889, %v910
        %v913 = vunpack.c.l.s4 1966171168
        %v914 = vunpack.c.0.s8 %v913
        %v915 = vlaneseq
        %v916 = vshrl.u32 %v915, 7
        %v917 = vsub.s32 %v914, %v916
        %v918 = vrot.slane %v890, %v917
        %v919 = vcombine.high %v897, %v897
        %v920 = vcombine.high %v904, %v904
        %v921 = vcombine.high %v911, %v911
        %v922 = vcombine.high %v918, %v918
        %v923 = vcombine.high %v307, %v307
        %v925 = vunpack.c.l.s4 1966171168
        %v926 = vunpack.c.0.s8 %v925
        %v927 = vlaneseq
        %v928 = vshrl.u32 %v927, 7
        %v929 = vsub.s32 %v926, %v928
        %v930 = vrot.slane %v307, %v929
        %v932 = vunpack.c.l.s4 1966171168
        %v933 = vunpack.c.0.s8 %v932
        %v934 = vlaneseq
        %v935 = vshrl.u32 %v934, 7
        %v936 = vsub.s32 %v933, %v935
        %v937 = vrot.slane %v923, %v936
        %v938 = vcombine.high %v930, %v930
        %v939 = vcombine.high %v937, %v937
        %v941 = vunpack.c.l.s4 1966171168
        %v942 = vunpack.c.0.s8 %v941
        %v943 = vlaneseq
        %v944 = vshrl.u32 %v943, 7
        %v945 = vsub.s32 %v942, %v944
        %v946 = vrot.slane %v930, %v945
        %v948 = vunpack.c.l.s4 1966171168
        %v949 = vunpack.c.0.s8 %v948
        %v950 = vlaneseq
        %v951 = vshrl.u32 %v950, 7
        %v952 = vsub.s32 %v949, %v951
        %v953 = vrot.slane %v937, %v952
        %v955 = vunpack.c.l.s4 1966171168
        %v956 = vunpack.c.0.s8 %v955
        %v957 = vlaneseq
        %v958 = vshrl.u32 %v957, 7
        %v959 = vsub.s32 %v956, %v958
        %v960 = vrot.slane %v938, %v959
        %v962 = vunpack.c.l.s4 1966171168
        %v963 = vunpack.c.0.s8 %v962
        %v964 = vlaneseq
        %v965 = vshrl.u32 %v964, 7
        %v966 = vsub.s32 %v963, %v965
        %v967 = vrot.slane %v939, %v966
        %v968 = vcombine.high %v946, %v946
        %v969 = vcombine.high %v953, %v953
        %v970 = vcombine.high %v960, %v960
        %v971 = vcombine.high %v967, %v967
        %v972 = vcombine.high %v308, %v308
        %v974 = vunpack.c.l.s4 1966171168
        %v975 = vunpack.c.0.s8 %v974
        %v976 = vlaneseq
        %v977 = vshrl.u32 %v976, 7
        %v978 = vsub.s32 %v975, %v977
        %v979 = vrot.slane %v308, %v978
        %v981 = vunpack.c.l.s4 1966171168
        %v982 = vunpack.c.0.s8 %v981
        %v983 = vlaneseq
        %v984 = vshrl.u32 %v983, 7
        %v985 = vsub.s32 %v982, %v984
        %v986 = vrot.slane %v972, %v985
        %v987 = vcombine.high %v979, %v979
        %v988 = vcombine.high %v986, %v986
        %v990 = vunpack.c.l.s4 1966171168
        %v991 = vunpack.c.0.s8 %v990
        %v992 = vlaneseq
        %v993 = vshrl.u32 %v992, 7
        %v994 = vsub.s32 %v991, %v993
        %v995 = vrot.slane %v979, %v994
        %v997 = vunpack.c.l.s4 1966171168
        %v998 = vunpack.c.0.s8 %v997
        %v999 = vlaneseq
        %v1000 = vshrl.u32 %v999, 7
        %v1001 = vsub.s32 %v998, %v1000
        %v1002 = vrot.slane %v986, %v1001
        %v1004 = vunpack.c.l.s4 1966171168
        %v1005 = vunpack.c.0.s8 %v1004
        %v1006 = vlaneseq
        %v1007 = vshrl.u32 %v1006, 7
        %v1008 = vsub.s32 %v1005, %v1007
        %v1009 = vrot.slane %v987, %v1008
        %v1011 = vunpack.c.l.s4 1966171168
        %v1012 = vunpack.c.0.s8 %v1011
        %v1013 = vlaneseq
        %v1014 = vshrl.u32 %v1013, 7
        %v1015 = vsub.s32 %v1012, %v1014
        %v1016 = vrot.slane %v988, %v1015
        %v1017 = vcombine.high %v995, %v995
        %v1018 = vcombine.high %v1002, %v1002
        %v1019 = vcombine.high %v1009, %v1009
        %v1020 = vcombine.high %v1016, %v1016
        %v1565 = vunpack.c.l.b16 %v309
        %v1566 = vunpack.c.h.b16 %v309
        %v1567 = vunpack.c.l.b16 %v310
        %v1568 = vunpack.c.h.b16 %v310
        %v1569 = vunpack.c.l.b16 %v311
        %v1570 = vunpack.c.h.b16 %v311
        %v1571 = vunpack.c.l.b16 %v312
        %v1572 = vunpack.c.h.b16 %v312
        %v1573 = vunpack.c.l.b16 %v313
        %v1574 = vunpack.c.h.b16 %v313
        %v1575 = vunpack.c.l.b16 %v314
        %v1576 = vunpack.c.h.b16 %v314
        %v1577 = vunpack.c.l.b16 %v315
        %v1578 = vunpack.c.h.b16 %v315
        %v1579 = vunpack.c.l.b16 %v316
        %v1580 = vunpack.c.h.b16 %v316
        %v1581 = vunpack.c.l.b16 %v317
        %v1582 = vunpack.c.h.b16 %v317
        %v1583 = vunpack.c.l.b16 %v318
        %v1584 = vunpack.c.h.b16 %v318
        %v1585 = vunpack.c.l.b16 %v319
        %v1586 = vunpack.c.h.b16 %v319
        %v1587 = vunpack.c.l.b16 %v320
        %v1588 = vunpack.c.h.b16 %v320
        %v1589 = vunpack.c.l.b16 %v321
        %v1590 = vunpack.c.h.b16 %v321
        %v1591 = vunpack.c.l.b16 %v322
        %v1592 = vunpack.c.h.b16 %v322
        %v1593 = vunpack.c.l.b16 %v323
        %v1594 = vunpack.c.h.b16 %v323
        %v1595 = vunpack.c.l.b16 %v324
        %v1596 = vunpack.c.h.b16 %v324
        %v1597 = vunpack.c.l.b16 %v325
        %v1598 = vunpack.c.h.b16 %v325
        %v1599 = vunpack.c.l.b16 %v326
        %v1600 = vunpack.c.h.b16 %v326
        %v1601 = vunpack.c.l.b16 %v327
        %v1602 = vunpack.c.h.b16 %v327
        %v1603 = vunpack.c.l.b16 %v328
        %v1604 = vunpack.c.h.b16 %v328
        %v1605 = vunpack.c.l.b16 %v329
        %v1606 = vunpack.c.h.b16 %v329
        %v1607 = vunpack.c.l.b16 %v330
        %v1608 = vunpack.c.h.b16 %v330
        %v1609 = vunpack.c.l.b16 %v331
        %v1610 = vunpack.c.h.b16 %v331
        %v1611 = vunpack.c.l.b16 %v332
        %v1612 = vunpack.c.h.b16 %v332
        %v1613 = vunpack.c.l.b16 %v333
        %v1614 = vunpack.c.h.b16 %v333
        %v1615 = vunpack.c.l.b16 %v334
        %v1616 = vunpack.c.h.b16 %v334
        %v1617 = vunpack.c.l.b16 %v335
        %v1618 = vunpack.c.h.b16 %v335
        %v1619 = vunpack.c.l.b16 %v336
        %v1620 = vunpack.c.h.b16 %v336
        %v1621 = vunpack.c.l.b16 %v337
        %v1622 = vunpack.c.h.b16 %v337
        %v1623 = vunpack.c.l.b16 %v338
        %v1624 = vunpack.c.h.b16 %v338
        %v1625 = vunpack.c.l.b16 %v339
        %v1626 = vunpack.c.h.b16 %v339
        %v1627 = vunpack.c.l.b16 %v340
        %v1628 = vunpack.c.h.b16 %v340
        %v1629 = vunpack.c.l.b16 %v341
        %v1630 = vunpack.c.h.b16 %v341
        %v1631 = vunpack.c.l.b16 %v342
        %v1632 = vunpack.c.h.b16 %v342
        %v1633 = vunpack.c.l.b16 %v343
        %v1634 = vunpack.c.h.b16 %v343
        %v1635 = vunpack.c.l.b16 %v344
        %v1636 = vunpack.c.h.b16 %v344
        %v1637 = vunpack.c.l.b16 %v345
        %v1638 = vunpack.c.h.b16 %v345
        %v1639 = vunpack.c.l.b16 %v346
        %v1640 = vunpack.c.h.b16 %v346
        %v1641 = vunpack.c.l.b16 %v347
        %v1642 = vunpack.c.h.b16 %v347
        %v1643 = vunpack.c.l.b16 %v348
        %v1644 = vunpack.c.h.b16 %v348
        %v1645 = vunpack.c.l.b16 %v349
        %v1646 = vunpack.c.h.b16 %v349
        %v1647 = vunpack.c.l.b16 %v350
        %v1648 = vunpack.c.h.b16 %v350
        %v1649 = vunpack.c.l.b16 %v351
        %v1650 = vunpack.c.h.b16 %v351
        %v1651 = vunpack.c.l.b16 %v352
        %v1652 = vunpack.c.h.b16 %v352
        %v1653 = vunpack.c.l.b16 %v353
        %v1654 = vunpack.c.h.b16 %v353
        %v1655 = vunpack.c.l.b16 %v354
        %v1656 = vunpack.c.h.b16 %v354
        %v1657 = vunpack.c.l.b16 %v355
        %v1658 = vunpack.c.h.b16 %v355
        %v1659 = vunpack.c.l.b16 %v356
        %v1660 = vunpack.c.h.b16 %v356
        %v1661 = vunpack.c.l.b16 %v357
        %v1662 = vunpack.c.h.b16 %v357
        %v1663 = vunpack.c.l.b16 %v358
        %v1664 = vunpack.c.h.b16 %v358
        %v1665 = vunpack.c.l.b16 %v359
        %v1666 = vunpack.c.h.b16 %v359
        %v1667 = vunpack.c.l.b16 %v360
        %v1668 = vunpack.c.h.b16 %v360
        %v1669 = vunpack.c.l.b16 %v361
        %v1670 = vunpack.c.h.b16 %v361
        %v1671 = vunpack.c.l.b16 %v362
        %v1672 = vunpack.c.h.b16 %v362
        %v1673 = vunpack.c.l.b16 %v363
        %v1674 = vunpack.c.h.b16 %v363
        %v1675 = vunpack.c.l.b16 %v364
        %v1676 = vunpack.c.h.b16 %v364
        %v1677 = vunpack.c.l.b16 %v365
        %v1678 = vunpack.c.h.b16 %v365
        %v1679 = vunpack.c.l.b16 %v366
        %v1680 = vunpack.c.h.b16 %v366
        %v1681 = vunpack.c.l.b16 %v367
        %v1682 = vunpack.c.h.b16 %v367
        %v1683 = vunpack.c.l.b16 %v368
        %v1684 = vunpack.c.h.b16 %v368
        %v1685 = vunpack.c.l.b16 %v369
        %v1686 = vunpack.c.h.b16 %v369
        %v1687 = vunpack.c.l.b16 %v370
        %v1688 = vunpack.c.h.b16 %v370
        %v1689 = vunpack.c.l.b16 %v371
        %v1690 = vunpack.c.h.b16 %v371
        %v1691 = vunpack.c.l.b16 %v372
        %v1692 = vunpack.c.h.b16 %v372
        %v1693 = vunpack.c.l.b16 %v373
        %v1694 = vunpack.c.h.b16 %v373
        %v1695 = vunpack.c.l.b16 %v374
        %v1696 = vunpack.c.h.b16 %v374
        %v1697 = vunpack.c.l.b16 %v375
        %v1698 = vunpack.c.h.b16 %v375
        %v1699 = vunpack.c.l.b16 %v376
        %v1700 = vunpack.c.h.b16 %v376
        %v1701 = vunpack.c.l.b16 %v377
        %v1702 = vunpack.c.h.b16 %v377
        %v1703 = vunpack.c.l.b16 %v378
        %v1704 = vunpack.c.h.b16 %v378
        %v1705 = vunpack.c.l.b16 %v379
        %v1706 = vunpack.c.h.b16 %v379
        %v1707 = vunpack.c.l.b16 %v380
        %v1708 = vunpack.c.h.b16 %v380
        %v1709 = vunpack.c.l.b16 %v381
        %v1710 = vunpack.c.h.b16 %v381
        %v1711 = vunpack.c.l.b16 %v382
        %v1712 = vunpack.c.h.b16 %v382
        %v1713 = vunpack.c.l.b16 %v383
        %v1714 = vunpack.c.h.b16 %v383
        %v1715 = vunpack.c.l.b16 %v384
        %v1716 = vunpack.c.h.b16 %v384
        %v1717 = vunpack.c.l.b16 %v385
        %v1718 = vunpack.c.h.b16 %v385
        %v1719 = vunpack.c.l.b16 %v386
        %v1720 = vunpack.c.h.b16 %v386
        %v1721 = vunpack.c.l.b16 %v387
        %v1722 = vunpack.c.h.b16 %v387
        %v1723 = vunpack.c.l.b16 %v388
        %v1724 = vunpack.c.h.b16 %v388
        %v1725 = vunpack.c.l.b16 %v389
        %v1726 = vunpack.c.h.b16 %v389
        %v1727 = vunpack.c.l.b16 %v390
        %v1728 = vunpack.c.h.b16 %v390
        %v1729 = vunpack.c.l.b16 %v391
        %v1730 = vunpack.c.h.b16 %v391
        %v1731 = vunpack.c.l.b16 %v392
        %v1732 = vunpack.c.h.b16 %v392
        %v1733 = vunpack.c.l.b16 %v393
        %v1734 = vunpack.c.h.b16 %v393
        %v1735 = vunpack.c.l.b16 %v394
        %v1736 = vunpack.c.h.b16 %v394
        %v1737 = vunpack.c.l.b16 %v395
        %v1738 = vunpack.c.h.b16 %v395
        %v1739 = vunpack.c.l.b16 %v396
        %v1740 = vunpack.c.h.b16 %v396
        %v1741 = vunpack.c.l.b16 %v397
        %v1742 = vunpack.c.h.b16 %v397
        %v1743 = vunpack.c.l.b16 %v398
        %v1744 = vunpack.c.h.b16 %v398
        %v1745 = vunpack.c.l.b16 %v399
        %v1746 = vunpack.c.h.b16 %v399
        %v1747 = vunpack.c.l.b16 %v400
        %v1748 = vunpack.c.h.b16 %v400
        %v1749 = vunpack.c.l.b16 %v401
        %v1750 = vunpack.c.h.b16 %v401
        %v1751 = vunpack.c.l.b16 %v402
        %v1752 = vunpack.c.h.b16 %v402
        %v1753 = vunpack.c.l.b16 %v403
        %v1754 = vunpack.c.h.b16 %v403
        %v1755 = vunpack.c.l.b16 %v404
        %v1756 = vunpack.c.h.b16 %v404
        %v1757 = vunpack.c.l.b16 %v405
        %v1758 = vunpack.c.h.b16 %v405
        %v1759 = vunpack.c.l.b16 %v406
        %v1760 = vunpack.c.h.b16 %v406
        %v1761 = vunpack.c.l.b16 %v407
        %v1762 = vunpack.c.h.b16 %v407
        %v1763 = vunpack.c.l.b16 %v408
        %v1764 = vunpack.c.h.b16 %v408
        %v1765 = vunpack.c.l.b16 %v409
        %v1766 = vunpack.c.h.b16 %v409
        %v1767 = vunpack.c.l.b16 %v410
        %v1768 = vunpack.c.h.b16 %v410
        %v1769 = vunpack.c.l.b16 %v411
        %v1770 = vunpack.c.h.b16 %v411
        %v1771 = vunpack.c.l.b16 %v412
        %v1772 = vunpack.c.h.b16 %v412
        %v1773 = vunpack.c.l.b16 %v413
        %v1774 = vunpack.c.h.b16 %v413
        %v1775 = vunpack.c.l.b16 %v414
        %v1776 = vunpack.c.h.b16 %v414
        %v1777 = vunpack.c.l.b16 %v415
        %v1778 = vunpack.c.h.b16 %v415
        %v1779 = vunpack.c.l.b16 %v416
        %v1780 = vunpack.c.h.b16 %v416
        %v1781 = vunpack.c.l.b16 %v417
        %v1782 = vunpack.c.h.b16 %v417
        %v1783 = vunpack.c.l.b16 %v418
        %v1784 = vunpack.c.h.b16 %v418
        %v1785 = vunpack.c.l.b16 %v419
        %v1786 = vunpack.c.h.b16 %v419
        %v1787 = vunpack.c.l.b16 %v420
        %v1788 = vunpack.c.h.b16 %v420
        %v1789 = vunpack.c.l.b16 %v421
        %v1790 = vunpack.c.h.b16 %v421
        %v1791 = vunpack.c.l.b16 %v422
        %v1792 = vunpack.c.h.b16 %v422
        %v1793 = vunpack.c.l.b16 %v423
        %v1794 = vunpack.c.h.b16 %v423
        %v1795 = vunpack.c.l.b16 %v424
        %v1796 = vunpack.c.h.b16 %v424
        %v1797 = vunpack.c.l.b16 %v425
        %v1798 = vunpack.c.h.b16 %v425
        %v1799 = vunpack.c.l.b16 %v426
        %v1800 = vunpack.c.h.b16 %v426
        %v1801 = vunpack.c.l.b16 %v427
        %v1802 = vunpack.c.h.b16 %v427
        %v1803 = vunpack.c.l.b16 %v428
        %v1804 = vunpack.c.h.b16 %v428
        %v1805 = vunpack.c.l.b16 %v429
        %v1806 = vunpack.c.h.b16 %v429
        %v1807 = vunpack.c.l.b16 %v430
        %v1808 = vunpack.c.h.b16 %v430
        %v1809 = vunpack.c.l.b16 %v431
        %v1810 = vunpack.c.h.b16 %v431
        %v1811 = vunpack.c.l.b16 %v432
        %v1812 = vunpack.c.h.b16 %v432
        %v1813 = vunpack.c.l.b16 %v433
        %v1814 = vunpack.c.h.b16 %v433
        %v1815 = vunpack.c.l.b16 %v434
        %v1816 = vunpack.c.h.b16 %v434
        %v1817 = vunpack.c.l.b16 %v435
        %v1818 = vunpack.c.h.b16 %v435
        %v1819 = vunpack.c.l.b16 %v436
        %v1820 = vunpack.c.h.b16 %v436
        %v1821 = vunpack.c.l.b16 %v437
        %v1822 = vunpack.c.h.b16 %v437
        %v1823 = vunpack.c.l.b16 %v438
        %v1824 = vunpack.c.h.b16 %v438
        %v1825 = vunpack.c.l.b16 %v439
        %v1826 = vunpack.c.h.b16 %v439
        %v1827 = vunpack.c.l.b16 %v440
        %v1828 = vunpack.c.h.b16 %v440
        %v1829 = vunpack.c.l.b16 %v441
        %v1830 = vunpack.c.h.b16 %v441
        %v1831 = vunpack.c.l.b16 %v442
        %v1832 = vunpack.c.h.b16 %v442
        %v1833 = vunpack.c.l.b16 %v443
        %v1834 = vunpack.c.h.b16 %v443
        %v1835 = vunpack.c.l.b16 %v444
        %v1836 = vunpack.c.h.b16 %v444
        %v1837 = vunpack.c.l.b16 %v445
        %v1838 = vunpack.c.h.b16 %v445
        %v1839 = vunpack.c.l.b16 %v446
        %v1840 = vunpack.c.h.b16 %v446
        %v1841 = vunpack.c.l.b16 %v447
        %v1842 = vunpack.c.h.b16 %v447
        %v1843 = vunpack.c.l.b16 %v448
        %v1844 = vunpack.c.h.b16 %v448
        %v1845 = vunpack.c.l.b16 %v449
        %v1846 = vunpack.c.h.b16 %v449
        %v1847 = vunpack.c.l.b16 %v450
        %v1848 = vunpack.c.h.b16 %v450
        %v1849 = vunpack.c.l.b16 %v451
        %v1850 = vunpack.c.h.b16 %v451
        %v1851 = vunpack.c.l.b16 %v452
        %v1852 = vunpack.c.h.b16 %v452
        %v1853 = vunpack.c.l.b16 %v453
        %v1854 = vunpack.c.h.b16 %v453
        %v1855 = vunpack.c.l.b16 %v454
        %v1856 = vunpack.c.h.b16 %v454
        %v1857 = vunpack.c.l.b16 %v455
        %v1858 = vunpack.c.h.b16 %v455
        %v1859 = vunpack.c.l.b16 %v456
        %v1860 = vunpack.c.h.b16 %v456
        %v1861 = vunpack.c.l.b16 %v457
        %v1862 = vunpack.c.h.b16 %v457
        %v1863 = vunpack.c.l.b16 %v458
        %v1864 = vunpack.c.h.b16 %v458
        %v1865 = vunpack.c.l.b16 %v459
        %v1866 = vunpack.c.h.b16 %v459
        %v1867 = vunpack.c.l.b16 %v460
        %v1868 = vunpack.c.h.b16 %v460
        %v1869 = vunpack.c.l.b16 %v461
        %v1870 = vunpack.c.h.b16 %v461
        %v1871 = vunpack.c.l.b16 %v462
        %v1872 = vunpack.c.h.b16 %v462
        %v1873 = vunpack.c.l.b16 %v463
        %v1874 = vunpack.c.h.b16 %v463
        %v1875 = vunpack.c.l.b16 %v464
        %v1876 = vunpack.c.h.b16 %v464
        %v1877 = vunpack.c.l.b16 %v465
        %v1878 = vunpack.c.h.b16 %v465
        %v1879 = vunpack.c.l.b16 %v466
        %v1880 = vunpack.c.h.b16 %v466
        %v1881 = vunpack.c.l.b16 %v467
        %v1882 = vunpack.c.h.b16 %v467
        %v1883 = vunpack.c.l.b16 %v468
        %v1884 = vunpack.c.h.b16 %v468
        %v1885 = vunpack.c.l.b16 %v469
        %v1886 = vunpack.c.h.b16 %v469
        %v1887 = vunpack.c.l.b16 %v470
        %v1888 = vunpack.c.h.b16 %v470
        %v1889 = vunpack.c.l.b16 %v471
        %v1890 = vunpack.c.h.b16 %v471
        %v1891 = vunpack.c.l.b16 %v472
        %v1892 = vunpack.c.h.b16 %v472
        %v1893 = vunpack.c.l.b16 %v473
        %v1894 = vunpack.c.h.b16 %v473
        %v1895 = vunpack.c.l.b16 %v474
        %v1896 = vunpack.c.h.b16 %v474
        %v1897 = vunpack.c.l.b16 %v475
        %v1898 = vunpack.c.h.b16 %v475
        %v1899 = vunpack.c.l.b16 %v476
        %v1900 = vunpack.c.h.b16 %v476
        %v1901 = vunpack.c.l.b16 %v477
        %v1902 = vunpack.c.h.b16 %v477
        %v1903 = vunpack.c.l.b16 %v478
        %v1904 = vunpack.c.h.b16 %v478
        %v1905 = vunpack.c.l.b16 %v479
        %v1906 = vunpack.c.h.b16 %v479
        %v1907 = vunpack.c.l.b16 %v480
        %v1908 = vunpack.c.h.b16 %v480
        %v1909 = vunpack.c.l.b16 %v481
        %v1910 = vunpack.c.h.b16 %v481
        %v1911 = vunpack.c.l.b16 %v482
        %v1912 = vunpack.c.h.b16 %v482
        %v1913 = vunpack.c.l.b16 %v483
        %v1914 = vunpack.c.h.b16 %v483
        %v1915 = vunpack.c.l.b16 %v484
        %v1916 = vunpack.c.h.b16 %v484
        %v1917 = vunpack.c.l.b16 %v485
        %v1918 = vunpack.c.h.b16 %v485
        %v1919 = vunpack.c.l.b16 %v486
        %v1920 = vunpack.c.h.b16 %v486
        %v1921 = vunpack.c.l.b16 %v487
        %v1922 = vunpack.c.h.b16 %v487
        %v1923 = vunpack.c.l.b16 %v488
        %v1924 = vunpack.c.h.b16 %v488
        %v1925 = vunpack.c.l.b16 %v489
        %v1926 = vunpack.c.h.b16 %v489
        %v1927 = vunpack.c.l.b16 %v490
        %v1928 = vunpack.c.h.b16 %v490
        %v1929 = vunpack.c.l.b16 %v491
        %v1930 = vunpack.c.h.b16 %v491
        %v1931 = vunpack.c.l.b16 %v492
        %v1932 = vunpack.c.h.b16 %v492
        %v1933 = vunpack.c.l.b16 %v493
        %v1934 = vunpack.c.h.b16 %v493
        %v1935 = vunpack.c.l.b16 %v494
        %v1936 = vunpack.c.h.b16 %v494
        %v1937 = vunpack.c.l.b16 %v495
        %v1938 = vunpack.c.h.b16 %v495
        %v1939 = vunpack.c.l.b16 %v496
        %v1940 = vunpack.c.h.b16 %v496
        %v1941 = vunpack.c.l.b16 %v497
        %v1942 = vunpack.c.h.b16 %v497
        %v1943 = vunpack.c.l.b16 %v498
        %v1944 = vunpack.c.h.b16 %v498
        %v1945 = vunpack.c.l.b16 %v499
        %v1946 = vunpack.c.h.b16 %v499
        %v1947 = vunpack.c.l.b16 %v500
        %v1948 = vunpack.c.h.b16 %v500
        %v1949 = vunpack.c.l.b16 %v501
        %v1950 = vunpack.c.h.b16 %v501
        %v1951 = vunpack.c.l.b16 %v502
        %v1952 = vunpack.c.h.b16 %v502
        %v1953 = vunpack.c.l.b16 %v503
        %v1954 = vunpack.c.h.b16 %v503
        %v1955 = vunpack.c.l.b16 %v504
        %v1956 = vunpack.c.h.b16 %v504
        %v1957 = vunpack.c.l.b16 %v505
        %v1958 = vunpack.c.h.b16 %v505
        %v1959 = vunpack.c.l.b16 %v506
        %v1960 = vunpack.c.h.b16 %v506
        %v1961 = vunpack.c.l.b16 %v507
        %v1962 = vunpack.c.h.b16 %v507
        %v1963 = vunpack.c.l.b16 %v508
        %v1964 = vunpack.c.h.b16 %v508
        %v1965 = vunpack.c.l.b16 %v509
        %v1966 = vunpack.c.h.b16 %v509
        %v1967 = vunpack.c.l.b16 %v510
        %v1968 = vunpack.c.h.b16 %v510
        %v1969 = vunpack.c.l.b16 %v511
        %v1970 = vunpack.c.h.b16 %v511
        %v1971 = vunpack.c.l.b16 %v512
        %v1972 = vunpack.c.h.b16 %v512
        %v1973 = vunpack.c.l.b16 %v513
        %v1974 = vunpack.c.h.b16 %v513
        %v1975 = vunpack.c.l.b16 %v514
        %v1976 = vunpack.c.h.b16 %v514
        %v1977 = vunpack.c.l.b16 %v515
        %v1978 = vunpack.c.h.b16 %v515
        %v1979 = vunpack.c.l.b16 %v516
        %v1980 = vunpack.c.h.b16 %v516
        %v1981 = vunpack.c.l.b16 %v517
        %v1982 = vunpack.c.h.b16 %v517
        %v1983 = vunpack.c.l.b16 %v518
        %v1984 = vunpack.c.h.b16 %v518
        %v1985 = vunpack.c.l.b16 %v519
        %v1986 = vunpack.c.h.b16 %v519
        %v1987 = vunpack.c.l.b16 %v520
        %v1988 = vunpack.c.h.b16 %v520
        %v1989 = vunpack.c.l.b16 %v521
        %v1990 = vunpack.c.h.b16 %v521
        %v1991 = vunpack.c.l.b16 %v522
        %v1992 = vunpack.c.h.b16 %v522
        %v1993 = vunpack.c.l.b16 %v523
        %v1994 = vunpack.c.h.b16 %v523
        %v1995 = vunpack.c.l.b16 %v524
        %v1996 = vunpack.c.h.b16 %v524
        %v1997 = vunpack.c.l.b16 %v525
        %v1998 = vunpack.c.h.b16 %v525
        %v1999 = vunpack.c.l.b16 %v526
        %v2000 = vunpack.c.h.b16 %v526
        %v2001 = vunpack.c.l.b16 %v527
        %v2002 = vunpack.c.h.b16 %v527
        %v2003 = vunpack.c.l.b16 %v528
        %v2004 = vunpack.c.h.b16 %v528
        %v2005 = vunpack.c.l.b16 %v529
        %v2006 = vunpack.c.h.b16 %v529
        %v2007 = vunpack.c.l.b16 %v530
        %v2008 = vunpack.c.h.b16 %v530
        %v2009 = vunpack.c.l.b16 %v531
        %v2010 = vunpack.c.h.b16 %v531
        %v2011 = vunpack.c.l.b16 %v532
        %v2012 = vunpack.c.h.b16 %v532
        %v2013 = vunpack.c.l.b16 %v533
        %v2014 = vunpack.c.h.b16 %v533
        %v2015 = vunpack.c.l.b16 %v534
        %v2016 = vunpack.c.h.b16 %v534
        %v2017 = vunpack.c.l.b16 %v535
        %v2018 = vunpack.c.h.b16 %v535
        %v2019 = vunpack.c.l.b16 %v536
        %v2020 = vunpack.c.h.b16 %v536
        %v2021 = vunpack.c.l.b16 %v537
        %v2022 = vunpack.c.h.b16 %v537
        %v2023 = vunpack.c.l.b16 %v538
        %v2024 = vunpack.c.h.b16 %v538
        %v2025 = vunpack.c.l.b16 %v539
        %v2026 = vunpack.c.h.b16 %v539
        %v2027 = vunpack.c.l.b16 %v540
        %v2028 = vunpack.c.h.b16 %v540
        %v2029 = vunpack.c.l.b16 %v541
        %v2030 = vunpack.c.h.b16 %v541
        %v2031 = vunpack.c.l.b16 %v542
        %v2032 = vunpack.c.h.b16 %v542
        %v2033 = vunpack.c.l.b16 %v543
        %v2034 = vunpack.c.h.b16 %v543
        %v2035 = vunpack.c.l.b16 %v544
        %v2036 = vunpack.c.h.b16 %v544
        %v2037 = vunpack.c.l.b16 %v545
        %v2038 = vunpack.c.h.b16 %v545
        %v2039 = vunpack.c.l.b16 %v546
        %v2040 = vunpack.c.h.b16 %v546
        %v2041 = vunpack.c.l.b16 %v547
        %v2042 = vunpack.c.h.b16 %v547
        %v2043 = vunpack.c.l.b16 %v548
        %v2044 = vunpack.c.h.b16 %v548
        %v2045 = vunpack.c.l.b16 %v549
        %v2046 = vunpack.c.h.b16 %v549
        %v2047 = vunpack.c.l.b16 %v550
        %v2048 = vunpack.c.h.b16 %v550
        %v2049 = vunpack.c.l.b16 %v551
        %v2050 = vunpack.c.h.b16 %v551
        %v2051 = vunpack.c.l.b16 %v552
        %v2052 = vunpack.c.h.b16 %v552
        %v2053 = vunpack.c.l.b16 %v553
        %v2054 = vunpack.c.h.b16 %v553
        %v2055 = vunpack.c.l.b16 %v554
        %v2056 = vunpack.c.h.b16 %v554
        %v2057 = vunpack.c.l.b16 %v555
        %v2058 = vunpack.c.h.b16 %v555
        %v2059 = vunpack.c.l.b16 %v556
        %v2060 = vunpack.c.h.b16 %v556
        %v2061 = vunpack.c.l.b16 %v557
        %v2062 = vunpack.c.h.b16 %v557
        %v2063 = vunpack.c.l.b16 %v558
        %v2064 = vunpack.c.h.b16 %v558
        %v2065 = vunpack.c.l.b16 %v559
        %v2066 = vunpack.c.h.b16 %v559
        %v2067 = vunpack.c.l.b16 %v560
        %v2068 = vunpack.c.h.b16 %v560
        %v2069 = vunpack.c.l.b16 %v561
        %v2070 = vunpack.c.h.b16 %v561
        %v2071 = vunpack.c.l.b16 %v562
        %v2072 = vunpack.c.h.b16 %v562
        %v2073 = vunpack.c.l.b16 %v563
        %v2074 = vunpack.c.h.b16 %v563
        %v2075 = vunpack.c.l.b16 %v564
        %v2076 = vunpack.c.h.b16 %v564
        %v2077 = vunpack.c.l.b16 %v565
        %v2078 = vunpack.c.h.b16 %v565
        %v2079 = vunpack.c.l.b16 %v566
        %v2080 = vunpack.c.h.b16 %v566
        %v2081 = vunpack.c.l.b16 %v567
        %v2082 = vunpack.c.h.b16 %v567
        %v2083 = vunpack.c.l.b16 %v568
        %v2084 = vunpack.c.h.b16 %v568
        %v2085 = vunpack.c.l.b16 %v569
        %v2086 = vunpack.c.h.b16 %v569
        %v2087 = vunpack.c.l.b16 %v570
        %v2088 = vunpack.c.h.b16 %v570
        %v2089 = vunpack.c.l.b16 %v571
        %v2090 = vunpack.c.h.b16 %v571
        %v2091 = vunpack.c.l.b16 %v572
        %v2092 = vunpack.c.h.b16 %v572
        %v2093 = vunpack.c.l.b16 %v573
        %v2094 = vunpack.c.h.b16 %v573
        %v2095 = vunpack.c.l.b16 %v574
        %v2096 = vunpack.c.h.b16 %v574
        %v2097 = vunpack.c.l.b16 %v575
        %v2098 = vunpack.c.h.b16 %v575
        %v2099 = vunpack.c.l.b16 %v576
        %v2100 = vunpack.c.h.b16 %v576
        %v2101 = vunpack.c.l.b16 %v577
        %v2102 = vunpack.c.h.b16 %v577
        %v2103 = vunpack.c.l.b16 %v578
        %v2104 = vunpack.c.h.b16 %v578
        %v2105 = vunpack.c.l.b16 %v579
        %v2106 = vunpack.c.h.b16 %v579
        %v2107 = vunpack.c.l.b16 %v580
        %v2108 = vunpack.c.h.b16 %v580
        %v2109 = vunpack.c.l.b16 %v581
        %v2110 = vunpack.c.h.b16 %v581
        %v2111 = vunpack.c.l.b16 %v582
        %v2112 = vunpack.c.h.b16 %v582
        %v2113 = vunpack.c.l.b16 %v583
        %v2114 = vunpack.c.h.b16 %v583
        %v2115 = vunpack.c.l.b16 %v584
        %v2116 = vunpack.c.h.b16 %v584
        %v2117 = vunpack.c.l.b16 %v585
        %v2118 = vunpack.c.h.b16 %v585
        %v2119 = vunpack.c.l.b16 %v586
        %v2120 = vunpack.c.h.b16 %v586
        %v2121 = vunpack.c.l.b16 %v587
        %v2122 = vunpack.c.h.b16 %v587
        %v2123 = vunpack.c.l.b16 %v588
        %v2124 = vunpack.c.h.b16 %v588
        %v2125 = vunpack.c.l.b16 %v589
        %v2126 = vunpack.c.h.b16 %v589
        %v2127 = vunpack.c.l.b16 %v590
        %v2128 = vunpack.c.h.b16 %v590
        %v2129 = vunpack.c.l.b16 %v591
        %v2130 = vunpack.c.h.b16 %v591
        %v2131 = vunpack.c.l.b16 %v592
        %v2132 = vunpack.c.h.b16 %v592
        %v2133 = vunpack.c.l.b16 %v593
        %v2134 = vunpack.c.h.b16 %v593
        %v2135 = vunpack.c.l.b16 %v594
        %v2136 = vunpack.c.h.b16 %v594
        %v2137 = vunpack.c.l.b16 %v595
        %v2138 = vunpack.c.h.b16 %v595
        %v2139 = vunpack.c.l.b16 %v596
        %v2140 = vunpack.c.h.b16 %v596
        %v2141 = vunpack.c.l.b16 %v597
        %v2142 = vunpack.c.h.b16 %v597
        %v2143 = vunpack.c.l.b16 %v598
        %v2144 = vunpack.c.h.b16 %v598
        %v2145 = vunpack.c.l.b16 %v599
        %v2146 = vunpack.c.h.b16 %v599
        %v2147 = vunpack.c.l.b16 %v600
        %v2148 = vunpack.c.h.b16 %v600
        %v2149 = vunpack.c.l.b16 %v601
        %v2150 = vunpack.c.h.b16 %v601
        %v2151 = vunpack.c.l.b16 %v602
        %v2152 = vunpack.c.h.b16 %v602
        %v2153 = vunpack.c.l.b16 %v603
        %v2154 = vunpack.c.h.b16 %v603
        %v2155 = vunpack.c.l.b16 %v604
        %v2156 = vunpack.c.h.b16 %v604
        %v2157 = vunpack.c.l.b16 %v605
        %v2158 = vunpack.c.h.b16 %v605
        %v2159 = vunpack.c.l.b16 %v606
        %v2160 = vunpack.c.h.b16 %v606
        %v2161 = vunpack.c.l.b16 %v607
        %v2162 = vunpack.c.h.b16 %v607
        %v2163 = vunpack.c.l.b16 %v608
        %v2164 = vunpack.c.h.b16 %v608
        %v2165 = vunpack.c.l.b16 %v609
        %v2166 = vunpack.c.h.b16 %v609
        %v2167 = vunpack.c.l.b16 %v610
        %v2168 = vunpack.c.h.b16 %v610
        %v2169 = vunpack.c.l.b16 %v611
        %v2170 = vunpack.c.h.b16 %v611
        %v2171 = vunpack.c.l.b16 %v612
        %v2172 = vunpack.c.h.b16 %v612
        %v2173 = vunpack.c.l.b16 %v613
        %v2174 = vunpack.c.h.b16 %v613
        %v2175 = vunpack.c.l.b16 %v614
        %v2176 = vunpack.c.h.b16 %v614
        %v2177 = vunpack.c.l.b16 %v615
        %v2178 = vunpack.c.h.b16 %v615
        %v2179 = vunpack.c.l.b16 %v616
        %v2180 = vunpack.c.h.b16 %v616
        %v2181 = vunpack.c.l.b16 %v617
        %v2182 = vunpack.c.h.b16 %v617
        %v2183 = vunpack.c.l.b16 %v618
        %v2184 = vunpack.c.h.b16 %v618
        %v2185 = vunpack.c.l.b16 %v619
        %v2186 = vunpack.c.h.b16 %v619
        %v2187 = vunpack.c.l.b16 %v620
        %v2188 = vunpack.c.h.b16 %v620
        %v2189 = vunpack.c.l.b16 %v621
        %v2190 = vunpack.c.h.b16 %v621
        %v2191 = vunpack.c.l.b16 %v622
        %v2192 = vunpack.c.h.b16 %v622
        %v2193 = vunpack.c.l.b16 %v623
        %v2194 = vunpack.c.h.b16 %v623
        %v2195 = vunpack.c.l.b16 %v624
        %v2196 = vunpack.c.h.b16 %v624
        %v2197 = vunpack.c.l.b16 %v625
        %v2198 = vunpack.c.h.b16 %v625
        %v2199 = vunpack.c.l.b16 %v626
        %v2200 = vunpack.c.h.b16 %v626
        %v2201 = vunpack.c.l.b16 %v627
        %v2202 = vunpack.c.h.b16 %v627
        %v2203 = vunpack.c.l.b16 %v628
        %v2204 = vunpack.c.h.b16 %v628
        %v2205 = vunpack.c.l.b16 %v629
        %v2206 = vunpack.c.h.b16 %v629
        %v2207 = vunpack.c.l.b16 %v630
        %v2208 = vunpack.c.h.b16 %v630
        %v2209 = vunpack.c.l.b16 %v631
        %v2210 = vunpack.c.h.b16 %v631
        %v2211 = vunpack.c.l.b16 %v632
        %v2212 = vunpack.c.h.b16 %v632
        %v2213 = vunpack.c.l.b16 %v633
        %v2214 = vunpack.c.h.b16 %v633
        %v2215 = vunpack.c.l.b16 %v634
        %v2216 = vunpack.c.h.b16 %v634
        %v2217 = vunpack.c.l.b16 %v635
        %v2218 = vunpack.c.h.b16 %v635
        %v2219 = vunpack.c.l.b16 %v636
        %v2220 = vunpack.c.h.b16 %v636
        %v2221 = vunpack.c.l.b16 %v637
        %v2222 = vunpack.c.h.b16 %v637
        %v2223 = vunpack.c.l.b16 %v638
        %v2224 = vunpack.c.h.b16 %v638
        %v2225 = vunpack.c.l.b16 %v639
        %v2226 = vunpack.c.h.b16 %v639
        %v2227 = vunpack.c.l.b16 %v640
        %v2228 = vunpack.c.h.b16 %v640
        %v2229 = vunpack.c.l.b16 %v641
        %v2230 = vunpack.c.h.b16 %v641
        %v2231 = vunpack.c.l.b16 %v642
        %v2232 = vunpack.c.h.b16 %v642
        %v2233 = vunpack.c.l.b16 %v643
        %v2234 = vunpack.c.h.b16 %v643
        %v2235 = vunpack.c.l.b16 %v644
        %v2236 = vunpack.c.h.b16 %v644
        %v2237 = vunpack.c.l.b16 %v645
        %v2238 = vunpack.c.h.b16 %v645
        %v2239 = vunpack.c.l.b16 %v646
        %v2240 = vunpack.c.h.b16 %v646
        %v2241 = vunpack.c.l.b16 %v647
        %v2242 = vunpack.c.h.b16 %v647
        %v2243 = vunpack.c.l.b16 %v648
        %v2244 = vunpack.c.h.b16 %v648
        %v2245 = vunpack.c.l.b16 %v649
        %v2246 = vunpack.c.h.b16 %v649
        %v2247 = vunpack.c.l.b16 %v650
        %v2248 = vunpack.c.h.b16 %v650
        %v2249 = vunpack.c.l.b16 %v651
        %v2250 = vunpack.c.h.b16 %v651
        %v2251 = vunpack.c.l.b16 %v652
        %v2252 = vunpack.c.h.b16 %v652
        %v2253 = vunpack.c.l.b16 %v653
        %v2254 = vunpack.c.h.b16 %v653
        %v2255 = vunpack.c.l.b16 %v654
        %v2256 = vunpack.c.h.b16 %v654
        %v2257 = vunpack.c.l.b16 %v655
        %v2258 = vunpack.c.h.b16 %v655
        %v2259 = vunpack.c.l.b16 %v656
        %v2260 = vunpack.c.h.b16 %v656
        %v2261 = vunpack.c.l.b16 %v657
        %v2262 = vunpack.c.h.b16 %v657
        %v2263 = vunpack.c.l.b16 %v658
        %v2264 = vunpack.c.h.b16 %v658
        %v2265 = vunpack.c.l.b16 %v659
        %v2266 = vunpack.c.h.b16 %v659
        %v2267 = vunpack.c.l.b16 %v660
        %v2268 = vunpack.c.h.b16 %v660
        %v2269 = vunpack.c.l.b16 %v661
        %v2270 = vunpack.c.h.b16 %v661
        %v2271 = vunpack.c.l.b16 %v662
        %v2272 = vunpack.c.h.b16 %v662
        %v2273 = vunpack.c.l.b16 %v663
        %v2274 = vunpack.c.h.b16 %v663
        %v2275 = vunpack.c.l.b16 %v664
        %v2276 = vunpack.c.h.b16 %v664
        %v2277 = vunpack.c.l.b16 %v665
        %v2278 = vunpack.c.h.b16 %v665
        %v2279 = vunpack.c.l.b16 %v666
        %v2280 = vunpack.c.h.b16 %v666
        %v2281 = vunpack.c.l.b16 %v667
        %v2282 = vunpack.c.h.b16 %v667
        %v2283 = vunpack.c.l.b16 %v668
        %v2284 = vunpack.c.h.b16 %v668
        %v2285 = vunpack.c.l.b16 %v669
        %v2286 = vunpack.c.h.b16 %v669
        %v2287 = vunpack.c.l.b16 %v670
        %v2288 = vunpack.c.h.b16 %v670
        %v2289 = vunpack.c.l.b16 %v671
        %v2290 = vunpack.c.h.b16 %v671
        %v2291 = vunpack.c.l.b16 %v672
        %v2292 = vunpack.c.h.b16 %v672
        %v2293 = vunpack.c.l.b16 %v673
        %v2294 = vunpack.c.h.b16 %v673
        %v2295 = vunpack.c.l.b16 %v674
        %v2296 = vunpack.c.h.b16 %v674
        %v2297 = vunpack.c.l.b16 %v675
        %v2298 = vunpack.c.h.b16 %v675
        %v2299 = vunpack.c.l.b16 %v676
        %v2300 = vunpack.c.h.b16 %v676
        %v2301 = vunpack.c.l.b16 %v677
        %v2302 = vunpack.c.h.b16 %v677
        %v2303 = vunpack.c.l.b16 %v678
        %v2304 = vunpack.c.h.b16 %v678
        %v2305 = vunpack.c.l.b16 %v679
        %v2306 = vunpack.c.h.b16 %v679
        %v2307 = vunpack.c.l.b16 %v680
        %v2308 = vunpack.c.h.b16 %v680
        %v2309 = vunpack.c.l.b16 %v681
        %v2310 = vunpack.c.h.b16 %v681
        %v2311 = vunpack.c.l.b16 %v682
        %v2312 = vunpack.c.h.b16 %v682
        %v2313 = vunpack.c.l.b16 %v683
        %v2314 = vunpack.c.h.b16 %v683
        %v2315 = vunpack.c.l.b16 %v684
        %v2316 = vunpack.c.h.b16 %v684
        %v2317 = vunpack.c.l.b16 %v685
        %v2318 = vunpack.c.h.b16 %v685
        %v2319 = vunpack.c.l.b16 %v686
        %v2320 = vunpack.c.h.b16 %v686
        %v2321 = vunpack.c.l.b16 %v687
        %v2322 = vunpack.c.h.b16 %v687
        %v2323 = vunpack.c.l.b16 %v688
        %v2324 = vunpack.c.h.b16 %v688
        %v2325 = vunpack.c.l.b16 %v689
        %v2326 = vunpack.c.h.b16 %v689
        %v2327 = vunpack.c.l.b16 %v690
        %v2328 = vunpack.c.h.b16 %v690
        %v2329 = vunpack.c.l.b16 %v691
        %v2330 = vunpack.c.h.b16 %v691
        %v2331 = vunpack.c.l.b16 %v692
        %v2332 = vunpack.c.h.b16 %v692
        %v2333 = vunpack.c.l.b16 %v693
        %v2334 = vunpack.c.h.b16 %v693
        %v2335 = vunpack.c.l.b16 %v694
        %v2336 = vunpack.c.h.b16 %v694
        %v2337 = vunpack.c.l.b16 %v695
        %v2338 = vunpack.c.h.b16 %v695
        %v2339 = vunpack.c.l.b16 %v696
        %v2340 = vunpack.c.h.b16 %v696
        %v2341 = vunpack.c.l.b16 %v697
        %v2342 = vunpack.c.h.b16 %v697
        %v2343 = vunpack.c.l.b16 %v698
        %v2344 = vunpack.c.h.b16 %v698
        %v2345 = vunpack.c.l.b16 %v699
        %v2346 = vunpack.c.h.b16 %v699
        %v2347 = vunpack.c.l.b16 %v700
        %v2348 = vunpack.c.h.b16 %v700
        %v2349 = vunpack.c.l.b16 %v701
        %v2350 = vunpack.c.h.b16 %v701
        %v2351 = vunpack.c.l.b16 %v702
        %v2352 = vunpack.c.h.b16 %v702
        %v2353 = vunpack.c.l.b16 %v703
        %v2354 = vunpack.c.h.b16 %v703
        %v2355 = vunpack.c.l.b16 %v704
        %v2356 = vunpack.c.h.b16 %v704
        %v2357 = vunpack.c.l.b16 %v705
        %v2358 = vunpack.c.h.b16 %v705
        %v2359 = vunpack.c.l.b16 %v706
        %v2360 = vunpack.c.h.b16 %v706
        %v2361 = vunpack.c.l.b16 %v707
        %v2362 = vunpack.c.h.b16 %v707
        %v2363 = vunpack.c.l.b16 %v708
        %v2364 = vunpack.c.h.b16 %v708
        %v2365 = vunpack.c.l.b16 %v709
        %v2366 = vunpack.c.h.b16 %v709
        %v2367 = vunpack.c.l.b16 %v710
        %v2368 = vunpack.c.h.b16 %v710
        %v2369 = vunpack.c.l.b16 %v711
        %v2370 = vunpack.c.h.b16 %v711
        %v2371 = vunpack.c.l.b16 %v712
        %v2372 = vunpack.c.h.b16 %v712
        %v2373 = vunpack.c.l.b16 %v713
        %v2374 = vunpack.c.h.b16 %v713
        %v2375 = vunpack.c.l.b16 %v714
        %v2376 = vunpack.c.h.b16 %v714
        %v2377 = vunpack.c.l.b16 %v715
        %v2378 = vunpack.c.h.b16 %v715
        %v2379 = vunpack.c.l.b16 %v716
        %v2380 = vunpack.c.h.b16 %v716
        %v2381 = vunpack.c.l.b16 %v717
        %v2382 = vunpack.c.h.b16 %v717
        %v2383 = vunpack.c.l.b16 %v718
        %v2384 = vunpack.c.h.b16 %v718
        %v2385 = vunpack.c.l.b16 %v719
        %v2386 = vunpack.c.h.b16 %v719
        %v2387 = vunpack.c.l.b16 %v720
        %v2388 = vunpack.c.h.b16 %v720
        %v2389 = vunpack.c.l.b16 %v721
        %v2390 = vunpack.c.h.b16 %v721
        %v2391 = vunpack.c.l.b16 %v722
        %v2392 = vunpack.c.h.b16 %v722
        %v2393 = vunpack.c.l.b16 %v723
        %v2394 = vunpack.c.h.b16 %v723
        %v2395 = vunpack.c.l.b16 %v724
        %v2396 = vunpack.c.h.b16 %v724
        %v2397 = vunpack.c.l.b16 %v725
        %v2398 = vunpack.c.h.b16 %v725
        %v2399 = vunpack.c.l.b16 %v726
        %v2400 = vunpack.c.h.b16 %v726
        %v2401 = vunpack.c.l.b16 %v727
        %v2402 = vunpack.c.h.b16 %v727
        %v2403 = vunpack.c.l.b16 %v728
        %v2404 = vunpack.c.h.b16 %v728
        %v2405 = vunpack.c.l.b16 %v729
        %v2406 = vunpack.c.h.b16 %v729
        %v2407 = vunpack.c.l.b16 %v730
        %v2408 = vunpack.c.h.b16 %v730
        %v2409 = vunpack.c.l.b16 %v731
        %v2410 = vunpack.c.h.b16 %v731
        %v2411 = vunpack.c.l.b16 %v732
        %v2412 = vunpack.c.h.b16 %v732
        %v2413 = vunpack.c.l.b16 %v733
        %v2414 = vunpack.c.h.b16 %v733
        %v2415 = vunpack.c.l.b16 %v734
        %v2416 = vunpack.c.h.b16 %v734
        %v2417 = vunpack.c.l.b16 %v735
        %v2418 = vunpack.c.h.b16 %v735
        %v2419 = vunpack.c.l.b16 %v736
        %v2420 = vunpack.c.h.b16 %v736
        %v2421 = vunpack.c.l.b16 %v737
        %v2422 = vunpack.c.h.b16 %v737
        %v2423 = vunpack.c.l.b16 %v738
        %v2424 = vunpack.c.h.b16 %v738
        %v2425 = vunpack.c.l.b16 %v739
        %v2426 = vunpack.c.h.b16 %v739
        %v2427 = vunpack.c.l.b16 %v740
        %v2428 = vunpack.c.h.b16 %v740
        %v2429 = vunpack.c.l.b16 %v741
        %v2430 = vunpack.c.h.b16 %v741
        %v2431 = vunpack.c.l.b16 %v742
        %v2432 = vunpack.c.h.b16 %v742
        %v2433 = vunpack.c.l.b16 %v743
        %v2434 = vunpack.c.h.b16 %v743
        %v2435 = vunpack.c.l.b16 %v744
        %v2436 = vunpack.c.h.b16 %v744
        %v2437 = vunpack.c.l.b16 %v745
        %v2438 = vunpack.c.h.b16 %v745
        %v2439 = vunpack.c.l.b16 %v746
        %v2440 = vunpack.c.h.b16 %v746
        %v2441 = vunpack.c.l.b16 %v747
        %v2442 = vunpack.c.h.b16 %v747
        %v2443 = vunpack.c.l.b16 %v748
        %v2444 = vunpack.c.h.b16 %v748
        %v2445 = vunpack.c.l.b16 %v749
        %v2446 = vunpack.c.h.b16 %v749
        %v2447 = vunpack.c.l.b16 %v750
        %v2448 = vunpack.c.h.b16 %v750
        %v2449 = vunpack.c.l.b16 %v751
        %v2450 = vunpack.c.h.b16 %v751
        %v2451 = vunpack.c.l.b16 %v752
        %v2452 = vunpack.c.h.b16 %v752
        %v2453 = vunpack.c.l.b16 %v753
        %v2454 = vunpack.c.h.b16 %v753
        %v2455 = vunpack.c.l.b16 %v754
        %v2456 = vunpack.c.h.b16 %v754
        %v2457 = vunpack.c.l.b16 %v755
        %v2458 = vunpack.c.h.b16 %v755
        %v2459 = vunpack.c.l.b16 %v756
        %v2460 = vunpack.c.h.b16 %v756
        %v2461 = vunpack.c.l.b16 %v757
        %v2462 = vunpack.c.h.b16 %v757
        %v2463 = vunpack.c.l.b16 %v758
        %v2464 = vunpack.c.h.b16 %v758
        %v2465 = vunpack.c.l.b16 %v759
        %v2466 = vunpack.c.h.b16 %v759
        %v2467 = vunpack.c.l.b16 %v760
        %v2468 = vunpack.c.h.b16 %v760
        %v2469 = vunpack.c.l.b16 %v761
        %v2470 = vunpack.c.h.b16 %v761
        %v2471 = vunpack.c.l.b16 %v762
        %v2472 = vunpack.c.h.b16 %v762
        %v2473 = vunpack.c.l.b16 %v763
        %v2474 = vunpack.c.h.b16 %v763
        %v2475 = vunpack.c.l.b16 %v764
        %v2476 = vunpack.c.h.b16 %v764
        %v2477 = vunpack.c.l.b16 %v765
        %v2478 = vunpack.c.h.b16 %v765
        %v2479 = vunpack.c.l.b16 %v766
        %v2480 = vunpack.c.h.b16 %v766
        %v2481 = vunpack.c.l.b16 %v767
        %v2482 = vunpack.c.h.b16 %v767
        %v2483 = vunpack.c.l.b16 %v768
        %v2484 = vunpack.c.h.b16 %v768
        %v2485 = vunpack.c.l.b16 %v769
        %v2486 = vunpack.c.h.b16 %v769
        %v2487 = vunpack.c.l.b16 %v770
        %v2488 = vunpack.c.h.b16 %v770
        %v2489 = vunpack.c.l.b16 %v771
        %v2490 = vunpack.c.h.b16 %v771
        %v2491 = vunpack.c.l.b16 %v772
        %v2492 = vunpack.c.h.b16 %v772
        %v2493 = vunpack.c.l.b16 %v773
        %v2494 = vunpack.c.h.b16 %v773
        %v2495 = vunpack.c.l.b16 %v774
        %v2496 = vunpack.c.h.b16 %v774
        %v2497 = vunpack.c.l.b16 %v775
        %v2498 = vunpack.c.h.b16 %v775
        %v2499 = vunpack.c.l.b16 %v776
        %v2500 = vunpack.c.h.b16 %v776
        %v2501 = vunpack.c.l.b16 %v777
        %v2502 = vunpack.c.h.b16 %v777
        %v2503 = vunpack.c.l.b16 %v778
        %v2504 = vunpack.c.h.b16 %v778
        %v2505 = vunpack.c.l.b16 %v779
        %v2506 = vunpack.c.h.b16 %v779
        %v2507 = vunpack.c.l.b16 %v780
        %v2508 = vunpack.c.h.b16 %v780
        %v2509 = vunpack.c.l.b16 %v781
        %v2510 = vunpack.c.h.b16 %v781
        %v2511 = vunpack.c.l.b16 %v782
        %v2512 = vunpack.c.h.b16 %v782
        %v2513 = vunpack.c.l.b16 %v783
        %v2514 = vunpack.c.h.b16 %v783
        %v2515 = vunpack.c.l.b16 %v784
        %v2516 = vunpack.c.h.b16 %v784
        %v2517 = vunpack.c.l.b16 %v785
        %v2518 = vunpack.c.h.b16 %v785
        %v2519 = vunpack.c.l.b16 %v786
        %v2520 = vunpack.c.h.b16 %v786
        %v2521 = vunpack.c.l.b16 %v787
        %v2522 = vunpack.c.h.b16 %v787
        %v2523 = vunpack.c.l.b16 %v788
        %v2524 = vunpack.c.h.b16 %v788
        %v2525 = vunpack.c.l.b16 %v789
        %v2526 = vunpack.c.h.b16 %v789
        %v2527 = vunpack.c.l.b16 %v790
        %v2528 = vunpack.c.h.b16 %v790
        %v2529 = vunpack.c.l.b16 %v791
        %v2530 = vunpack.c.h.b16 %v791
        %v2531 = vunpack.c.l.b16 %v792
        %v2532 = vunpack.c.h.b16 %v792
        %v2533 = vunpack.c.l.b16 %v793
        %v2534 = vunpack.c.h.b16 %v793
        %v2535 = vunpack.c.l.b16 %v794
        %v2536 = vunpack.c.h.b16 %v794
        %v2537 = vunpack.c.l.b16 %v795
        %v2538 = vunpack.c.h.b16 %v795
        %v2539 = vunpack.c.l.b16 %v796
        %v2540 = vunpack.c.h.b16 %v796
        %v2541 = vunpack.c.l.b16 %v797
        %v2542 = vunpack.c.h.b16 %v797
        %v2543 = vunpack.c.l.b16 %v798
        %v2544 = vunpack.c.h.b16 %v798
        %v2545 = vunpack.c.l.b16 %v799
        %v2546 = vunpack.c.h.b16 %v799
        %v2547 = vunpack.c.l.b16 %v800
        %v2548 = vunpack.c.h.b16 %v800
        %v2549 = vunpack.c.l.b16 %v801
        %v2550 = vunpack.c.h.b16 %v801
        %v2551 = vunpack.c.l.b16 %v802
        %v2552 = vunpack.c.h.b16 %v802
        %v2553 = vunpack.c.l.b16 %v803
        %v2554 = vunpack.c.h.b16 %v803
        %v2555 = vunpack.c.l.b16 %v804
        %v2556 = vunpack.c.h.b16 %v804
        %v2557 = vunpack.c.l.b16 %v805
        %v2558 = vunpack.c.h.b16 %v805
        %v2559 = vunpack.c.l.b16 %v806
        %v2560 = vunpack.c.h.b16 %v806
        %v2561 = vunpack.c.l.b16 %v807
        %v2562 = vunpack.c.h.b16 %v807
        %v2563 = vunpack.c.l.b16 %v808
        %v2564 = vunpack.c.h.b16 %v808
        %v2565 = vunpack.c.l.b16 %v809
        %v2566 = vunpack.c.h.b16 %v809
        %v2567 = vunpack.c.l.b16 %v810
        %v2568 = vunpack.c.h.b16 %v810
        %v2569 = vunpack.c.l.b16 %v811
        %v2570 = vunpack.c.h.b16 %v811
        %v2571 = vunpack.c.l.b16 %v812
        %v2572 = vunpack.c.h.b16 %v812
        %v2573 = vunpack.c.l.b16 %v813
        %v2574 = vunpack.c.h.b16 %v813
        %v2575 = vunpack.c.l.b16 %v814
        %v2576 = vunpack.c.h.b16 %v814
        %v2577 = vunpack.c.l.b16 %v815
        %v2578 = vunpack.c.h.b16 %v815
        %v2579 = vunpack.c.l.b16 %v816
        %v2580 = vunpack.c.h.b16 %v816
        %v2581 = vunpack.c.l.b16 %v817
        %v2582 = vunpack.c.h.b16 %v817
        %v2583 = vunpack.c.l.b16 %v818
        %v2584 = vunpack.c.h.b16 %v818
        %v2585 = vunpack.c.l.b16 %v819
        %v2586 = vunpack.c.h.b16 %v819
        %v2587 = vunpack.c.l.b16 %v820
        %v2588 = vunpack.c.h.b16 %v820
        %v2589 = vpack.c.b16 %v1567, %v1565
        %v2590 = vpack.c.b16 %v1568, %v1566
        %v2591 = vpack.c.b16 %v1571, %v1569
        %v2592 = vpack.c.b16 %v1572, %v1570
        %v2593 = vpack.c.b16 %v1575, %v1573
        %v2594 = vpack.c.b16 %v1576, %v1574
        %v2595 = vpack.c.b16 %v1579, %v1577
        %v2596 = vpack.c.b16 %v1580, %v1578
        %v2597 = vpack.c.b16 %v1583, %v1581
        %v2598 = vpack.c.b16 %v1584, %v1582
        %v2599 = vpack.c.b16 %v1587, %v1585
        %v2600 = vpack.c.b16 %v1588, %v1586
        %v2601 = vpack.c.b16 %v1591, %v1589
        %v2602 = vpack.c.b16 %v1592, %v1590
        %v2603 = vpack.c.b16 %v1595, %v1593
        %v2604 = vpack.c.b16 %v1596, %v1594
        %v2605 = vpack.c.b16 %v1599, %v1597
        %v2606 = vpack.c.b16 %v1600, %v1598
        %v2607 = vpack.c.b16 %v1603, %v1601
        %v2608 = vpack.c.b16 %v1604, %v1602
        %v2609 = vpack.c.b16 %v1607, %v1605
        %v2610 = vpack.c.b16 %v1608, %v1606
        %v2611 = vpack.c.b16 %v1611, %v1609
        %v2612 = vpack.c.b16 %v1612, %v1610
        %v2613 = vpack.c.b16 %v1615, %v1613
        %v2614 = vpack.c.b16 %v1616, %v1614
        %v2615 = vpack.c.b16 %v1619, %v1617
        %v2616 = vpack.c.b16 %v1620, %v1618
        %v2617 = vpack.c.b16 %v1623, %v1621
        %v2618 = vpack.c.b16 %v1624, %v1622
        %v2619 = vpack.c.b16 %v1627, %v1625
        %v2620 = vpack.c.b16 %v1628, %v1626
        %v2621 = vpack.c.b16 %v1631, %v1629
        %v2622 = vpack.c.b16 %v1632, %v1630
        %v2623 = vpack.c.b16 %v1635, %v1633
        %v2624 = vpack.c.b16 %v1636, %v1634
        %v2625 = vpack.c.b16 %v1639, %v1637
        %v2626 = vpack.c.b16 %v1640, %v1638
        %v2627 = vpack.c.b16 %v1643, %v1641
        %v2628 = vpack.c.b16 %v1644, %v1642
        %v2629 = vpack.c.b16 %v1647, %v1645
        %v2630 = vpack.c.b16 %v1648, %v1646
        %v2631 = vpack.c.b16 %v1651, %v1649
        %v2632 = vpack.c.b16 %v1652, %v1650
        %v2633 = vpack.c.b16 %v1655, %v1653
        %v2634 = vpack.c.b16 %v1656, %v1654
        %v2635 = vpack.c.b16 %v1659, %v1657
        %v2636 = vpack.c.b16 %v1660, %v1658
        %v2637 = vpack.c.b16 %v1663, %v1661
        %v2638 = vpack.c.b16 %v1664, %v1662
        %v2639 = vpack.c.b16 %v1667, %v1665
        %v2640 = vpack.c.b16 %v1668, %v1666
        %v2641 = vpack.c.b16 %v1671, %v1669
        %v2642 = vpack.c.b16 %v1672, %v1670
        %v2643 = vpack.c.b16 %v1675, %v1673
        %v2644 = vpack.c.b16 %v1676, %v1674
        %v2645 = vpack.c.b16 %v1679, %v1677
        %v2646 = vpack.c.b16 %v1680, %v1678
        %v2647 = vpack.c.b16 %v1683, %v1681
        %v2648 = vpack.c.b16 %v1684, %v1682
        %v2649 = vpack.c.b16 %v1687, %v1685
        %v2650 = vpack.c.b16 %v1688, %v1686
        %v2651 = vpack.c.b16 %v1691, %v1689
        %v2652 = vpack.c.b16 %v1692, %v1690
        %v2653 = vpack.c.b16 %v1695, %v1693
        %v2654 = vpack.c.b16 %v1696, %v1694
        %v2655 = vpack.c.b16 %v1699, %v1697
        %v2656 = vpack.c.b16 %v1700, %v1698
        %v2657 = vpack.c.b16 %v1703, %v1701
        %v2658 = vpack.c.b16 %v1704, %v1702
        %v2659 = vpack.c.b16 %v1707, %v1705
        %v2660 = vpack.c.b16 %v1708, %v1706
        %v2661 = vpack.c.b16 %v1711, %v1709
        %v2662 = vpack.c.b16 %v1712, %v1710
        %v2663 = vpack.c.b16 %v1715, %v1713
        %v2664 = vpack.c.b16 %v1716, %v1714
        %v2665 = vpack.c.b16 %v1719, %v1717
        %v2666 = vpack.c.b16 %v1720, %v1718
        %v2667 = vpack.c.b16 %v1723, %v1721
        %v2668 = vpack.c.b16 %v1724, %v1722
        %v2669 = vpack.c.b16 %v1727, %v1725
        %v2670 = vpack.c.b16 %v1728, %v1726
        %v2671 = vpack.c.b16 %v1731, %v1729
        %v2672 = vpack.c.b16 %v1732, %v1730
        %v2673 = vpack.c.b16 %v1735, %v1733
        %v2674 = vpack.c.b16 %v1736, %v1734
        %v2675 = vpack.c.b16 %v1739, %v1737
        %v2676 = vpack.c.b16 %v1740, %v1738
        %v2677 = vpack.c.b16 %v1743, %v1741
        %v2678 = vpack.c.b16 %v1744, %v1742
        %v2679 = vpack.c.b16 %v1747, %v1745
        %v2680 = vpack.c.b16 %v1748, %v1746
        %v2681 = vpack.c.b16 %v1751, %v1749
        %v2682 = vpack.c.b16 %v1752, %v1750
        %v2683 = vpack.c.b16 %v1755, %v1753
        %v2684 = vpack.c.b16 %v1756, %v1754
        %v2685 = vpack.c.b16 %v1759, %v1757
        %v2686 = vpack.c.b16 %v1760, %v1758
        %v2687 = vpack.c.b16 %v1763, %v1761
        %v2688 = vpack.c.b16 %v1764, %v1762
        %v2689 = vpack.c.b16 %v1767, %v1765
        %v2690 = vpack.c.b16 %v1768, %v1766
        %v2691 = vpack.c.b16 %v1771, %v1769
        %v2692 = vpack.c.b16 %v1772, %v1770
        %v2693 = vpack.c.b16 %v1775, %v1773
        %v2694 = vpack.c.b16 %v1776, %v1774
        %v2695 = vpack.c.b16 %v1779, %v1777
        %v2696 = vpack.c.b16 %v1780, %v1778
        %v2697 = vpack.c.b16 %v1783, %v1781
        %v2698 = vpack.c.b16 %v1784, %v1782
        %v2699 = vpack.c.b16 %v1787, %v1785
        %v2700 = vpack.c.b16 %v1788, %v1786
        %v2701 = vpack.c.b16 %v1791, %v1789
        %v2702 = vpack.c.b16 %v1792, %v1790
        %v2703 = vpack.c.b16 %v1795, %v1793
        %v2704 = vpack.c.b16 %v1796, %v1794
        %v2705 = vpack.c.b16 %v1799, %v1797
        %v2706 = vpack.c.b16 %v1800, %v1798
        %v2707 = vpack.c.b16 %v1803, %v1801
        %v2708 = vpack.c.b16 %v1804, %v1802
        %v2709 = vpack.c.b16 %v1807, %v1805
        %v2710 = vpack.c.b16 %v1808, %v1806
        %v2711 = vpack.c.b16 %v1811, %v1809
        %v2712 = vpack.c.b16 %v1812, %v1810
        %v2713 = vpack.c.b16 %v1815, %v1813
        %v2714 = vpack.c.b16 %v1816, %v1814
        %v2715 = vpack.c.b16 %v1819, %v1817
        %v2716 = vpack.c.b16 %v1820, %v1818
        %v2717 = vpack.c.b16 %v1823, %v1821
        %v2718 = vpack.c.b16 %v1824, %v1822
        %v2719 = vpack.c.b16 %v1827, %v1825
        %v2720 = vpack.c.b16 %v1828, %v1826
        %v2721 = vpack.c.b16 %v1831, %v1829
        %v2722 = vpack.c.b16 %v1832, %v1830
        %v2723 = vpack.c.b16 %v1835, %v1833
        %v2724 = vpack.c.b16 %v1836, %v1834
        %v2725 = vpack.c.b16 %v1839, %v1837
        %v2726 = vpack.c.b16 %v1840, %v1838
        %v2727 = vpack.c.b16 %v1843, %v1841
        %v2728 = vpack.c.b16 %v1844, %v1842
        %v2729 = vpack.c.b16 %v1847, %v1845
        %v2730 = vpack.c.b16 %v1848, %v1846
        %v2731 = vpack.c.b16 %v1851, %v1849
        %v2732 = vpack.c.b16 %v1852, %v1850
        %v2733 = vpack.c.b16 %v1855, %v1853
        %v2734 = vpack.c.b16 %v1856, %v1854
        %v2735 = vpack.c.b16 %v1859, %v1857
        %v2736 = vpack.c.b16 %v1860, %v1858
        %v2737 = vpack.c.b16 %v1863, %v1861
        %v2738 = vpack.c.b16 %v1864, %v1862
        %v2739 = vpack.c.b16 %v1867, %v1865
        %v2740 = vpack.c.b16 %v1868, %v1866
        %v2741 = vpack.c.b16 %v1871, %v1869
        %v2742 = vpack.c.b16 %v1872, %v1870
        %v2743 = vpack.c.b16 %v1875, %v1873
        %v2744 = vpack.c.b16 %v1876, %v1874
        %v2745 = vpack.c.b16 %v1879, %v1877
        %v2746 = vpack.c.b16 %v1880, %v1878
        %v2747 = vpack.c.b16 %v1883, %v1881
        %v2748 = vpack.c.b16 %v1884, %v1882
        %v2749 = vpack.c.b16 %v1887, %v1885
        %v2750 = vpack.c.b16 %v1888, %v1886
        %v2751 = vpack.c.b16 %v1891, %v1889
        %v2752 = vpack.c.b16 %v1892, %v1890
        %v2753 = vpack.c.b16 %v1895, %v1893
        %v2754 = vpack.c.b16 %v1896, %v1894
        %v2755 = vpack.c.b16 %v1899, %v1897
        %v2756 = vpack.c.b16 %v1900, %v1898
        %v2757 = vpack.c.b16 %v1903, %v1901
        %v2758 = vpack.c.b16 %v1904, %v1902
        %v2759 = vpack.c.b16 %v1907, %v1905
        %v2760 = vpack.c.b16 %v1908, %v1906
        %v2761 = vpack.c.b16 %v1911, %v1909
        %v2762 = vpack.c.b16 %v1912, %v1910
        %v2763 = vpack.c.b16 %v1915, %v1913
        %v2764 = vpack.c.b16 %v1916, %v1914
        %v2765 = vpack.c.b16 %v1919, %v1917
        %v2766 = vpack.c.b16 %v1920, %v1918
        %v2767 = vpack.c.b16 %v1923, %v1921
        %v2768 = vpack.c.b16 %v1924, %v1922
        %v2769 = vpack.c.b16 %v1927, %v1925
        %v2770 = vpack.c.b16 %v1928, %v1926
        %v2771 = vpack.c.b16 %v1931, %v1929
        %v2772 = vpack.c.b16 %v1932, %v1930
        %v2773 = vpack.c.b16 %v1935, %v1933
        %v2774 = vpack.c.b16 %v1936, %v1934
        %v2775 = vpack.c.b16 %v1939, %v1937
        %v2776 = vpack.c.b16 %v1940, %v1938
        %v2777 = vpack.c.b16 %v1943, %v1941
        %v2778 = vpack.c.b16 %v1944, %v1942
        %v2779 = vpack.c.b16 %v1947, %v1945
        %v2780 = vpack.c.b16 %v1948, %v1946
        %v2781 = vpack.c.b16 %v1951, %v1949
        %v2782 = vpack.c.b16 %v1952, %v1950
        %v2783 = vpack.c.b16 %v1955, %v1953
        %v2784 = vpack.c.b16 %v1956, %v1954
        %v2785 = vpack.c.b16 %v1959, %v1957
        %v2786 = vpack.c.b16 %v1960, %v1958
        %v2787 = vpack.c.b16 %v1963, %v1961
        %v2788 = vpack.c.b16 %v1964, %v1962
        %v2789 = vpack.c.b16 %v1967, %v1965
        %v2790 = vpack.c.b16 %v1968, %v1966
        %v2791 = vpack.c.b16 %v1971, %v1969
        %v2792 = vpack.c.b16 %v1972, %v1970
        %v2793 = vpack.c.b16 %v1975, %v1973
        %v2794 = vpack.c.b16 %v1976, %v1974
        %v2795 = vpack.c.b16 %v1979, %v1977
        %v2796 = vpack.c.b16 %v1980, %v1978
        %v2797 = vpack.c.b16 %v1983, %v1981
        %v2798 = vpack.c.b16 %v1984, %v1982
        %v2799 = vpack.c.b16 %v1987, %v1985
        %v2800 = vpack.c.b16 %v1988, %v1986
        %v2801 = vpack.c.b16 %v1991, %v1989
        %v2802 = vpack.c.b16 %v1992, %v1990
        %v2803 = vpack.c.b16 %v1995, %v1993
        %v2804 = vpack.c.b16 %v1996, %v1994
        %v2805 = vpack.c.b16 %v1999, %v1997
        %v2806 = vpack.c.b16 %v2000, %v1998
        %v2807 = vpack.c.b16 %v2003, %v2001
        %v2808 = vpack.c.b16 %v2004, %v2002
        %v2809 = vpack.c.b16 %v2007, %v2005
        %v2810 = vpack.c.b16 %v2008, %v2006
        %v2811 = vpack.c.b16 %v2011, %v2009
        %v2812 = vpack.c.b16 %v2012, %v2010
        %v2813 = vpack.c.b16 %v2015, %v2013
        %v2814 = vpack.c.b16 %v2016, %v2014
        %v2815 = vpack.c.b16 %v2019, %v2017
        %v2816 = vpack.c.b16 %v2020, %v2018
        %v2817 = vpack.c.b16 %v2023, %v2021
        %v2818 = vpack.c.b16 %v2024, %v2022
        %v2819 = vpack.c.b16 %v2027, %v2025
        %v2820 = vpack.c.b16 %v2028, %v2026
        %v2821 = vpack.c.b16 %v2031, %v2029
        %v2822 = vpack.c.b16 %v2032, %v2030
        %v2823 = vpack.c.b16 %v2035, %v2033
        %v2824 = vpack.c.b16 %v2036, %v2034
        %v2825 = vpack.c.b16 %v2039, %v2037
        %v2826 = vpack.c.b16 %v2040, %v2038
        %v2827 = vpack.c.b16 %v2043, %v2041
        %v2828 = vpack.c.b16 %v2044, %v2042
        %v2829 = vpack.c.b16 %v2047, %v2045
        %v2830 = vpack.c.b16 %v2048, %v2046
        %v2831 = vpack.c.b16 %v2051, %v2049
        %v2832 = vpack.c.b16 %v2052, %v2050
        %v2833 = vpack.c.b16 %v2055, %v2053
        %v2834 = vpack.c.b16 %v2056, %v2054
        %v2835 = vpack.c.b16 %v2059, %v2057
        %v2836 = vpack.c.b16 %v2060, %v2058
        %v2837 = vpack.c.b16 %v2063, %v2061
        %v2838 = vpack.c.b16 %v2064, %v2062
        %v2839 = vpack.c.b16 %v2067, %v2065
        %v2840 = vpack.c.b16 %v2068, %v2066
        %v2841 = vpack.c.b16 %v2071, %v2069
        %v2842 = vpack.c.b16 %v2072, %v2070
        %v2843 = vpack.c.b16 %v2075, %v2073
        %v2844 = vpack.c.b16 %v2076, %v2074
        %v2845 = vpack.c.b16 %v2079, %v2077
        %v2846 = vpack.c.b16 %v2080, %v2078
        %v2847 = vpack.c.b16 %v2083, %v2081
        %v2848 = vpack.c.b16 %v2084, %v2082
        %v2849 = vpack.c.b16 %v2087, %v2085
        %v2850 = vpack.c.b16 %v2088, %v2086
        %v2851 = vpack.c.b16 %v2091, %v2089
        %v2852 = vpack.c.b16 %v2092, %v2090
        %v2853 = vpack.c.b16 %v2095, %v2093
        %v2854 = vpack.c.b16 %v2096, %v2094
        %v2855 = vpack.c.b16 %v2099, %v2097
        %v2856 = vpack.c.b16 %v2100, %v2098
        %v2857 = vpack.c.b16 %v2103, %v2101
        %v2858 = vpack.c.b16 %v2104, %v2102
        %v2859 = vpack.c.b16 %v2107, %v2105
        %v2860 = vpack.c.b16 %v2108, %v2106
        %v2861 = vpack.c.b16 %v2111, %v2109
        %v2862 = vpack.c.b16 %v2112, %v2110
        %v2863 = vpack.c.b16 %v2115, %v2113
        %v2864 = vpack.c.b16 %v2116, %v2114
        %v2865 = vpack.c.b16 %v2119, %v2117
        %v2866 = vpack.c.b16 %v2120, %v2118
        %v2867 = vpack.c.b16 %v2123, %v2121
        %v2868 = vpack.c.b16 %v2124, %v2122
        %v2869 = vpack.c.b16 %v2127, %v2125
        %v2870 = vpack.c.b16 %v2128, %v2126
        %v2871 = vpack.c.b16 %v2131, %v2129
        %v2872 = vpack.c.b16 %v2132, %v2130
        %v2873 = vpack.c.b16 %v2135, %v2133
        %v2874 = vpack.c.b16 %v2136, %v2134
        %v2875 = vpack.c.b16 %v2139, %v2137
        %v2876 = vpack.c.b16 %v2140, %v2138
        %v2877 = vpack.c.b16 %v2143, %v2141
        %v2878 = vpack.c.b16 %v2144, %v2142
        %v2879 = vpack.c.b16 %v2147, %v2145
        %v2880 = vpack.c.b16 %v2148, %v2146
        %v2881 = vpack.c.b16 %v2151, %v2149
        %v2882 = vpack.c.b16 %v2152, %v2150
        %v2883 = vpack.c.b16 %v2155, %v2153
        %v2884 = vpack.c.b16 %v2156, %v2154
        %v2885 = vpack.c.b16 %v2159, %v2157
        %v2886 = vpack.c.b16 %v2160, %v2158
        %v2887 = vpack.c.b16 %v2163, %v2161
        %v2888 = vpack.c.b16 %v2164, %v2162
        %v2889 = vpack.c.b16 %v2167, %v2165
        %v2890 = vpack.c.b16 %v2168, %v2166
        %v2891 = vpack.c.b16 %v2171, %v2169
        %v2892 = vpack.c.b16 %v2172, %v2170
        %v2893 = vpack.c.b16 %v2175, %v2173
        %v2894 = vpack.c.b16 %v2176, %v2174
        %v2895 = vpack.c.b16 %v2179, %v2177
        %v2896 = vpack.c.b16 %v2180, %v2178
        %v2897 = vpack.c.b16 %v2183, %v2181
        %v2898 = vpack.c.b16 %v2184, %v2182
        %v2899 = vpack.c.b16 %v2187, %v2185
        %v2900 = vpack.c.b16 %v2188, %v2186
        %v2901 = vpack.c.b16 %v2191, %v2189
        %v2902 = vpack.c.b16 %v2192, %v2190
        %v2903 = vpack.c.b16 %v2195, %v2193
        %v2904 = vpack.c.b16 %v2196, %v2194
        %v2905 = vpack.c.b16 %v2199, %v2197
        %v2906 = vpack.c.b16 %v2200, %v2198
        %v2907 = vpack.c.b16 %v2203, %v2201
        %v2908 = vpack.c.b16 %v2204, %v2202
        %v2909 = vpack.c.b16 %v2207, %v2205
        %v2910 = vpack.c.b16 %v2208, %v2206
        %v2911 = vpack.c.b16 %v2211, %v2209
        %v2912 = vpack.c.b16 %v2212, %v2210
        %v2913 = vpack.c.b16 %v2215, %v2213
        %v2914 = vpack.c.b16 %v2216, %v2214
        %v2915 = vpack.c.b16 %v2219, %v2217
        %v2916 = vpack.c.b16 %v2220, %v2218
        %v2917 = vpack.c.b16 %v2223, %v2221
        %v2918 = vpack.c.b16 %v2224, %v2222
        %v2919 = vpack.c.b16 %v2227, %v2225
        %v2920 = vpack.c.b16 %v2228, %v2226
        %v2921 = vpack.c.b16 %v2231, %v2229
        %v2922 = vpack.c.b16 %v2232, %v2230
        %v2923 = vpack.c.b16 %v2235, %v2233
        %v2924 = vpack.c.b16 %v2236, %v2234
        %v2925 = vpack.c.b16 %v2239, %v2237
        %v2926 = vpack.c.b16 %v2240, %v2238
        %v2927 = vpack.c.b16 %v2243, %v2241
        %v2928 = vpack.c.b16 %v2244, %v2242
        %v2929 = vpack.c.b16 %v2247, %v2245
        %v2930 = vpack.c.b16 %v2248, %v2246
        %v2931 = vpack.c.b16 %v2251, %v2249
        %v2932 = vpack.c.b16 %v2252, %v2250
        %v2933 = vpack.c.b16 %v2255, %v2253
        %v2934 = vpack.c.b16 %v2256, %v2254
        %v2935 = vpack.c.b16 %v2259, %v2257
        %v2936 = vpack.c.b16 %v2260, %v2258
        %v2937 = vpack.c.b16 %v2263, %v2261
        %v2938 = vpack.c.b16 %v2264, %v2262
        %v2939 = vpack.c.b16 %v2267, %v2265
        %v2940 = vpack.c.b16 %v2268, %v2266
        %v2941 = vpack.c.b16 %v2271, %v2269
        %v2942 = vpack.c.b16 %v2272, %v2270
        %v2943 = vpack.c.b16 %v2275, %v2273
        %v2944 = vpack.c.b16 %v2276, %v2274
        %v2945 = vpack.c.b16 %v2279, %v2277
        %v2946 = vpack.c.b16 %v2280, %v2278
        %v2947 = vpack.c.b16 %v2283, %v2281
        %v2948 = vpack.c.b16 %v2284, %v2282
        %v2949 = vpack.c.b16 %v2287, %v2285
        %v2950 = vpack.c.b16 %v2288, %v2286
        %v2951 = vpack.c.b16 %v2291, %v2289
        %v2952 = vpack.c.b16 %v2292, %v2290
        %v2953 = vpack.c.b16 %v2295, %v2293
        %v2954 = vpack.c.b16 %v2296, %v2294
        %v2955 = vpack.c.b16 %v2299, %v2297
        %v2956 = vpack.c.b16 %v2300, %v2298
        %v2957 = vpack.c.b16 %v2303, %v2301
        %v2958 = vpack.c.b16 %v2304, %v2302
        %v2959 = vpack.c.b16 %v2307, %v2305
        %v2960 = vpack.c.b16 %v2308, %v2306
        %v2961 = vpack.c.b16 %v2311, %v2309
        %v2962 = vpack.c.b16 %v2312, %v2310
        %v2963 = vpack.c.b16 %v2315, %v2313
        %v2964 = vpack.c.b16 %v2316, %v2314
        %v2965 = vpack.c.b16 %v2319, %v2317
        %v2966 = vpack.c.b16 %v2320, %v2318
        %v2967 = vpack.c.b16 %v2323, %v2321
        %v2968 = vpack.c.b16 %v2324, %v2322
        %v2969 = vpack.c.b16 %v2327, %v2325
        %v2970 = vpack.c.b16 %v2328, %v2326
        %v2971 = vpack.c.b16 %v2331, %v2329
        %v2972 = vpack.c.b16 %v2332, %v2330
        %v2973 = vpack.c.b16 %v2335, %v2333
        %v2974 = vpack.c.b16 %v2336, %v2334
        %v2975 = vpack.c.b16 %v2339, %v2337
        %v2976 = vpack.c.b16 %v2340, %v2338
        %v2977 = vpack.c.b16 %v2343, %v2341
        %v2978 = vpack.c.b16 %v2344, %v2342
        %v2979 = vpack.c.b16 %v2347, %v2345
        %v2980 = vpack.c.b16 %v2348, %v2346
        %v2981 = vpack.c.b16 %v2351, %v2349
        %v2982 = vpack.c.b16 %v2352, %v2350
        %v2983 = vpack.c.b16 %v2355, %v2353
        %v2984 = vpack.c.b16 %v2356, %v2354
        %v2985 = vpack.c.b16 %v2359, %v2357
        %v2986 = vpack.c.b16 %v2360, %v2358
        %v2987 = vpack.c.b16 %v2363, %v2361
        %v2988 = vpack.c.b16 %v2364, %v2362
        %v2989 = vpack.c.b16 %v2367, %v2365
        %v2990 = vpack.c.b16 %v2368, %v2366
        %v2991 = vpack.c.b16 %v2371, %v2369
        %v2992 = vpack.c.b16 %v2372, %v2370
        %v2993 = vpack.c.b16 %v2375, %v2373
        %v2994 = vpack.c.b16 %v2376, %v2374
        %v2995 = vpack.c.b16 %v2379, %v2377
        %v2996 = vpack.c.b16 %v2380, %v2378
        %v2997 = vpack.c.b16 %v2383, %v2381
        %v2998 = vpack.c.b16 %v2384, %v2382
        %v2999 = vpack.c.b16 %v2387, %v2385
        %v3000 = vpack.c.b16 %v2388, %v2386
        %v3001 = vpack.c.b16 %v2391, %v2389
        %v3002 = vpack.c.b16 %v2392, %v2390
        %v3003 = vpack.c.b16 %v2395, %v2393
        %v3004 = vpack.c.b16 %v2396, %v2394
        %v3005 = vpack.c.b16 %v2399, %v2397
        %v3006 = vpack.c.b16 %v2400, %v2398
        %v3007 = vpack.c.b16 %v2403, %v2401
        %v3008 = vpack.c.b16 %v2404, %v2402
        %v3009 = vpack.c.b16 %v2407, %v2405
        %v3010 = vpack.c.b16 %v2408, %v2406
        %v3011 = vpack.c.b16 %v2411, %v2409
        %v3012 = vpack.c.b16 %v2412, %v2410
        %v3013 = vpack.c.b16 %v2415, %v2413
        %v3014 = vpack.c.b16 %v2416, %v2414
        %v3015 = vpack.c.b16 %v2419, %v2417
        %v3016 = vpack.c.b16 %v2420, %v2418
        %v3017 = vpack.c.b16 %v2423, %v2421
        %v3018 = vpack.c.b16 %v2424, %v2422
        %v3019 = vpack.c.b16 %v2427, %v2425
        %v3020 = vpack.c.b16 %v2428, %v2426
        %v3021 = vpack.c.b16 %v2431, %v2429
        %v3022 = vpack.c.b16 %v2432, %v2430
        %v3023 = vpack.c.b16 %v2435, %v2433
        %v3024 = vpack.c.b16 %v2436, %v2434
        %v3025 = vpack.c.b16 %v2439, %v2437
        %v3026 = vpack.c.b16 %v2440, %v2438
        %v3027 = vpack.c.b16 %v2443, %v2441
        %v3028 = vpack.c.b16 %v2444, %v2442
        %v3029 = vpack.c.b16 %v2447, %v2445
        %v3030 = vpack.c.b16 %v2448, %v2446
        %v3031 = vpack.c.b16 %v2451, %v2449
        %v3032 = vpack.c.b16 %v2452, %v2450
        %v3033 = vpack.c.b16 %v2455, %v2453
        %v3034 = vpack.c.b16 %v2456, %v2454
        %v3035 = vpack.c.b16 %v2459, %v2457
        %v3036 = vpack.c.b16 %v2460, %v2458
        %v3037 = vpack.c.b16 %v2463, %v2461
        %v3038 = vpack.c.b16 %v2464, %v2462
        %v3039 = vpack.c.b16 %v2467, %v2465
        %v3040 = vpack.c.b16 %v2468, %v2466
        %v3041 = vpack.c.b16 %v2471, %v2469
        %v3042 = vpack.c.b16 %v2472, %v2470
        %v3043 = vpack.c.b16 %v2475, %v2473
        %v3044 = vpack.c.b16 %v2476, %v2474
        %v3045 = vpack.c.b16 %v2479, %v2477
        %v3046 = vpack.c.b16 %v2480, %v2478
        %v3047 = vpack.c.b16 %v2483, %v2481
        %v3048 = vpack.c.b16 %v2484, %v2482
        %v3049 = vpack.c.b16 %v2487, %v2485
        %v3050 = vpack.c.b16 %v2488, %v2486
        %v3051 = vpack.c.b16 %v2491, %v2489
        %v3052 = vpack.c.b16 %v2492, %v2490
        %v3053 = vpack.c.b16 %v2495, %v2493
        %v3054 = vpack.c.b16 %v2496, %v2494
        %v3055 = vpack.c.b16 %v2499, %v2497
        %v3056 = vpack.c.b16 %v2500, %v2498
        %v3057 = vpack.c.b16 %v2503, %v2501
        %v3058 = vpack.c.b16 %v2504, %v2502
        %v3059 = vpack.c.b16 %v2507, %v2505
        %v3060 = vpack.c.b16 %v2508, %v2506
        %v3061 = vpack.c.b16 %v2511, %v2509
        %v3062 = vpack.c.b16 %v2512, %v2510
        %v3063 = vpack.c.b16 %v2515, %v2513
        %v3064 = vpack.c.b16 %v2516, %v2514
        %v3065 = vpack.c.b16 %v2519, %v2517
        %v3066 = vpack.c.b16 %v2520, %v2518
        %v3067 = vpack.c.b16 %v2523, %v2521
        %v3068 = vpack.c.b16 %v2524, %v2522
        %v3069 = vpack.c.b16 %v2527, %v2525
        %v3070 = vpack.c.b16 %v2528, %v2526
        %v3071 = vpack.c.b16 %v2531, %v2529
        %v3072 = vpack.c.b16 %v2532, %v2530
        %v3073 = vpack.c.b16 %v2535, %v2533
        %v3074 = vpack.c.b16 %v2536, %v2534
        %v3075 = vpack.c.b16 %v2539, %v2537
        %v3076 = vpack.c.b16 %v2540, %v2538
        %v3077 = vpack.c.b16 %v2543, %v2541
        %v3078 = vpack.c.b16 %v2544, %v2542
        %v3079 = vpack.c.b16 %v2547, %v2545
        %v3080 = vpack.c.b16 %v2548, %v2546
        %v3081 = vpack.c.b16 %v2551, %v2549
        %v3082 = vpack.c.b16 %v2552, %v2550
        %v3083 = vpack.c.b16 %v2555, %v2553
        %v3084 = vpack.c.b16 %v2556, %v2554
        %v3085 = vpack.c.b16 %v2559, %v2557
        %v3086 = vpack.c.b16 %v2560, %v2558
        %v3087 = vpack.c.b16 %v2563, %v2561
        %v3088 = vpack.c.b16 %v2564, %v2562
        %v3089 = vpack.c.b16 %v2567, %v2565
        %v3090 = vpack.c.b16 %v2568, %v2566
        %v3091 = vpack.c.b16 %v2571, %v2569
        %v3092 = vpack.c.b16 %v2572, %v2570
        %v3093 = vpack.c.b16 %v2575, %v2573
        %v3094 = vpack.c.b16 %v2576, %v2574
        %v3095 = vpack.c.b16 %v2579, %v2577
        %v3096 = vpack.c.b16 %v2580, %v2578
        %v3097 = vpack.c.b16 %v2583, %v2581
        %v3098 = vpack.c.b16 %v2584, %v2582
        %v3099 = vpack.c.b16 %v2587, %v2585
        %v3100 = vpack.c.b16 %v2588, %v2586
        %3613 = vmatprep.subr.bf16.mxu0 %v2590
        %3614 = vmatpush1.bf16.msra.mxu0 %v2589
        %3615 = vmatprep.subr.bf16.mxu0 %v2592
        %3616 = vmatpush1.bf16.msra.mxu0 %v2591
        %3617 = vmatprep.subr.bf16.mxu0 %v2594
        %3618 = vmatpush1.bf16.msra.mxu0 %v2593
        %3619 = vmatprep.subr.bf16.mxu0 %v2596
        %3620 = vmatpush1.bf16.msra.mxu0 %v2595
        %3621 = vmatprep.subr.bf16.mxu0 %v2598
        %3622 = vmatpush1.bf16.msra.mxu0 %v2597
        %3623 = vmatprep.subr.bf16.mxu0 %v2600
        %3624 = vmatpush1.bf16.msra.mxu0 %v2599
        %3625 = vmatprep.subr.bf16.mxu0 %v2602
        %3626 = vmatpush1.bf16.msra.mxu0 %v2601
        %3627 = vmatprep.subr.bf16.mxu0 %v2604
        %3628 = vmatpush1.bf16.msra.mxu0 %v2603
        %3629 = vmatprep.subr.bf16.mxu0 %v2606
        %3630 = vmatpush1.bf16.msra.mxu0 %v2605
        %3631 = vmatprep.subr.bf16.mxu0 %v2608
        %3632 = vmatpush1.bf16.msra.mxu0 %v2607
        %3633 = vmatprep.subr.bf16.mxu0 %v2610
        %3634 = vmatpush1.bf16.msra.mxu0 %v2609
        %3635 = vmatprep.subr.bf16.mxu0 %v2612
        %3636 = vmatpush1.bf16.msra.mxu0 %v2611
        %3637 = vmatprep.subr.bf16.mxu0 %v2614
        %3638 = vmatpush1.bf16.msra.mxu0 %v2613
        %3639 = vmatprep.subr.bf16.mxu0 %v2616
        %3640 = vmatpush1.bf16.msra.mxu0 %v2615
        %3641 = vmatprep.subr.bf16.mxu0 %v2618
        %3642 = vmatpush1.bf16.msra.mxu0 %v2617
        %3643 = vmatprep.subr.bf16.mxu0 %v2620
        %3644 = vmatpush1.bf16.msra.mxu0 %v2619
        %3645 = vmatprep.mubr.bf16.mxu0 %v862
        %3646 = vmatmul.mubr.bf16.gmra.mrb[0].mxu0 %v848
        %v3647 = vpop.f32.mrb[0].mxu0
        %v3648 = vadd.f32 0.0, %v3647
        %v3649 = vpop.f32.mrb[0].mxu0
        %v3650 = vadd.f32 0.0, %v3649
        %v3651 = vpop.f32.mrb[0].mxu0
        %v3652 = vpop.f32.mrb[0].mxu0
        %3653 = vdwg.mxu0
        %3654 = vmatprep.subr.bf16.mxu0 %v2622
        %3655 = vmatpush1.bf16.msra.mxu0 %v2621
        %3656 = vmatprep.subr.bf16.mxu0 %v2624
        %3657 = vmatpush1.bf16.msra.mxu0 %v2623
        %3658 = vmatprep.subr.bf16.mxu0 %v2626
        %3659 = vmatpush1.bf16.msra.mxu0 %v2625
        %3660 = vmatprep.subr.bf16.mxu0 %v2628
        %3661 = vmatpush1.bf16.msra.mxu0 %v2627
        %3662 = vmatprep.subr.bf16.mxu0 %v2630
        %3663 = vmatpush1.bf16.msra.mxu0 %v2629
        %3664 = vmatprep.subr.bf16.mxu0 %v2632
        %3665 = vmatpush1.bf16.msra.mxu0 %v2631
        %3666 = vmatprep.subr.bf16.mxu0 %v2634
        %3667 = vmatpush1.bf16.msra.mxu0 %v2633
        %3668 = vmatprep.subr.bf16.mxu0 %v2636
        %3669 = vmatpush1.bf16.msra.mxu0 %v2635
        %3670 = vmatprep.subr.bf16.mxu0 %v2638
        %3671 = vmatpush1.bf16.msra.mxu0 %v2637
        %3672 = vmatprep.subr.bf16.mxu0 %v2640
        %3673 = vmatpush1.bf16.msra.mxu0 %v2639
        %3674 = vmatprep.subr.bf16.mxu0 %v2642
        %3675 = vmatpush1.bf16.msra.mxu0 %v2641
        %3676 = vmatprep.subr.bf16.mxu0 %v2644
        %3677 = vmatpush1.bf16.msra.mxu0 %v2643
        %3678 = vmatprep.subr.bf16.mxu0 %v2646
        %3679 = vmatpush1.bf16.msra.mxu0 %v2645
        %3680 = vmatprep.subr.bf16.mxu0 %v2648
        %3681 = vmatpush1.bf16.msra.mxu0 %v2647
        %3682 = vmatprep.subr.bf16.mxu0 %v2650
        %3683 = vmatpush1.bf16.msra.mxu0 %v2649
        %3684 = vmatprep.subr.bf16.mxu0 %v2652
        %3685 = vmatpush1.bf16.msra.mxu0 %v2651
        %3686 = vmatprep.mubr.bf16.mxu0 %v872
        %3687 = vmatmul.mubr.bf16.gmra.mrb[0].mxu0 %v870
        %v3688 = vpop.f32.mrb[0].mxu0
        %v3689 = vadd.f32 %v3648, %v3688
        %v3690 = vpop.f32.mrb[0].mxu0
        %v3691 = vadd.f32 %v3650, %v3690
        %v3692 = vpop.f32.mrb[0].mxu0
        %v3693 = vpop.f32.mrb[0].mxu0
        %3694 = vdwg.mxu0
        %3695 = vmatprep.subr.bf16.mxu0 %v2654
        %3696 = vmatpush1.bf16.msra.mxu0 %v2653
        %3697 = vmatprep.subr.bf16.mxu0 %v2656
        %3698 = vmatpush1.bf16.msra.mxu0 %v2655
        %3699 = vmatprep.subr.bf16.mxu0 %v2658
        %3700 = vmatpush1.bf16.msra.mxu0 %v2657
        %3701 = vmatprep.subr.bf16.mxu0 %v2660
        %3702 = vmatpush1.bf16.msra.mxu0 %v2659
        %3703 = vmatprep.subr.bf16.mxu0 %v2662
        %3704 = vmatpush1.bf16.msra.mxu0 %v2661
        %3705 = vmatprep.subr.bf16.mxu0 %v2664
        %3706 = vmatpush1.bf16.msra.mxu0 %v2663
        %3707 = vmatprep.subr.bf16.mxu0 %v2666
        %3708 = vmatpush1.bf16.msra.mxu0 %v2665
        %3709 = vmatprep.subr.bf16.mxu0 %v2668
        %3710 = vmatpush1.bf16.msra.mxu0 %v2667
        %3711 = vmatprep.subr.bf16.mxu0 %v2670
        %3712 = vmatpush1.bf16.msra.mxu0 %v2669
        %3713 = vmatprep.subr.bf16.mxu0 %v2672
        %3714 = vmatpush1.bf16.msra.mxu0 %v2671
        %3715 = vmatprep.subr.bf16.mxu0 %v2674
        %3716 = vmatpush1.bf16.msra.mxu0 %v2673
        %3717 = vmatprep.subr.bf16.mxu0 %v2676
        %3718 = vmatpush1.bf16.msra.mxu0 %v2675
        %3719 = vmatprep.subr.bf16.mxu0 %v2678
        %3720 = vmatpush1.bf16.msra.mxu0 %v2677
        %3721 = vmatprep.subr.bf16.mxu0 %v2680
        %3722 = vmatpush1.bf16.msra.mxu0 %v2679
        %3723 = vmatprep.subr.bf16.mxu0 %v2682
        %3724 = vmatpush1.bf16.msra.mxu0 %v2681
        %3725 = vmatprep.subr.bf16.mxu0 %v2684
        %3726 = vmatpush1.bf16.msra.mxu0 %v2683
        %3727 = vmatprep.mubr.bf16.mxu0 %v869
        %3728 = vmatmul.mubr.bf16.gmra.mrb[0].mxu0 %v855
        %v3729 = vpop.f32.mrb[0].mxu0
        %v3730 = vadd.f32 %v3689, %v3729
        %v3731 = vpop.f32.mrb[0].mxu0
        %v3732 = vadd.f32 %v3691, %v3731
        %v3733 = vpop.f32.mrb[0].mxu0
        %v3734 = vpop.f32.mrb[0].mxu0
        %3735 = vdwg.mxu0
        %3736 = vmatprep.subr.bf16.mxu0 %v2686
        %3737 = vmatpush1.bf16.msra.mxu0 %v2685
        %3738 = vmatprep.subr.bf16.mxu0 %v2688
        %3739 = vmatpush1.bf16.msra.mxu0 %v2687
        %3740 = vmatprep.subr.bf16.mxu0 %v2690
        %3741 = vmatpush1.bf16.msra.mxu0 %v2689
        %3742 = vmatprep.subr.bf16.mxu0 %v2692
        %3743 = vmatpush1.bf16.msra.mxu0 %v2691
        %3744 = vmatprep.subr.bf16.mxu0 %v2694
        %3745 = vmatpush1.bf16.msra.mxu0 %v2693
        %3746 = vmatprep.subr.bf16.mxu0 %v2696
        %3747 = vmatpush1.bf16.msra.mxu0 %v2695
        %3748 = vmatprep.subr.bf16.mxu0 %v2698
        %3749 = vmatpush1.bf16.msra.mxu0 %v2697
        %3750 = vmatprep.subr.bf16.mxu0 %v2700
        %3751 = vmatpush1.bf16.msra.mxu0 %v2699
        %3752 = vmatprep.subr.bf16.mxu0 %v2702
        %3753 = vmatpush1.bf16.msra.mxu0 %v2701
        %3754 = vmatprep.subr.bf16.mxu0 %v2704
        %3755 = vmatpush1.bf16.msra.mxu0 %v2703
        %3756 = vmatprep.subr.bf16.mxu0 %v2706
        %3757 = vmatpush1.bf16.msra.mxu0 %v2705
        %3758 = vmatprep.subr.bf16.mxu0 %v2708
        %3759 = vmatpush1.bf16.msra.mxu0 %v2707
        %3760 = vmatprep.subr.bf16.mxu0 %v2710
        %3761 = vmatpush1.bf16.msra.mxu0 %v2709
        %3762 = vmatprep.subr.bf16.mxu0 %v2712
        %3763 = vmatpush1.bf16.msra.mxu0 %v2711
        %3764 = vmatprep.subr.bf16.mxu0 %v2714
        %3765 = vmatpush1.bf16.msra.mxu0 %v2713
        %3766 = vmatprep.subr.bf16.mxu0 %v2716
        %3767 = vmatpush1.bf16.msra.mxu0 %v2715
        %3768 = vmatprep.mubr.bf16.mxu0 %v873
        %3769 = vmatmul.mubr.bf16.gmra.mrb[0].mxu0 %v871
        %v3770 = vpop.f32.mrb[0].mxu0
        %v3771 = vadd.f32 %v3730, %v3770
        %v3772 = vpop.f32.mrb[0].mxu0
        %v3773 = vadd.f32 %v3732, %v3772
        %v3774 = vpop.f32.mrb[0].mxu0
        %v3775 = vpop.f32.mrb[0].mxu0
        %3776 = vdwg.mxu0
        %3777 = vmatprep.subr.bf16.mxu0 %v2718
        %3778 = vmatpush1.bf16.msra.mxu0 %v2717
        %3779 = vmatprep.subr.bf16.mxu0 %v2720
        %3780 = vmatpush1.bf16.msra.mxu0 %v2719
        %3781 = vmatprep.subr.bf16.mxu0 %v2722
        %3782 = vmatpush1.bf16.msra.mxu0 %v2721
        %3783 = vmatprep.subr.bf16.mxu0 %v2724
        %3784 = vmatpush1.bf16.msra.mxu0 %v2723
        %3785 = vmatprep.subr.bf16.mxu0 %v2726
        %3786 = vmatpush1.bf16.msra.mxu0 %v2725
        %3787 = vmatprep.subr.bf16.mxu0 %v2728
        %3788 = vmatpush1.bf16.msra.mxu0 %v2727
        %3789 = vmatprep.subr.bf16.mxu0 %v2730
        %3790 = vmatpush1.bf16.msra.mxu0 %v2729
        %3791 = vmatprep.subr.bf16.mxu0 %v2732
        %3792 = vmatpush1.bf16.msra.mxu0 %v2731
        %3793 = vmatprep.subr.bf16.mxu0 %v2734
        %3794 = vmatpush1.bf16.msra.mxu0 %v2733
        %3795 = vmatprep.subr.bf16.mxu0 %v2736
        %3796 = vmatpush1.bf16.msra.mxu0 %v2735
        %3797 = vmatprep.subr.bf16.mxu0 %v2738
        %3798 = vmatpush1.bf16.msra.mxu0 %v2737
        %3799 = vmatprep.subr.bf16.mxu0 %v2740
        %3800 = vmatpush1.bf16.msra.mxu0 %v2739
        %3801 = vmatprep.subr.bf16.mxu0 %v2742
        %3802 = vmatpush1.bf16.msra.mxu0 %v2741
        %3803 = vmatprep.subr.bf16.mxu0 %v2744
        %3804 = vmatpush1.bf16.msra.mxu0 %v2743
        %3805 = vmatprep.subr.bf16.mxu0 %v2746
        %3806 = vmatpush1.bf16.msra.mxu0 %v2745
        %3807 = vmatprep.subr.bf16.mxu0 %v2748
        %3808 = vmatpush1.bf16.msra.mxu0 %v2747
        %3809 = vmatprep.mubr.bf16.mxu0 %v911
        %3810 = vmatmul.mubr.bf16.gmra.mrb[0].mxu0 %v897
        %v3811 = vpop.f32.mrb[0].mxu0
        %v3812 = vadd.f32 %v3771, %v3811
        %v3813 = vpop.f32.mrb[0].mxu0
        %v3814 = vadd.f32 %v3773, %v3813
        %v3815 = vpop.f32.mrb[0].mxu0
        %v3816 = vpop.f32.mrb[0].mxu0
        %3817 = vdwg.mxu0
        %3818 = vmatprep.subr.bf16.mxu0 %v2750
        %3819 = vmatpush1.bf16.msra.mxu0 %v2749
        %3820 = vmatprep.subr.bf16.mxu0 %v2752
        %3821 = vmatpush1.bf16.msra.mxu0 %v2751
        %3822 = vmatprep.subr.bf16.mxu0 %v2754
        %3823 = vmatpush1.bf16.msra.mxu0 %v2753
        %3824 = vmatprep.subr.bf16.mxu0 %v2756
        %3825 = vmatpush1.bf16.msra.mxu0 %v2755
        %3826 = vmatprep.subr.bf16.mxu0 %v2758
        %3827 = vmatpush1.bf16.msra.mxu0 %v2757
        %3828 = vmatprep.subr.bf16.mxu0 %v2760
        %3829 = vmatpush1.bf16.msra.mxu0 %v2759
        %3830 = vmatprep.subr.bf16.mxu0 %v2762
        %3831 = vmatpush1.bf16.msra.mxu0 %v2761
        %3832 = vmatprep.subr.bf16.mxu0 %v2764
        %3833 = vmatpush1.bf16.msra.mxu0 %v2763
        %3834 = vmatprep.subr.bf16.mxu0 %v2766
        %3835 = vmatpush1.bf16.msra.mxu0 %v2765
        %3836 = vmatprep.subr.bf16.mxu0 %v2768
        %3837 = vmatpush1.bf16.msra.mxu0 %v2767
        %3838 = vmatprep.subr.bf16.mxu0 %v2770
        %3839 = vmatpush1.bf16.msra.mxu0 %v2769
        %3840 = vmatprep.subr.bf16.mxu0 %v2772
        %3841 = vmatpush1.bf16.msra.mxu0 %v2771
        %3842 = vmatprep.subr.bf16.mxu0 %v2774
        %3843 = vmatpush1.bf16.msra.mxu0 %v2773
        %3844 = vmatprep.subr.bf16.mxu0 %v2776
        %3845 = vmatpush1.bf16.msra.mxu0 %v2775
        %3846 = vmatprep.subr.bf16.mxu0 %v2778
        %3847 = vmatpush1.bf16.msra.mxu0 %v2777
        %3848 = vmatprep.subr.bf16.mxu0 %v2780
        %3849 = vmatpush1.bf16.msra.mxu0 %v2779
        %3850 = vmatprep.mubr.bf16.mxu0 %v921
        %3851 = vmatmul.mubr.bf16.gmra.mrb[0].mxu0 %v919
        %v3852 = vpop.f32.mrb[0].mxu0
        %v3853 = vadd.f32 %v3812, %v3852
        %v3854 = vpop.f32.mrb[0].mxu0
        %v3855 = vadd.f32 %v3814, %v3854
        %v3856 = vpop.f32.mrb[0].mxu0
        %v3857 = vpop.f32.mrb[0].mxu0
        %3858 = vdwg.mxu0
        %3859 = vmatprep.subr.bf16.mxu0 %v2782
        %3860 = vmatpush1.bf16.msra.mxu0 %v2781
        %3861 = vmatprep.subr.bf16.mxu0 %v2784
        %3862 = vmatpush1.bf16.msra.mxu0 %v2783
        %3863 = vmatprep.subr.bf16.mxu0 %v2786
        %3864 = vmatpush1.bf16.msra.mxu0 %v2785
        %3865 = vmatprep.subr.bf16.mxu0 %v2788
        %3866 = vmatpush1.bf16.msra.mxu0 %v2787
        %3867 = vmatprep.subr.bf16.mxu0 %v2790
        %3868 = vmatpush1.bf16.msra.mxu0 %v2789
        %3869 = vmatprep.subr.bf16.mxu0 %v2792
        %3870 = vmatpush1.bf16.msra.mxu0 %v2791
        %3871 = vmatprep.subr.bf16.mxu0 %v2794
        %3872 = vmatpush1.bf16.msra.mxu0 %v2793
        %3873 = vmatprep.subr.bf16.mxu0 %v2796
        %3874 = vmatpush1.bf16.msra.mxu0 %v2795
        %3875 = vmatprep.subr.bf16.mxu0 %v2798
        %3876 = vmatpush1.bf16.msra.mxu0 %v2797
        %3877 = vmatprep.subr.bf16.mxu0 %v2800
        %3878 = vmatpush1.bf16.msra.mxu0 %v2799
        %3879 = vmatprep.subr.bf16.mxu0 %v2802
        %3880 = vmatpush1.bf16.msra.mxu0 %v2801
        %3881 = vmatprep.subr.bf16.mxu0 %v2804
        %3882 = vmatpush1.bf16.msra.mxu0 %v2803
        %3883 = vmatprep.subr.bf16.mxu0 %v2806
        %3884 = vmatpush1.bf16.msra.mxu0 %v2805
        %3885 = vmatprep.subr.bf16.mxu0 %v2808
        %3886 = vmatpush1.bf16.msra.mxu0 %v2807
        %3887 = vmatprep.subr.bf16.mxu0 %v2810
        %3888 = vmatpush1.bf16.msra.mxu0 %v2809
        %3889 = vmatprep.subr.bf16.mxu0 %v2812
        %3890 = vmatpush1.bf16.msra.mxu0 %v2811
        %3891 = vmatprep.mubr.bf16.mxu0 %v918
        %3892 = vmatmul.mubr.bf16.gmra.mrb[0].mxu0 %v904
        %v3893 = vpop.f32.mrb[0].mxu0
        %v3894 = vadd.f32 %v3853, %v3893
        %v3895 = vpop.f32.mrb[0].mxu0
        %v3896 = vadd.f32 %v3855, %v3895
        %v3897 = vpop.f32.mrb[0].mxu0
        %v3898 = vpop.f32.mrb[0].mxu0
        %3899 = vdwg.mxu0
        %3900 = vmatprep.subr.bf16.mxu0 %v2814
        %3901 = vmatpush1.bf16.msra.mxu0 %v2813
        %3902 = vmatprep.subr.bf16.mxu0 %v2816
        %3903 = vmatpush1.bf16.msra.mxu0 %v2815
        %3904 = vmatprep.subr.bf16.mxu0 %v2818
        %3905 = vmatpush1.bf16.msra.mxu0 %v2817
        %3906 = vmatprep.subr.bf16.mxu0 %v2820
        %3907 = vmatpush1.bf16.msra.mxu0 %v2819
        %3908 = vmatprep.subr.bf16.mxu0 %v2822
        %3909 = vmatpush1.bf16.msra.mxu0 %v2821
        %3910 = vmatprep.subr.bf16.mxu0 %v2824
        %3911 = vmatpush1.bf16.msra.mxu0 %v2823
        %3912 = vmatprep.subr.bf16.mxu0 %v2826
        %3913 = vmatpush1.bf16.msra.mxu0 %v2825
        %3914 = vmatprep.subr.bf16.mxu0 %v2828
        %3915 = vmatpush1.bf16.msra.mxu0 %v2827
        %3916 = vmatprep.subr.bf16.mxu0 %v2830
        %3917 = vmatpush1.bf16.msra.mxu0 %v2829
        %3918 = vmatprep.subr.bf16.mxu0 %v2832
        %3919 = vmatpush1.bf16.msra.mxu0 %v2831
        %3920 = vmatprep.subr.bf16.mxu0 %v2834
        %3921 = vmatpush1.bf16.msra.mxu0 %v2833
        %3922 = vmatprep.subr.bf16.mxu0 %v2836
        %3923 = vmatpush1.bf16.msra.mxu0 %v2835
        %3924 = vmatprep.subr.bf16.mxu0 %v2838
        %3925 = vmatpush1.bf16.msra.mxu0 %v2837
        %3926 = vmatprep.subr.bf16.mxu0 %v2840
        %3927 = vmatpush1.bf16.msra.mxu0 %v2839
        %3928 = vmatprep.subr.bf16.mxu0 %v2842
        %3929 = vmatpush1.bf16.msra.mxu0 %v2841
        %3930 = vmatprep.subr.bf16.mxu0 %v2844
        %3931 = vmatpush1.bf16.msra.mxu0 %v2843
        %3932 = vmatprep.mubr.bf16.mxu0 %v922
        %3933 = vmatmul.mubr.bf16.gmra.mrb[0].mxu0 %v920
        %v3934 = vpop.f32.mrb[0].mxu0
        %v3935 = vadd.f32 %v3894, %v3934
        %v3936 = vpop.f32.mrb[0].mxu0
        %v3937 = vadd.f32 %v3896, %v3936
        %v3938 = vpop.f32.mrb[0].mxu0
        %v3939 = vpop.f32.mrb[0].mxu0
        %3940 = vdwg.mxu0
        %3941 = vmatprep.subr.bf16.mxu0 %v2846
        %3942 = vmatpush1.bf16.msra.mxu0 %v2845
        %3943 = vmatprep.subr.bf16.mxu0 %v2848
        %3944 = vmatpush1.bf16.msra.mxu0 %v2847
        %3945 = vmatprep.subr.bf16.mxu0 %v2850
        %3946 = vmatpush1.bf16.msra.mxu0 %v2849
        %3947 = vmatprep.subr.bf16.mxu0 %v2852
        %3948 = vmatpush1.bf16.msra.mxu0 %v2851
        %3949 = vmatprep.subr.bf16.mxu0 %v2854
        %3950 = vmatpush1.bf16.msra.mxu0 %v2853
        %3951 = vmatprep.subr.bf16.mxu0 %v2856
        %3952 = vmatpush1.bf16.msra.mxu0 %v2855
        %3953 = vmatprep.subr.bf16.mxu0 %v2858
        %3954 = vmatpush1.bf16.msra.mxu0 %v2857
        %3955 = vmatprep.subr.bf16.mxu0 %v2860
        %3956 = vmatpush1.bf16.msra.mxu0 %v2859
        %3957 = vmatprep.subr.bf16.mxu0 %v2862
        %3958 = vmatpush1.bf16.msra.mxu0 %v2861
        %3959 = vmatprep.subr.bf16.mxu0 %v2864
        %3960 = vmatpush1.bf16.msra.mxu0 %v2863
        %3961 = vmatprep.subr.bf16.mxu0 %v2866
        %3962 = vmatpush1.bf16.msra.mxu0 %v2865
        %3963 = vmatprep.subr.bf16.mxu0 %v2868
        %3964 = vmatpush1.bf16.msra.mxu0 %v2867
        %3965 = vmatprep.subr.bf16.mxu0 %v2870
        %3966 = vmatpush1.bf16.msra.mxu0 %v2869
        %3967 = vmatprep.subr.bf16.mxu0 %v2872
        %3968 = vmatpush1.bf16.msra.mxu0 %v2871
        %3969 = vmatprep.subr.bf16.mxu0 %v2874
        %3970 = vmatpush1.bf16.msra.mxu0 %v2873
        %3971 = vmatprep.subr.bf16.mxu0 %v2876
        %3972 = vmatpush1.bf16.msra.mxu0 %v2875
        %3973 = vmatprep.mubr.bf16.mxu0 %v960
        %3974 = vmatmul.mubr.bf16.gmra.mrb[0].mxu0 %v946
        %v3975 = vpop.f32.mrb[0].mxu0
        %v3976 = vadd.f32 %v3935, %v3975
        %v3977 = vpop.f32.mrb[0].mxu0
        %v3978 = vadd.f32 %v3937, %v3977
        %v3979 = vpop.f32.mrb[0].mxu0
        %v3980 = vpop.f32.mrb[0].mxu0
        %3981 = vdwg.mxu0
        %3982 = vmatprep.subr.bf16.mxu0 %v2878
        %3983 = vmatpush1.bf16.msra.mxu0 %v2877
        %3984 = vmatprep.subr.bf16.mxu0 %v2880
        %3985 = vmatpush1.bf16.msra.mxu0 %v2879
        %3986 = vmatprep.subr.bf16.mxu0 %v2882
        %3987 = vmatpush1.bf16.msra.mxu0 %v2881
        %3988 = vmatprep.subr.bf16.mxu0 %v2884
        %3989 = vmatpush1.bf16.msra.mxu0 %v2883
        %3990 = vmatprep.subr.bf16.mxu0 %v2886
        %3991 = vmatpush1.bf16.msra.mxu0 %v2885
        %3992 = vmatprep.subr.bf16.mxu0 %v2888
        %3993 = vmatpush1.bf16.msra.mxu0 %v2887
        %3994 = vmatprep.subr.bf16.mxu0 %v2890
        %3995 = vmatpush1.bf16.msra.mxu0 %v2889
        %3996 = vmatprep.subr.bf16.mxu0 %v2892
        %3997 = vmatpush1.bf16.msra.mxu0 %v2891
        %3998 = vmatprep.subr.bf16.mxu0 %v2894
        %3999 = vmatpush1.bf16.msra.mxu0 %v2893
        %4000 = vmatprep.subr.bf16.mxu0 %v2896
        %4001 = vmatpush1.bf16.msra.mxu0 %v2895
        %4002 = vmatprep.subr.bf16.mxu0 %v2898
        %4003 = vmatpush1.bf16.msra.mxu0 %v2897
        %4004 = vmatprep.subr.bf16.mxu0 %v2900
        %4005 = vmatpush1.bf16.msra.mxu0 %v2899
        %4006 = vmatprep.subr.bf16.mxu0 %v2902
        %4007 = vmatpush1.bf16.msra.mxu0 %v2901
        %4008 = vmatprep.subr.bf16.mxu0 %v2904
        %4009 = vmatpush1.bf16.msra.mxu0 %v2903
        %4010 = vmatprep.subr.bf16.mxu0 %v2906
        %4011 = vmatpush1.bf16.msra.mxu0 %v2905
        %4012 = vmatprep.subr.bf16.mxu0 %v2908
        %4013 = vmatpush1.bf16.msra.mxu0 %v2907
        %4014 = vmatprep.mubr.bf16.mxu0 %v970
        %4015 = vmatmul.mubr.bf16.gmra.mrb[0].mxu0 %v968
        %v4016 = vpop.f32.mrb[0].mxu0
        %v4017 = vadd.f32 %v3976, %v4016
        %v4018 = vpop.f32.mrb[0].mxu0
        %v4019 = vadd.f32 %v3978, %v4018
        %v4020 = vpop.f32.mrb[0].mxu0
        %v4021 = vpop.f32.mrb[0].mxu0
        %4022 = vdwg.mxu0
        %4023 = vmatprep.subr.bf16.mxu0 %v2910
        %4024 = vmatpush1.bf16.msra.mxu0 %v2909
        %4025 = vmatprep.subr.bf16.mxu0 %v2912
        %4026 = vmatpush1.bf16.msra.mxu0 %v2911
        %4027 = vmatprep.subr.bf16.mxu0 %v2914
        %4028 = vmatpush1.bf16.msra.mxu0 %v2913
        %4029 = vmatprep.subr.bf16.mxu0 %v2916
        %4030 = vmatpush1.bf16.msra.mxu0 %v2915
        %4031 = vmatprep.subr.bf16.mxu0 %v2918
        %4032 = vmatpush1.bf16.msra.mxu0 %v2917
        %4033 = vmatprep.subr.bf16.mxu0 %v2920
        %4034 = vmatpush1.bf16.msra.mxu0 %v2919
        %4035 = vmatprep.subr.bf16.mxu0 %v2922
        %4036 = vmatpush1.bf16.msra.mxu0 %v2921
        %4037 = vmatprep.subr.bf16.mxu0 %v2924
        %4038 = vmatpush1.bf16.msra.mxu0 %v2923
        %4039 = vmatprep.subr.bf16.mxu0 %v2926
        %4040 = vmatpush1.bf16.msra.mxu0 %v2925
        %4041 = vmatprep.subr.bf16.mxu0 %v2928
        %4042 = vmatpush1.bf16.msra.mxu0 %v2927
        %4043 = vmatprep.subr.bf16.mxu0 %v2930
        %4044 = vmatpush1.bf16.msra.mxu0 %v2929
        %4045 = vmatprep.subr.bf16.mxu0 %v2932
        %4046 = vmatpush1.bf16.msra.mxu0 %v2931
        %4047 = vmatprep.subr.bf16.mxu0 %v2934
        %4048 = vmatpush1.bf16.msra.mxu0 %v2933
        %4049 = vmatprep.subr.bf16.mxu0 %v2936
        %4050 = vmatpush1.bf16.msra.mxu0 %v2935
        %4051 = vmatprep.subr.bf16.mxu0 %v2938
        %4052 = vmatpush1.bf16.msra.mxu0 %v2937
        %4053 = vmatprep.subr.bf16.mxu0 %v2940
        %4054 = vmatpush1.bf16.msra.mxu0 %v2939
        %4055 = vmatprep.mubr.bf16.mxu0 %v967
        %4056 = vmatmul.mubr.bf16.gmra.mrb[0].mxu0 %v953
        %v4057 = vpop.f32.mrb[0].mxu0
        %v4058 = vadd.f32 %v4017, %v4057
        %v4059 = vpop.f32.mrb[0].mxu0
        %v4060 = vadd.f32 %v4019, %v4059
        %v4061 = vpop.f32.mrb[0].mxu0
        %v4062 = vpop.f32.mrb[0].mxu0
        %4063 = vdwg.mxu0
        %4064 = vmatprep.subr.bf16.mxu0 %v2942
        %4065 = vmatpush1.bf16.msra.mxu0 %v2941
        %4066 = vmatprep.subr.bf16.mxu0 %v2944
        %4067 = vmatpush1.bf16.msra.mxu0 %v2943
        %4068 = vmatprep.subr.bf16.mxu0 %v2946
        %4069 = vmatpush1.bf16.msra.mxu0 %v2945
        %4070 = vmatprep.subr.bf16.mxu0 %v2948
        %4071 = vmatpush1.bf16.msra.mxu0 %v2947
        %4072 = vmatprep.subr.bf16.mxu0 %v2950
        %4073 = vmatpush1.bf16.msra.mxu0 %v2949
        %4074 = vmatprep.subr.bf16.mxu0 %v2952
        %4075 = vmatpush1.bf16.msra.mxu0 %v2951
        %4076 = vmatprep.subr.bf16.mxu0 %v2954
        %4077 = vmatpush1.bf16.msra.mxu0 %v2953
        %4078 = vmatprep.subr.bf16.mxu0 %v2956
        %4079 = vmatpush1.bf16.msra.mxu0 %v2955
        %4080 = vmatprep.subr.bf16.mxu0 %v2958
        %4081 = vmatpush1.bf16.msra.mxu0 %v2957
        %4082 = vmatprep.subr.bf16.mxu0 %v2960
        %4083 = vmatpush1.bf16.msra.mxu0 %v2959
        %4084 = vmatprep.subr.bf16.mxu0 %v2962
        %4085 = vmatpush1.bf16.msra.mxu0 %v2961
        %4086 = vmatprep.subr.bf16.mxu0 %v2964
        %4087 = vmatpush1.bf16.msra.mxu0 %v2963
        %4088 = vmatprep.subr.bf16.mxu0 %v2966
        %4089 = vmatpush1.bf16.msra.mxu0 %v2965
        %4090 = vmatprep.subr.bf16.mxu0 %v2968
        %4091 = vmatpush1.bf16.msra.mxu0 %v2967
        %4092 = vmatprep.subr.bf16.mxu0 %v2970
        %4093 = vmatpush1.bf16.msra.mxu0 %v2969
        %4094 = vmatprep.subr.bf16.mxu0 %v2972
        %4095 = vmatpush1.bf16.msra.mxu0 %v2971
        %4096 = vmatprep.mubr.bf16.mxu0 %v971
        %4097 = vmatmul.mubr.bf16.gmra.mrb[0].mxu0 %v969
        %v4098 = vpop.f32.mrb[0].mxu0
        %v4099 = vadd.f32 %v4058, %v4098
        %v4100 = vpop.f32.mrb[0].mxu0
        %v4101 = vadd.f32 %v4060, %v4100
        %v4102 = vpop.f32.mrb[0].mxu0
        %v4103 = vpop.f32.mrb[0].mxu0
        %4104 = vdwg.mxu0
        %4105 = vmatprep.subr.bf16.mxu0 %v2974
        %4106 = vmatpush1.bf16.msra.mxu0 %v2973
        %4107 = vmatprep.subr.bf16.mxu0 %v2976
        %4108 = vmatpush1.bf16.msra.mxu0 %v2975
        %4109 = vmatprep.subr.bf16.mxu0 %v2978
        %4110 = vmatpush1.bf16.msra.mxu0 %v2977
        %4111 = vmatprep.subr.bf16.mxu0 %v2980
        %4112 = vmatpush1.bf16.msra.mxu0 %v2979
        %4113 = vmatprep.subr.bf16.mxu0 %v2982
        %4114 = vmatpush1.bf16.msra.mxu0 %v2981
        %4115 = vmatprep.subr.bf16.mxu0 %v2984
        %4116 = vmatpush1.bf16.msra.mxu0 %v2983
        %4117 = vmatprep.subr.bf16.mxu0 %v2986
        %4118 = vmatpush1.bf16.msra.mxu0 %v2985
        %4119 = vmatprep.subr.bf16.mxu0 %v2988
        %4120 = vmatpush1.bf16.msra.mxu0 %v2987
        %4121 = vmatprep.subr.bf16.mxu0 %v2990
        %4122 = vmatpush1.bf16.msra.mxu0 %v2989
        %4123 = vmatprep.subr.bf16.mxu0 %v2992
        %4124 = vmatpush1.bf16.msra.mxu0 %v2991
        %4125 = vmatprep.subr.bf16.mxu0 %v2994
        %4126 = vmatpush1.bf16.msra.mxu0 %v2993
        %4127 = vmatprep.subr.bf16.mxu0 %v2996
        %4128 = vmatpush1.bf16.msra.mxu0 %v2995
        %4129 = vmatprep.subr.bf16.mxu0 %v2998
        %4130 = vmatpush1.bf16.msra.mxu0 %v2997
        %4131 = vmatprep.subr.bf16.mxu0 %v3000
        %4132 = vmatpush1.bf16.msra.mxu0 %v2999
        %4133 = vmatprep.subr.bf16.mxu0 %v3002
        %4134 = vmatpush1.bf16.msra.mxu0 %v3001
        %4135 = vmatprep.subr.bf16.mxu0 %v3004
        %4136 = vmatpush1.bf16.msra.mxu0 %v3003
        %4137 = vmatprep.mubr.bf16.mxu0 %v1009
        %4138 = vmatmul.mubr.bf16.gmra.mrb[0].mxu0 %v995
        %v4139 = vpop.f32.mrb[0].mxu0
        %v4140 = vadd.f32 %v4099, %v4139
        %v4141 = vpop.f32.mrb[0].mxu0
        %v4142 = vadd.f32 %v4101, %v4141
        %v4143 = vpop.f32.mrb[0].mxu0
        %v4144 = vpop.f32.mrb[0].mxu0
        %4145 = vdwg.mxu0
        %4146 = vmatprep.subr.bf16.mxu0 %v3006
        %4147 = vmatpush1.bf16.msra.mxu0 %v3005
        %4148 = vmatprep.subr.bf16.mxu0 %v3008
        %4149 = vmatpush1.bf16.msra.mxu0 %v3007
        %4150 = vmatprep.subr.bf16.mxu0 %v3010
        %4151 = vmatpush1.bf16.msra.mxu0 %v3009
        %4152 = vmatprep.subr.bf16.mxu0 %v3012
        %4153 = vmatpush1.bf16.msra.mxu0 %v3011
        %4154 = vmatprep.subr.bf16.mxu0 %v3014
        %4155 = vmatpush1.bf16.msra.mxu0 %v3013
        %4156 = vmatprep.subr.bf16.mxu0 %v3016
        %4157 = vmatpush1.bf16.msra.mxu0 %v3015
        %4158 = vmatprep.subr.bf16.mxu0 %v3018
        %4159 = vmatpush1.bf16.msra.mxu0 %v3017
        %4160 = vmatprep.subr.bf16.mxu0 %v3020
        %4161 = vmatpush1.bf16.msra.mxu0 %v3019
        %4162 = vmatprep.subr.bf16.mxu0 %v3022
        %4163 = vmatpush1.bf16.msra.mxu0 %v3021
        %4164 = vmatprep.subr.bf16.mxu0 %v3024
        %4165 = vmatpush1.bf16.msra.mxu0 %v3023
        %4166 = vmatprep.subr.bf16.mxu0 %v3026
        %4167 = vmatpush1.bf16.msra.mxu0 %v3025
        %4168 = vmatprep.subr.bf16.mxu0 %v3028
        %4169 = vmatpush1.bf16.msra.mxu0 %v3027
        %4170 = vmatprep.subr.bf16.mxu0 %v3030
        %4171 = vmatpush1.bf16.msra.mxu0 %v3029
        %4172 = vmatprep.subr.bf16.mxu0 %v3032
        %4173 = vmatpush1.bf16.msra.mxu0 %v3031
        %4174 = vmatprep.subr.bf16.mxu0 %v3034
        %4175 = vmatpush1.bf16.msra.mxu0 %v3033
        %4176 = vmatprep.subr.bf16.mxu0 %v3036
        %4177 = vmatpush1.bf16.msra.mxu0 %v3035
        %4178 = vmatprep.mubr.bf16.mxu0 %v1019
        %4179 = vmatmul.mubr.bf16.gmra.mrb[0].mxu0 %v1017
        %v4180 = vpop.f32.mrb[0].mxu0
        %v4181 = vadd.f32 %v4140, %v4180
        %v4182 = vpop.f32.mrb[0].mxu0
        %v4183 = vadd.f32 %v4142, %v4182
        %v4184 = vpop.f32.mrb[0].mxu0
        %v4185 = vpop.f32.mrb[0].mxu0
        %4186 = vdwg.mxu0
        %4187 = vmatprep.subr.bf16.mxu0 %v3038
        %4188 = vmatpush1.bf16.msra.mxu0 %v3037
        %4189 = vmatprep.subr.bf16.mxu0 %v3040
        %4190 = vmatpush1.bf16.msra.mxu0 %v3039
        %4191 = vmatprep.subr.bf16.mxu0 %v3042
        %4192 = vmatpush1.bf16.msra.mxu0 %v3041
        %4193 = vmatprep.subr.bf16.mxu0 %v3044
        %4194 = vmatpush1.bf16.msra.mxu0 %v3043
        %4195 = vmatprep.subr.bf16.mxu0 %v3046
        %4196 = vmatpush1.bf16.msra.mxu0 %v3045
        %4197 = vmatprep.subr.bf16.mxu0 %v3048
        %4198 = vmatpush1.bf16.msra.mxu0 %v3047
        %4199 = vmatprep.subr.bf16.mxu0 %v3050
        %4200 = vmatpush1.bf16.msra.mxu0 %v3049
        %4201 = vmatprep.subr.bf16.mxu0 %v3052
        %4202 = vmatpush1.bf16.msra.mxu0 %v3051
        %4203 = vmatprep.subr.bf16.mxu0 %v3054
        %4204 = vmatpush1.bf16.msra.mxu0 %v3053
        %4205 = vmatprep.subr.bf16.mxu0 %v3056
        %4206 = vmatpush1.bf16.msra.mxu0 %v3055
        %4207 = vmatprep.subr.bf16.mxu0 %v3058
        %4208 = vmatpush1.bf16.msra.mxu0 %v3057
        %4209 = vmatprep.subr.bf16.mxu0 %v3060
        %4210 = vmatpush1.bf16.msra.mxu0 %v3059
        %4211 = vmatprep.subr.bf16.mxu0 %v3062
        %4212 = vmatpush1.bf16.msra.mxu0 %v3061
        %4213 = vmatprep.subr.bf16.mxu0 %v3064
        %4214 = vmatpush1.bf16.msra.mxu0 %v3063
        %4215 = vmatprep.subr.bf16.mxu0 %v3066
        %4216 = vmatpush1.bf16.msra.mxu0 %v3065
        %4217 = vmatprep.subr.bf16.mxu0 %v3068
        %4218 = vmatpush1.bf16.msra.mxu0 %v3067
        %4219 = vmatprep.mubr.bf16.mxu0 %v1016
        %4220 = vmatmul.mubr.bf16.gmra.mrb[0].mxu0 %v1002
        %v4221 = vpop.f32.mrb[0].mxu0
        %v4222 = vadd.f32 %v4181, %v4221
        %v4223 = vpop.f32.mrb[0].mxu0
        %v4224 = vadd.f32 %v4183, %v4223
        %v4225 = vpop.f32.mrb[0].mxu0
        %v4226 = vpop.f32.mrb[0].mxu0
        %4227 = vdwg.mxu0
        %4228 = vmatprep.subr.bf16.mxu0 %v3070
        %4229 = vmatpush1.bf16.msra.mxu0 %v3069
        %4230 = vmatprep.subr.bf16.mxu0 %v3072
        %4231 = vmatpush1.bf16.msra.mxu0 %v3071
        %4232 = vmatprep.subr.bf16.mxu0 %v3074
        %4233 = vmatpush1.bf16.msra.mxu0 %v3073
        %4234 = vmatprep.subr.bf16.mxu0 %v3076
        %4235 = vmatpush1.bf16.msra.mxu0 %v3075
        %4236 = vmatprep.subr.bf16.mxu0 %v3078
        %4237 = vmatpush1.bf16.msra.mxu0 %v3077
        %4238 = vmatprep.subr.bf16.mxu0 %v3080
        %4239 = vmatpush1.bf16.msra.mxu0 %v3079
        %4240 = vmatprep.subr.bf16.mxu0 %v3082
        %4241 = vmatpush1.bf16.msra.mxu0 %v3081
        %4242 = vmatprep.subr.bf16.mxu0 %v3084
        %4243 = vmatpush1.bf16.msra.mxu0 %v3083
        %4244 = vmatprep.subr.bf16.mxu0 %v3086
        %4245 = vmatpush1.bf16.msra.mxu0 %v3085
        %4246 = vmatprep.subr.bf16.mxu0 %v3088
        %4247 = vmatpush1.bf16.msra.mxu0 %v3087
        %4248 = vmatprep.subr.bf16.mxu0 %v3090
        %4249 = vmatpush1.bf16.msra.mxu0 %v3089
        %4250 = vmatprep.subr.bf16.mxu0 %v3092
        %4251 = vmatpush1.bf16.msra.mxu0 %v3091
        %4252 = vmatprep.subr.bf16.mxu0 %v3094
        %4253 = vmatpush1.bf16.msra.mxu0 %v3093
        %4254 = vmatprep.subr.bf16.mxu0 %v3096
        %4255 = vmatpush1.bf16.msra.mxu0 %v3095
        %4256 = vmatprep.subr.bf16.mxu0 %v3098
        %4257 = vmatpush1.bf16.msra.mxu0 %v3097
        %4258 = vmatprep.subr.bf16.mxu0 %v3100
        %4259 = vmatpush1.bf16.msra.mxu0 %v3099
        %4260 = vmatprep.mubr.bf16.mxu0 %v1020
        %4261 = vmatmul.mubr.bf16.gmra.mrb[0].mxu0 %v1018
        %v4262 = vpop.f32.mrb[0].mxu0
        %v4263 = vadd.f32 %v4222, %v4262
        %v4264 = vpop.f32.mrb[0].mxu0
        %v4265 = vadd.f32 %v4224, %v4264
        %v4266 = vpop.f32.mrb[0].mxu0
        %v4267 = vpop.f32.mrb[0].mxu0
        %4268 = vdwg.mxu0
        %v4271 = vcombine.low %v4263, %v4265
        %v4273 = vunpack.c.l.s4 1983009808
        %v4274 = vunpack.c.0.s8 %v4273
        %v4275 = vlaneseq
        %v4276 = vshrl.u32 %v4275, 7
        %v4277 = vsub.s32 %v4274, %v4276
        %v4278 = vrot.slane %v4271, %v4277
        %v4280 = vadd.f32 %v304, %v4278
        %4281 = vst [vmem:[#allocation2] sm:$0xf] %v4280
        %p4282 = scmp.eq.s32.totalorder %s24, 2
        // Predicated region
        $region53: #{_forward_impl.1} parent=35 // pred_check
          %p4283 = pneg %p4282
        $region54: #{_forward_impl.1} parent=35 // pred_check_branch
          %4285 = sbr.rel (%p4283) target = $region56
        $region55: #{_forward_impl.1} parent=35 // pred_region
          %v4286 = vld [vmem:[#allocation2] sm:$0xf]
          %v4287 = vld [vmem:[#allocation5] sm:$0x3]
          %v4289 = vlaneseq
          %v4290 = vshrl.u32 %v4289, 7
          %v4291 = vsub.s32 0, %v4290
          %v4292 = vrot.slane %v4287, %v4291
          %v4293 = vlaneseq
          %v4294 = vshrl.u32 %v4293, 7
          %v4295 = vsub.s32 1, %v4294
          %v4296 = vrot.slane %v4287, %v4295
          %v4297 = vcombine.low %v4292, %v4296
          %v4299 = vunpack.c.l.s4 1983009808
          %v4300 = vunpack.c.0.s8 %v4299
          %v4301 = vlaneseq
          %v4302 = vshrl.u32 %v4301, 7
          %v4303 = vsub.s32 %v4300, %v4302
          %v4304 = vrot.slane %v4297, %v4303
          %v4306 = vadd.f32 %v4286, %v4304
          %v4307 = vmax.f32 %v4306, 0.0
          %v4310 = vunpack.c.l.s4 1983009808
          %v4311 = vunpack.c.0.s8 %v4310
          %v4312 = vlaneseq
          %v4313 = vshrl.u32 %v4312, 7
          %v4314 = vsub.s32 %v4311, %v4313
          %v4315 = vrot.slane %v4307, %v4314
          %v4316 = vcombine.high %v4315, %v4315
          %v4319 = vpack.c.bf16 %v4315, %v4315
          %v4320 = vpack.c.bf16 %v4316, %v4316
          %v4321 = vld [vmem:[#allocation7] sm:$0xf]
          %v4322 = vld [vmem:[#allocation7 + $0x4] sm:$0xf]
          %v4323 = vld [vmem:[#allocation7 + $0x8] sm:$0xf]
          %v4324 = vld [vmem:[#allocation7 + $0xc] sm:$0xf]
          %v4325 = vld [vmem:[#allocation7 + $0x10] sm:$0xf]
          %v4326 = vld [vmem:[#allocation7 + $0x14] sm:$0xf]
          %v4327 = vld [vmem:[#allocation7 + $0x18] sm:$0xf]
          %v4328 = vld [vmem:[#allocation7 + $0x1c] sm:$0xf]
          %v4329 = vld [vmem:[#allocation7 + $0x20] sm:$0xf]
          %v4330 = vld [vmem:[#allocation7 + $0x24] sm:$0xf]
          %v4331 = vld [vmem:[#allocation7 + $0x28] sm:$0xf]
          %v4332 = vld [vmem:[#allocation7 + $0x2c] sm:$0xf]
          %v4333 = vld [vmem:[#allocation7 + $0x30] sm:$0xf]
          %v4334 = vld [vmem:[#allocation7 + $0x34] sm:$0xf]
          %v4335 = vld [vmem:[#allocation7 + $0x38] sm:$0xf]
          %v4336 = vld [vmem:[#allocation7 + $0x3c] sm:$0xf]
          %v4337 = vld [vmem:[#allocation7 + $0x40] sm:$0xf]
          %v4338 = vld [vmem:[#allocation7 + $0x44] sm:$0xf]
          %v4339 = vld [vmem:[#allocation7 + $0x48] sm:$0xf]
          %v4340 = vld [vmem:[#allocation7 + $0x4c] sm:$0xf]
          %v4341 = vld [vmem:[#allocation7 + $0x50] sm:$0xf]
          %v4342 = vld [vmem:[#allocation7 + $0x54] sm:$0xf]
          %v4343 = vld [vmem:[#allocation7 + $0x58] sm:$0xf]
          %v4344 = vld [vmem:[#allocation7 + $0x5c] sm:$0xf]
          %v4345 = vld [vmem:[#allocation7 + $0x60] sm:$0xf]
          %v4346 = vld [vmem:[#allocation7 + $0x64] sm:$0xf]
          %v4347 = vld [vmem:[#allocation7 + $0x68] sm:$0xf]
          %v4348 = vld [vmem:[#allocation7 + $0x6c] sm:$0xf]
          %v4349 = vld [vmem:[#allocation7 + $0x70] sm:$0xf]
          %v4350 = vld [vmem:[#allocation7 + $0x74] sm:$0xf]
          %v4351 = vld [vmem:[#allocation7 + $0x78] sm:$0xf]
          %v4352 = vld [vmem:[#allocation7 + $0x7c] sm:$0xf]
          %v4385 = vunpack.c.l.b16 %v4321
          %v4386 = vunpack.c.l.b16 %v4322
          %v4387 = vunpack.c.l.b16 %v4323
          %v4388 = vunpack.c.l.b16 %v4324
          %v4389 = vunpack.c.l.b16 %v4325
          %v4390 = vunpack.c.l.b16 %v4326
          %v4391 = vunpack.c.l.b16 %v4327
          %v4392 = vunpack.c.l.b16 %v4328
          %v4393 = vunpack.c.l.b16 %v4329
          %v4394 = vunpack.c.l.b16 %v4330
          %v4395 = vunpack.c.l.b16 %v4331
          %v4396 = vunpack.c.l.b16 %v4332
          %v4397 = vunpack.c.l.b16 %v4333
          %v4398 = vunpack.c.l.b16 %v4334
          %v4399 = vunpack.c.l.b16 %v4335
          %v4400 = vunpack.c.l.b16 %v4336
          %v4401 = vunpack.c.l.b16 %v4337
          %v4402 = vunpack.c.l.b16 %v4338
          %v4403 = vunpack.c.l.b16 %v4339
          %v4404 = vunpack.c.l.b16 %v4340
          %v4405 = vunpack.c.l.b16 %v4341
          %v4406 = vunpack.c.l.b16 %v4342
          %v4407 = vunpack.c.l.b16 %v4343
          %v4408 = vunpack.c.l.b16 %v4344
          %v4409 = vunpack.c.l.b16 %v4345
          %v4410 = vunpack.c.l.b16 %v4346
          %v4411 = vunpack.c.l.b16 %v4347
          %v4412 = vunpack.c.l.b16 %v4348
          %v4413 = vunpack.c.l.b16 %v4349
          %v4414 = vunpack.c.l.b16 %v4350
          %v4415 = vunpack.c.l.b16 %v4351
          %v4416 = vunpack.c.l.b16 %v4352
          %v4417 = vpack.c.b16 %v4386, %v4385
          %v4418 = vpack.c.b16 %v4388, %v4387
          %v4419 = vpack.c.b16 %v4390, %v4389
          %v4420 = vpack.c.b16 %v4392, %v4391
          %v4421 = vpack.c.b16 %v4394, %v4393
          %v4422 = vpack.c.b16 %v4396, %v4395
          %v4423 = vpack.c.b16 %v4398, %v4397
          %v4424 = vpack.c.b16 %v4400, %v4399
          %v4425 = vpack.c.b16 %v4402, %v4401
          %v4426 = vpack.c.b16 %v4404, %v4403
          %v4427 = vpack.c.b16 %v4406, %v4405
          %v4428 = vpack.c.b16 %v4408, %v4407
          %v4429 = vpack.c.b16 %v4410, %v4409
          %v4430 = vpack.c.b16 %v4412, %v4411
          %v4431 = vpack.c.b16 %v4414, %v4413
          %v4432 = vpack.c.b16 %v4416, %v4415
          %4449 = vmatprep.subr.bf16.mxu0 0
          %4450 = vmatpush1.bf16.msra.mxu0 %v4417
          %4451 = vmatprep.subr.bf16.mxu0 0
          %4452 = vmatpush1.bf16.msra.mxu0 %v4418
          %4453 = vmatprep.subr.bf16.mxu0 0
          %4454 = vmatpush1.bf16.msra.mxu0 %v4419
          %4455 = vmatprep.subr.bf16.mxu0 0
          %4456 = vmatpush1.bf16.msra.mxu0 %v4420
          %4457 = vmatprep.subr.bf16.mxu0 0
          %4458 = vmatpush1.bf16.msra.mxu0 %v4421
          %4459 = vmatprep.subr.bf16.mxu0 0
          %4460 = vmatpush1.bf16.msra.mxu0 %v4422
          %4461 = vmatprep.subr.bf16.mxu0 0
          %4462 = vmatpush1.bf16.msra.mxu0 %v4423
          %4463 = vmatprep.subr.bf16.mxu0 0
          %4464 = vmatpush1.bf16.msra.mxu0 %v4424
          %4465 = vmatprep.subr.bf16.mxu0 0
          %4466 = vmatpush1.bf16.msra.mxu0 %v4425
          %4467 = vmatprep.subr.bf16.mxu0 0
          %4468 = vmatpush1.bf16.msra.mxu0 %v4426
          %4469 = vmatprep.subr.bf16.mxu0 0
          %4470 = vmatpush1.bf16.msra.mxu0 %v4427
          %4471 = vmatprep.subr.bf16.mxu0 0
          %4472 = vmatpush1.bf16.msra.mxu0 %v4428
          %4473 = vmatprep.subr.bf16.mxu0 0
          %4474 = vmatpush1.bf16.msra.mxu0 %v4429
          %4475 = vmatprep.subr.bf16.mxu0 0
          %4476 = vmatpush1.bf16.msra.mxu0 %v4430
          %4477 = vmatprep.subr.bf16.mxu0 0
          %4478 = vmatpush1.bf16.msra.mxu0 %v4431
          %4479 = vmatprep.subr.bf16.mxu0 0
          %4480 = vmatpush1.bf16.msra.mxu0 %v4432
          %4481 = vmatprep.mubr.bf16.mxu0 %v4320
          %4482 = vmatmul.mubr.bf16.gmra.mrb[0].mxu0 %v4319
          %v4483 = vpop.f32.mrb[0].mxu0
          %v4484 = vadd.f32 0.0, %v4483
          %v4485 = vpop.f32.mrb[0].mxu0
          %v4486 = vpop.f32.mrb[0].mxu0
          %v4487 = vpop.f32.mrb[0].mxu0
          %4488 = vdwg.mxu0
          %4489 = vst [vmem:[%s297] sm:$0x3] %v4484
        $region56: #{_forward_impl.1} parent=35 // pred_fallthru
          _
        %p4490 = scmp.lt.s32.totalorder %s23, 0
        %s4491 = scalar_select %p4490, %s23, 0
        %s4492 = smul.addr %s4491, 2
        %s4493 = scalar_lea.vmem %s4, %s4492
        // Predicated region
        $region57: #{_forward_impl.1} parent=35 // pred_check
          %p4494 = pneg %p155
        $region58: #{_forward_impl.1} parent=35 // pred_check_branch
          %4496 = sbr.rel (%p4494) target = $region60
        $region59: #{_forward_impl.1} parent=35 // pred_region
          _
        $region60: #{_forward_impl.1} parent=35 // pred_fallthru
          _
        // Predicated region
        $region61: #{_forward_impl.1} parent=35 // pred_check
          %p4497 = pneg %p155
        $region62: #{_forward_impl.1} parent=35 // pred_check_branch
          %4499 = sbr.rel (%p4497) target = $region64
        $region63: #{_forward_impl.1} parent=35 // pred_region
          %p4500 = scmp.lt.s32.totalorder %s23, 0
          %s4501 = scalar_select %p4500, %s23, 0
          %s4502 = smul.addr %s4501, 2
          %s4503 = scalar_lea.vmem %s4, %s4502
        $region64: #{_forward_impl.1} parent=35 // pred_fallthru
          _
      $region36: #{_forward_impl.1} parent=5 // pred_fallthru
        _
      %p4504 = scmp.le.s32.totalorder 2, %s14
      // Predicated region
      $region65: #{_forward_impl.1} parent=5 // pred_check
        %p4505 = pneg %p4504
      $region66: #{_forward_impl.1} parent=5 // pred_check_branch
        %4507 = sbr.rel (%p4505) target = $region68
      $region67: #{_forward_impl.1} parent=5 // pred_region
        %s4508 = ssub.s32 %s14, 2
      $region68: #{_forward_impl.1} parent=5 // pred_fallthru
        _
    $region6: #{_forward_impl.1} parent=1 // loop_footer
      %s18 = sadd.s32 1, %s14
    $region7: #{_forward_impl.1} parent=1 // loop_footer_branch
      %13 = sbr.rel target = $region3
    $region8: #{_forward_impl.1} parent=1 // loop_exit
      _
    %4509 = vsyncpa [#allocation4], 1
    %s4510 = scalar_lea.sflag [#allocation4], 1
    %4511 = vsyncpa %s4510, 1
    %4512 = vsyncpa [#allocation6], 1

</llo_original>
